<compile_context>
chip_gen: v7x
topology: tpu7x:2x2x1
jax: 0.10.0
libtpu: 0.0.40
codegen_flags: <defaults>
</compile_context>

<pallas_src>
import math

import jax
import jax.numpy as jnp
import numpy as np
from jax import lax
from jax.experimental import pallas as pl
from jax.experimental.pallas import tpu as pltpu


def _layernorm(x, w, b, eps=1e-5):
    mu = jnp.mean(x, axis=-1, keepdims=True)
    var = jnp.mean((x - mu) ** 2, axis=-1, keepdims=True)
    return (x - mu) * jax.lax.rsqrt(var + eps) * w + b


def _vec_layout(B, S, E):
    """Row layout of the packed small-vector/constant buffer (width Wv).

    Every section starts on an 8-row (sublane tile) boundary so slices of
    vec_ref never need a sublane relayout.
    """
    S2 = S + 2
    R = B * S2
    Wv = max(E, R, B)
    layout = {}
    r = 0

    def add(name, nrows, ncols):
        nonlocal r
        r = (r + 7) & ~7                      # 8-row alignment
        layout[name] = (r, nrows, ncols)
        r += nrows

    for n in ('pb0', 'pb1', 'pb2', 'lb0', 'lb1', 'lb2'):
        add(n, 1, E)
    add('pos', R, E)        # per-folded-row positional rows (query_embed baked in)
    add('mask', R, R)       # 0 inside a batch, -1e30 across batches
    add('sp', R, B)         # 0/1 columns: ptp token row per batch
    total = (r + 7) & ~7
    return layout, total, Wv


def make_forward_kernel(B, S, E, F, L, H):
    S2 = S + 2
    R = B * S2
    HD = E // H
    W3 = 3 * E
    layout, _, _ = _vec_layout(B, S, E)

    def kernel(xf_ref, ptp_ref, mlp_w_ref, wqkv_ref, wff1_ref, wo_ref, w2_ref,
               enc_b_ref, vec_ref, out_ref):
        f32 = jnp.float32

        def vec(name):
            r0, nr, nc = layout[name]
            return vec_ref[r0:r0 + nr, 0:nc]

        pb0, pb1, pb2 = vec('pb0'), vec('pb1'), vec('pb2')
        lb0, lb1, lb2 = vec('lb0'), vec('lb1'), vec('lb2')
        pos_full = vec('pos')                       # (R, E)
        mask = vec('mask')                          # (R, R) block-diagonal bias
        sp = vec('sp')                              # (R, B) 0/1 columns

        # ---- ptp_expander: MLP(E(padded) -> E -> E -> E), ReLU on first two ----
        p = ptp_ref[...]                                                    # (B, E)
        h = jnp.maximum(jnp.dot(p, mlp_w_ref[0],
                                preferred_element_type=f32) + pb0, 0.0)
        h = jnp.maximum(jnp.dot(h, mlp_w_ref[1],
                                preferred_element_type=f32) + pb1, 0.0)
        ptp_e = jnp.dot(h, mlp_w_ref[2], preferred_element_type=f32) + pb2  # (B, E)

        # ---- folded sequence rows (B*S2, E): x rows already folded host-side;
        #      ptp token scattered with tiny VPU outer products (exact) --------
        xb = xf_ref[...] + pos_full
        for b in range(B):
            xb = xb + sp[:, b:b + 1] * ptp_e[b:b + 1, :]

        # ---- L post-LN transformer encoder layers (batch folded into rows) ----
        for l in range(L):
            wqkv = wqkv_ref[l]          # (E, 3E)  [W_q|W_k|W_v], W_q pre-scaled
            w1 = wff1_ref[l]            # (E, F)
            wo = wo_ref[l]              # (E, E)   row h*HD..(h+1)*HD-1 = head h
            w2 = w2_ref[l]              # (F, E)
            eb = enc_b_ref[l]           # (8, 3E) of padded bias/LN rows
            bqkv = eb[0:1, 0:W3]
            bo, ln1w, ln1b = eb[1:2, 0:E], eb[2:3, 0:E], eb[3:4, 0:E]
            b1 = eb[4:5, 0:F]
            b2, ln2w, ln2b = eb[5:6, 0:E], eb[6:7, 0:E], eb[7:8, 0:E]

            # QKV for all folded rows at once
            qkv = jnp.dot(xb, wqkv, preferred_element_type=f32) + bqkv      # (R, 3E)

            # one head at a time; accumulate the out-projection into (R, E)
            acc = None
            for hh in range(H):
                qh = qkv[:, hh * HD:(hh + 1) * HD]                          # (R, HD)
                kh = qkv[:, E + hh * HD:E + (hh + 1) * HD]                  # (R, HD)
                vh = qkv[:, 2 * E + hh * HD:2 * E + (hh + 1) * HD]          # (R, HD)
                s = lax.dot_general(qh, kh, (((1,), (1,)), ((), ())),
                                    preferred_element_type=f32) + mask      # (R, R)
                m = jnp.max(s, axis=-1, keepdims=True)
                e = jnp.exp(s - m)
                pattn = e * pl.reciprocal(jnp.sum(e, axis=-1, keepdims=True),
                                          approx=True)
                ctx = jnp.dot(pattn, vh, preferred_element_type=f32)        # (R, HD)
                c = jnp.dot(ctx, wo[hh * HD:(hh + 1) * HD, :],
                            preferred_element_type=f32)                     # (R, E)
                acc = c if acc is None else acc + c

            xb = _layernorm(xb + acc + bo, ln1w, ln1b)

            ff = jnp.maximum(jnp.dot(xb, w1, preferred_element_type=f32) + b1,
                             0.0)                                           # (R, F)
            ff = jnp.dot(ff, w2, preferred_element_type=f32) + b2           # (R, E)
            xb = _layernorm(xb + ff, ln2w, ln2b)

        # ---- token -2 of each batch sequence (query slot), then last_mlp ----
        y = jnp.concatenate([xb[b * S2 + S:b * S2 + S + 1, :] for b in range(B)],
                            axis=0)                                          # (B, E)
        y = jnp.maximum(jnp.dot(y, mlp_w_ref[3], preferred_element_type=f32) + lb0, 0.0)
        y = jnp.maximum(jnp.dot(y, mlp_w_ref[4], preferred_element_type=f32) + lb1, 0.0)
        y = jnp.dot(y, mlp_w_ref[5], preferred_element_type=f32) + lb2
        out_ref[...] = y

    return kernel


def pack_params(params, *, batch_size, seq_len, nhead):
    """One-time host-side packing of the 28 module tensors into 7 buffers."""
    B, S, H = batch_size, seq_len, nhead
    E = params['pw1'].shape[0]
    P = params['pw0'].shape[0]
    F = params['w1'].shape[-1]
    L = params['wqkv'].shape[0]
    assert E % H == 0 and P <= E
    S2 = S + 2
    R = B * S2
    HD = E // H
    scale = 1.0 / math.sqrt(HD)
    f32 = np.float32

    def npa(a):
        return np.asarray(a, dtype=f32)

    # six (E,E) matrices of the two 3-layer MLPs (pw0 zero-padded on rows P..E-1)
    pw0p = np.zeros((E, E), f32)
    pw0p[:P, :] = npa(params['pw0'])
    mlp_w = np.stack([pw0p, npa(params['pw1']), npa(params['pw2']),
                      npa(params['lw0']), npa(params['lw1']), npa(params['lw2'])], 0)

    # per-layer encoder weights (separate buffers -> lane-tile aligned slices)
    enc_wqkv = npa(params['wqkv']).copy()
    enc_wqkv[:, :, :E] *= scale                   # fold 1/sqrt(HD) into W_q
    enc_w1 = npa(params['w1'])                    # (L, E, F)
    enc_wo = npa(params['wo'])                    # (L, E, E); rows h*HD.. = head h
    enc_w2 = npa(params['w2'])                    # (L, F, E)

    # per-layer bias / LN vectors: one padded row each -> (L, 8, 3E)
    bqkv = npa(params['bqkv']).copy()
    bqkv[:, :E] *= scale                          # fold scale into b_q
    rows = [bqkv, npa(params['bo']), npa(params['ln1w']), npa(params['ln1b']),
            npa(params['b1']), npa(params['b2']), npa(params['ln2w']),
            npa(params['ln2b'])]
    enc_b = np.zeros((L, len(rows), 3 * E), f32)
    for i, v in enumerate(rows):
        enc_b[:, i, :v.shape[-1]] = v

    # packed small-vector / constant buffer (8-row aligned sections)
    layout, nrows, Wv = _vec_layout(B, S, E)
    vec = np.zeros((nrows, Wv), f32)

    def put(name, arr):
        r0, nr, nc = layout[name]
        vec[r0:r0 + nr, :nc] = arr

    for n in ('pb0', 'pb1', 'pb2', 'lb0', 'lb1', 'lb2'):
        put(n, npa(params[n]))
    # positional rows of the folded sequence; query_embed baked into its slot
    pos = npa(params['pos_table'])
    qe = npa(params['query_embed'])[0]
    pos_full = np.tile(pos, (B, 1))
    for b in range(B):
        pos_full[b * S2 + S, :] += qe
    put('pos', pos_full)
    # block-diagonal attention bias: 0 within a batch, -1e30 across batches
    bidx = np.repeat(np.arange(B), S2)
    put('mask', np.where(bidx[:, None] == bidx[None, :], 0.0, -1e30).astype(f32))
    # 0/1 columns selecting the ptp-token row (b*S2 + S + 1) per batch
    sp = np.zeros((R, B), f32)
    for b in range(B):
        sp[b * S2 + S + 1, b] = 1.0
    put('sp', sp)

    meta = dict(B=B, S=S, E=E, P=P, F=F, L=L, H=H)
    return dict(mlp_w=jnp.asarray(mlp_w), enc_wqkv=jnp.asarray(enc_wqkv),
                enc_w1=jnp.asarray(enc_w1), enc_wo=jnp.asarray(enc_wo),
                enc_w2=jnp.asarray(enc_w2), enc_b=jnp.asarray(enc_b),
                vec=jnp.asarray(vec), meta=meta)


def transformer_hidden_predictor_fwd(packed, x, ptp, latent=None):
    # `latent` is accepted but unused, exactly like the PyTorch forward.
    meta = packed['meta']
    B, S, E = x.shape
    assert (B, S, E) == (meta['B'], meta['S'], meta['E'])
    P = meta['P']
    S2 = S + 2
    kernel = make_forward_kernel(B, S, E, meta['F'], meta['L'], meta['H'])

    # Exact (pure layout) host/XLA-side prep: fold x into the (B*S2, E) row
    # layout (zeros at the query / ptp slots) and zero-pad ptp to width E.
    x_folded = jnp.pad(x, ((0, 0), (0, 2), (0, 0))).reshape(B * S2, E)
    ptp_pad = jnp.pad(ptp, ((0, 0), (0, E - P)))

    args = (x_folded, ptp_pad, packed['mlp_w'], packed['enc_wqkv'],
            packed['enc_w1'], packed['enc_wo'], packed['enc_w2'],
            packed['enc_b'], packed['vec'])
    vmem = pl.BlockSpec(memory_space=pltpu.MemorySpace.VMEM)
    # Single fused invocation, no grid: total packed state is < 1 MiB and the
    # kernel is latency-bound at these shapes.  Larger batches should be folded
    # into more rows per call (or sharded over TensorCores on v7x).
    return pl.pallas_call(
        kernel,
        out_shape=jax.ShapeDtypeStruct((B, E), jnp.float32),
        in_specs=[vmem] * len(args),
        out_specs=vmem,
    )(*args)


def init_params(key, E, P, F, L, S2):
    keys = iter(jax.random.split(key, 32))

    def lin(shape):  # stored pre-transposed: (in, out) or (L, in, out)
        fan_in = shape[-2]
        return jax.random.normal(next(keys), shape, jnp.float32) / math.sqrt(fan_in)

    def vecp(shape, s=0.02):
        return jax.random.normal(next(keys), shape, jnp.float32) * s

    return dict(
        query_embed=vecp((1, E), 1.0),         # nn.Embedding(1, E).weight
        pos_table=vecp((S2, E), 1.0),          # PositionEmbeddingLearned rows 0..S2-1
        # ptp_expander = MLP(P, E, E, 3)
        pw0=lin((P, E)), pb0=vecp((E,)),
        pw1=lin((E, E)), pb1=vecp((E,)),
        pw2=lin((E, E)), pb2=vecp((E,)),
        # transformer encoder layers (stacked over L)
        wqkv=lin((L, E, 3 * E)), bqkv=vecp((L, 3 * E)),
        wo=lin((L, E, E)), bo=vecp((L, E)),
        ln1w=jnp.ones((L, E), jnp.float32), ln1b=jnp.zeros((L, E), jnp.float32),
        w1=lin((L, E, F)), b1=vecp((L, F)),
        w2=lin((L, F, E)), b2=vecp((L, E)),
        ln2w=jnp.ones((L, E), jnp.float32), ln2b=jnp.zeros((L, E), jnp.float32),
        # last_mlp = MLP(E, E, E, 3)
        lw0=lin((E, E)), lb0=vecp((E,)),
        lw1=lin((E, E)), lb1=vecp((E,)),
        lw2=lin((E, E)), lb2=vecp((E,)),
    )


def ref_forward(params, x, ptp, nhead):
    """Pure-JAX reference with identical semantics (sanity check)."""
    def mlp3(y, w0, b0, w1, b1, w2, b2):
        y = jax.nn.relu(y @ w0 + b0)
        y = jax.nn.relu(y @ w1 + b1)
        return y @ w2 + b2

    def ln(v, w, b, eps=1e-5):
        mu = jnp.mean(v, -1, keepdims=True)
        var = jnp.mean((v - mu) ** 2, -1, keepdims=True)
        return (v - mu) * jax.lax.rsqrt(var + eps) * w + b

    B, S, E = x.shape
    H, HD = nhead, E // nhead
    ptp_e = mlp3(ptp, params['pw0'], params['pb0'], params['pw1'], params['pb1'],
                 params['pw2'], params['pb2'])
    q_tok = jnp.broadcast_to(params['query_embed'][None, :, :], (B, 1, E))
    xs = jnp.concatenate([x, q_tok, ptp_e[:, None, :]], axis=1)
    xs = xs + params['pos_table'][None]
    S2 = S + 2
    for l in range(params['wqkv'].shape[0]):
        qkv = xs @ params['wqkv'][l] + params['bqkv'][l]
        q, k, v = jnp.split(qkv, 3, axis=-1)
        heads = lambda t: t.reshape(B, S2, H, HD).transpose(0, 2, 1, 3)
        s = jnp.einsum('bhqd,bhkd->bhqk', heads(q) / math.sqrt(HD), heads(k))
        a = jax.nn.softmax(s, axis=-1)
        o = jnp.einsum('bhqk,bhkd->bhqd', a, heads(v)).transpose(0, 2, 1, 3).reshape(B, S2, E)
        xs = ln(xs + o @ params['wo'][l] + params['bo'][l],
                params['ln1w'][l], params['ln1b'][l])
        ff = jax.nn.relu(xs @ params['w1'][l] + params['b1'][l]) @ params['w2'][l] + params['b2'][l]
        xs = ln(xs + ff, params['ln2w'][l], params['ln2b'][l])
    y = xs[:, -2]
    return mlp3(y, params['lw0'], params['lb0'], params['lw1'], params['lb1'],
                params['lw2'], params['lb2'])


if __name__ == "__main__":
    # Shapes implied by the module: embedding_size=32, num_conditional_frames=8,
    # ptp_size=16, latent_size=8 (unused), nhead=4, dim_feedforward=64, layers=2, B=2.
    B, S, E, P, F, L, H = 2, 8, 32, 16, 64, 2, 4
    latent_size = 8

    key = jax.random.PRNGKey(0)
    kx, kp, kl, kw = jax.random.split(key, 4)
    x = jax.random.normal(kx, (B, S, E), jnp.float32)
    ptp = jax.random.normal(kp, (B, P), jnp.float32)
    latent = jax.random.normal(kl, (B, latent_size), jnp.float32)  # unused by forward
    params = init_params(kw, E, P, F, L, S + 2)
    packed = pack_params(params, batch_size=B, seq_len=S, nhead=H)

    out = transformer_hidden_predictor_fwd(packed, x, ptp, latent)
    out = jax.block_until_ready(out)
    assert out.shape == (B, E)

    ref = ref_forward(params, x, ptp, H)
    # Tolerance absorbs approx-mode EUP reciprocal in the softmax and the
    # default-precision (MXU bf16-pass) f32 matmuls.
    np.testing.assert_allclose(np.asarray(out), np.asarray(ref), rtol=5e-3, atol=5e-3)

    print("KERNEL_OK")
</pallas_src>

<mosaic_0001>
module attributes {stable_mosaic.version = 11 : i64} {
  func.func @kernel(%arg0: memref<20x32xf32, #tpu.memory_space<vmem>>, %arg1: memref<2x32xf32, #tpu.memory_space<vmem>>, %arg2: memref<6x32x32xf32, #tpu.memory_space<vmem>>, %arg3: memref<2x32x96xf32, #tpu.memory_space<vmem>>, %arg4: memref<2x32x64xf32, #tpu.memory_space<vmem>>, %arg5: memref<2x32x32xf32, #tpu.memory_space<vmem>>, %arg6: memref<2x64x32xf32, #tpu.memory_space<vmem>>, %arg7: memref<2x8x96xf32, #tpu.memory_space<vmem>>, %arg8: memref<120x32xf32, #tpu.memory_space<vmem>>, %arg9: memref<2x32xf32, #tpu.memory_space<vmem>>) attributes {dimension_semantics = [], scalar_prefetch = 0 : i64, scratch_operands = 0 : i64, tpu.core_type = #tpu.core_type<tc>} {
    %c0 = arith.constant 0 : index
    %c0_0 = arith.constant 0 : index
    %0 = vector.load %arg8[%c0, %c0_0] : memref<120x32xf32, #tpu.memory_space<vmem>>, vector<1x32xf32>
    %c8 = arith.constant 8 : index
    %c0_1 = arith.constant 0 : index
    %1 = vector.load %arg8[%c8, %c0_1] : memref<120x32xf32, #tpu.memory_space<vmem>>, vector<1x32xf32>
    %c16 = arith.constant 16 : index
    %c0_2 = arith.constant 0 : index
    %2 = vector.load %arg8[%c16, %c0_2] : memref<120x32xf32, #tpu.memory_space<vmem>>, vector<1x32xf32>
    %c24 = arith.constant 24 : index
    %c0_3 = arith.constant 0 : index
    %3 = vector.load %arg8[%c24, %c0_3] : memref<120x32xf32, #tpu.memory_space<vmem>>, vector<1x32xf32>
    %c32 = arith.constant 32 : index
    %c0_4 = arith.constant 0 : index
    %4 = vector.load %arg8[%c32, %c0_4] : memref<120x32xf32, #tpu.memory_space<vmem>>, vector<1x32xf32>
    %c40 = arith.constant 40 : index
    %c0_5 = arith.constant 0 : index
    %5 = vector.load %arg8[%c40, %c0_5] : memref<120x32xf32, #tpu.memory_space<vmem>>, vector<1x32xf32>
    %c48 = arith.constant 48 : index
    %c0_6 = arith.constant 0 : index
    %6 = vector.load %arg8[%c48, %c0_6] : memref<120x32xf32, #tpu.memory_space<vmem>>, vector<20x32xf32>
    %c72 = arith.constant 72 : index
    %c0_7 = arith.constant 0 : index
    %7 = vector.load %arg8[%c72, %c0_7] : memref<120x32xf32, #tpu.memory_space<vmem>>, vector<20x20xf32>
    %c96 = arith.constant 96 : index
    %c0_8 = arith.constant 0 : index
    %8 = vector.load %arg8[%c96, %c0_8] : memref<120x32xf32, #tpu.memory_space<vmem>>, vector<20x2xf32>
    %c0_9 = arith.constant 0 : index
    %c0_10 = arith.constant 0 : index
    %9 = vector.load %arg1[%c0_9, %c0_10] : memref<2x32xf32, #tpu.memory_space<vmem>>, vector<2x32xf32>
    %c0_11 = arith.constant 0 : index
    %c0_12 = arith.constant 0 : index
    %c0_13 = arith.constant 0 : index
    %10 = vector.load %arg2[%c0_11, %c0_12, %c0_13] : memref<6x32x32xf32, #tpu.memory_space<vmem>>, vector<1x32x32xf32>
    %11 = vector.shape_cast %10 : vector<1x32x32xf32> to vector<32x32xf32>
    %cst = arith.constant dense<0.000000e+00> : vector<2x32xf32>
    %12 = tpu.matmul %9, %11, %cst {dimension_numbers = #tpu.dot_dimension_numbers<[1], [0], [0], [1], [0, 0, 1, 1], [], []>} : vector<2x32xf32>, vector<32x32xf32>, vector<2x32xf32> -> vector<2x32xf32>
    %13 = vector.broadcast %0 : vector<1x32xf32> to vector<2x32xf32>
    %14 = arith.addf %12, %13 : vector<2x32xf32>
    %cst_14 = arith.constant 0.000000e+00 : f32
    %15 = vector.broadcast %cst_14 : f32 to vector<2x32xf32>
    %16 = arith.maximumf %14, %15 : vector<2x32xf32>
    %c1 = arith.constant 1 : index
    %c0_15 = arith.constant 0 : index
    %c0_16 = arith.constant 0 : index
    %17 = vector.load %arg2[%c1, %c0_15, %c0_16] : memref<6x32x32xf32, #tpu.memory_space<vmem>>, vector<1x32x32xf32>
    %18 = vector.shape_cast %17 : vector<1x32x32xf32> to vector<32x32xf32>
    %cst_17 = arith.constant dense<0.000000e+00> : vector<2x32xf32>
    %19 = tpu.matmul %16, %18, %cst_17 {dimension_numbers = #tpu.dot_dimension_numbers<[1], [0], [0], [1], [0, 0, 1, 1], [], []>} : vector<2x32xf32>, vector<32x32xf32>, vector<2x32xf32> -> vector<2x32xf32>
    %20 = vector.broadcast %1 : vector<1x32xf32> to vector<2x32xf32>
    %21 = arith.addf %19, %20 : vector<2x32xf32>
    %cst_18 = arith.constant 0.000000e+00 : f32
    %22 = vector.broadcast %cst_18 : f32 to vector<2x32xf32>
    %23 = arith.maximumf %21, %22 : vector<2x32xf32>
    %c2 = arith.constant 2 : index
    %c0_19 = arith.constant 0 : index
    %c0_20 = arith.constant 0 : index
    %24 = vector.load %arg2[%c2, %c0_19, %c0_20] : memref<6x32x32xf32, #tpu.memory_space<vmem>>, vector<1x32x32xf32>
    %25 = vector.shape_cast %24 : vector<1x32x32xf32> to vector<32x32xf32>
    %cst_21 = arith.constant dense<0.000000e+00> : vector<2x32xf32>
    %26 = tpu.matmul %23, %25, %cst_21 {dimension_numbers = #tpu.dot_dimension_numbers<[1], [0], [0], [1], [0, 0, 1, 1], [], []>} : vector<2x32xf32>, vector<32x32xf32>, vector<2x32xf32> -> vector<2x32xf32>
    %27 = vector.broadcast %2 : vector<1x32xf32> to vector<2x32xf32>
    %28 = arith.addf %26, %27 : vector<2x32xf32>
    %c0_22 = arith.constant 0 : index
    %c0_23 = arith.constant 0 : index
    %29 = vector.load %arg0[%c0_22, %c0_23] : memref<20x32xf32, #tpu.memory_space<vmem>>, vector<20x32xf32>
    %30 = arith.addf %29, %6 : vector<20x32xf32>
    %31 = vector.extract_strided_slice %8 {offsets = [0, 0], sizes = [20, 1], strides = [1, 1]} : vector<20x2xf32> to vector<20x1xf32>
    %32 = vector.extract_strided_slice %28 {offsets = [0, 0], sizes = [1, 32], strides = [1, 1]} : vector<2x32xf32> to vector<1x32xf32>
    %33 = vector.broadcast %31 : vector<20x1xf32> to vector<20x32xf32>
    %34 = vector.broadcast %32 : vector<1x32xf32> to vector<20x32xf32>
    %35 = arith.mulf %33, %34 : vector<20x32xf32>
    %36 = arith.addf %30, %35 : vector<20x32xf32>
    %37 = vector.extract_strided_slice %8 {offsets = [0, 1], sizes = [20, 1], strides = [1, 1]} : vector<20x2xf32> to vector<20x1xf32>
    %38 = vector.extract_strided_slice %28 {offsets = [1, 0], sizes = [1, 32], strides = [1, 1]} : vector<2x32xf32> to vector<1x32xf32>
    %39 = vector.broadcast %37 : vector<20x1xf32> to vector<20x32xf32>
    %40 = vector.broadcast %38 : vector<1x32xf32> to vector<20x32xf32>
    %41 = arith.mulf %39, %40 : vector<20x32xf32>
    %42 = arith.addf %36, %41 : vector<20x32xf32>
    %c0_24 = arith.constant 0 : index
    %c0_25 = arith.constant 0 : index
    %c0_26 = arith.constant 0 : index
    %43 = vector.load %arg3[%c0_24, %c0_25, %c0_26] : memref<2x32x96xf32, #tpu.memory_space<vmem>>, vector<1x32x96xf32>
    %44 = vector.shape_cast %43 : vector<1x32x96xf32> to vector<32x96xf32>
    %c0_27 = arith.constant 0 : index
    %c0_28 = arith.constant 0 : index
    %c0_29 = arith.constant 0 : index
    %45 = vector.load %arg4[%c0_27, %c0_28, %c0_29] : memref<2x32x64xf32, #tpu.memory_space<vmem>>, vector<1x32x64xf32>
    %46 = vector.shape_cast %45 : vector<1x32x64xf32> to vector<32x64xf32>
    %c0_30 = arith.constant 0 : index
    %c0_31 = arith.constant 0 : index
    %c0_32 = arith.constant 0 : index
    %47 = vector.load %arg5[%c0_30, %c0_31, %c0_32] : memref<2x32x32xf32, #tpu.memory_space<vmem>>, vector<1x32x32xf32>
    %48 = vector.shape_cast %47 : vector<1x32x32xf32> to vector<32x32xf32>
    %c0_33 = arith.constant 0 : index
    %c0_34 = arith.constant 0 : index
    %c0_35 = arith.constant 0 : index
    %49 = vector.load %arg6[%c0_33, %c0_34, %c0_35] : memref<2x64x32xf32, #tpu.memory_space<vmem>>, vector<1x64x32xf32>
    %50 = vector.shape_cast %49 : vector<1x64x32xf32> to vector<64x32xf32>
    %c0_36 = arith.constant 0 : index
    %c0_37 = arith.constant 0 : index
    %c0_38 = arith.constant 0 : index
    %51 = vector.load %arg7[%c0_36, %c0_37, %c0_38] : memref<2x8x96xf32, #tpu.memory_space<vmem>>, vector<1x8x96xf32>
    %52 = vector.shape_cast %51 : vector<1x8x96xf32> to vector<8x96xf32>
    %53 = vector.extract_strided_slice %52 {offsets = [0, 0], sizes = [1, 96], strides = [1, 1]} : vector<8x96xf32> to vector<1x96xf32>
    %54 = vector.extract_strided_slice %52 {offsets = [1, 0], sizes = [1, 32], strides = [1, 1]} : vector<8x96xf32> to vector<1x32xf32>
    %55 = vector.extract_strided_slice %52 {offsets = [2, 0], sizes = [1, 32], strides = [1, 1]} : vector<8x96xf32> to vector<1x32xf32>
    %56 = vector.extract_strided_slice %52 {offsets = [3, 0], sizes = [1, 32], strides = [1, 1]} : vector<8x96xf32> to vector<1x32xf32>
    %57 = vector.extract_strided_slice %52 {offsets = [4, 0], sizes = [1, 64], strides = [1, 1]} : vector<8x96xf32> to vector<1x64xf32>
    %58 = vector.extract_strided_slice %52 {offsets = [5, 0], sizes = [1, 32], strides = [1, 1]} : vector<8x96xf32> to vector<1x32xf32>
    %59 = vector.extract_strided_slice %52 {offsets = [6, 0], sizes = [1, 32], strides = [1, 1]} : vector<8x96xf32> to vector<1x32xf32>
    %60 = vector.extract_strided_slice %52 {offsets = [7, 0], sizes = [1, 32], strides = [1, 1]} : vector<8x96xf32> to vector<1x32xf32>
    %cst_39 = arith.constant dense<0.000000e+00> : vector<20x96xf32>
    %61 = tpu.matmul %42, %44, %cst_39 {dimension_numbers = #tpu.dot_dimension_numbers<[1], [0], [0], [1], [0, 0, 1, 1], [], []>} : vector<20x32xf32>, vector<32x96xf32>, vector<20x96xf32> -> vector<20x96xf32>
    %62 = vector.broadcast %53 : vector<1x96xf32> to vector<20x96xf32>
    %63 = arith.addf %61, %62 : vector<20x96xf32>
    %64 = vector.extract_strided_slice %63 {offsets = [0, 0], sizes = [20, 8], strides = [1, 1]} : vector<20x96xf32> to vector<20x8xf32>
    %65 = vector.extract_strided_slice %63 {offsets = [0, 32], sizes = [20, 8], strides = [1, 1]} : vector<20x96xf32> to vector<20x8xf32>
    %66 = vector.extract_strided_slice %63 {offsets = [0, 64], sizes = [20, 8], strides = [1, 1]} : vector<20x96xf32> to vector<20x8xf32>
    %cst_40 = arith.constant dense<0.000000e+00> : vector<20x20xf32>
    %67 = tpu.matmul %64, %65, %cst_40 {dimension_numbers = #tpu.dot_dimension_numbers<[1], [1], [0], [0], [0, 0, 1, 0], [], []>} : vector<20x8xf32>, vector<20x8xf32>, vector<20x20xf32> -> vector<20x20xf32>
    %68 = arith.addf %67, %7 : vector<20x20xf32>
    %cst_41 = arith.constant dense<0xFF800000> : vector<20xf32>
    %69 = vector.multi_reduction <maximumf>, %68, %cst_41 [1] : vector<20x20xf32> to vector<20xf32>
    %70 = vector.shape_cast %69 : vector<20xf32> to vector<20x1xf32>
    %71 = vector.broadcast %70 : vector<20x1xf32> to vector<20x20xf32>
    %72 = arith.subf %68, %71 : vector<20x20xf32>
    %73 = math.exp %72 : vector<20x20xf32>
    %cst_42 = arith.constant dense<0.000000e+00> : vector<20xf32>
    %74 = vector.multi_reduction <add>, %73, %cst_42 [1] : vector<20x20xf32> to vector<20xf32>
    %75 = vector.shape_cast %74 : vector<20xf32> to vector<20x1xf32>
    %76 = tpu.reciprocal %75 {approx = true} : vector<20x1xf32> -> vector<20x1xf32>
    %77 = vector.broadcast %76 : vector<20x1xf32> to vector<20x20xf32>
    %78 = arith.mulf %73, %77 : vector<20x20xf32>
    %cst_43 = arith.constant dense<0.000000e+00> : vector<20x8xf32>
    %79 = tpu.matmul %78, %66, %cst_43 {dimension_numbers = #tpu.dot_dimension_numbers<[1], [0], [0], [1], [0, 0, 1, 1], [], []>} : vector<20x20xf32>, vector<20x8xf32>, vector<20x8xf32> -> vector<20x8xf32>
    %80 = vector.extract_strided_slice %48 {offsets = [0, 0], sizes = [8, 32], strides = [1, 1]} : vector<32x32xf32> to vector<8x32xf32>
    %cst_44 = arith.constant dense<0.000000e+00> : vector<20x32xf32>
    %81 = tpu.matmul %79, %80, %cst_44 {dimension_numbers = #tpu.dot_dimension_numbers<[1], [0], [0], [1], [0, 0, 1, 1], [], []>} : vector<20x8xf32>, vector<8x32xf32>, vector<20x32xf32> -> vector<20x32xf32>
    %82 = vector.extract_strided_slice %63 {offsets = [0, 8], sizes = [20, 8], strides = [1, 1]} : vector<20x96xf32> to vector<20x8xf32>
    %83 = vector.extract_strided_slice %63 {offsets = [0, 40], sizes = [20, 8], strides = [1, 1]} : vector<20x96xf32> to vector<20x8xf32>
    %84 = vector.extract_strided_slice %63 {offsets = [0, 72], sizes = [20, 8], strides = [1, 1]} : vector<20x96xf32> to vector<20x8xf32>
    %cst_45 = arith.constant dense<0.000000e+00> : vector<20x20xf32>
    %85 = tpu.matmul %82, %83, %cst_45 {dimension_numbers = #tpu.dot_dimension_numbers<[1], [1], [0], [0], [0, 0, 1, 0], [], []>} : vector<20x8xf32>, vector<20x8xf32>, vector<20x20xf32> -> vector<20x20xf32>
    %86 = arith.addf %85, %7 : vector<20x20xf32>
    %cst_46 = arith.constant dense<0xFF800000> : vector<20xf32>
    %87 = vector.multi_reduction <maximumf>, %86, %cst_46 [1] : vector<20x20xf32> to vector<20xf32>
    %88 = vector.shape_cast %87 : vector<20xf32> to vector<20x1xf32>
    %89 = vector.broadcast %88 : vector<20x1xf32> to vector<20x20xf32>
    %90 = arith.subf %86, %89 : vector<20x20xf32>
    %91 = math.exp %90 : vector<20x20xf32>
    %cst_47 = arith.constant dense<0.000000e+00> : vector<20xf32>
    %92 = vector.multi_reduction <add>, %91, %cst_47 [1] : vector<20x20xf32> to vector<20xf32>
    %93 = vector.shape_cast %92 : vector<20xf32> to vector<20x1xf32>
    %94 = tpu.reciprocal %93 {approx = true} : vector<20x1xf32> -> vector<20x1xf32>
    %95 = vector.broadcast %94 : vector<20x1xf32> to vector<20x20xf32>
    %96 = arith.mulf %91, %95 : vector<20x20xf32>
    %cst_48 = arith.constant dense<0.000000e+00> : vector<20x8xf32>
    %97 = tpu.matmul %96, %84, %cst_48 {dimension_numbers = #tpu.dot_dimension_numbers<[1], [0], [0], [1], [0, 0, 1, 1], [], []>} : vector<20x20xf32>, vector<20x8xf32>, vector<20x8xf32> -> vector<20x8xf32>
    %98 = vector.extract_strided_slice %48 {offsets = [8, 0], sizes = [8, 32], strides = [1, 1]} : vector<32x32xf32> to vector<8x32xf32>
    %cst_49 = arith.constant dense<0.000000e+00> : vector<20x32xf32>
    %99 = tpu.matmul %97, %98, %cst_49 {dimension_numbers = #tpu.dot_dimension_numbers<[1], [0], [0], [1], [0, 0, 1, 1], [], []>} : vector<20x8xf32>, vector<8x32xf32>, vector<20x32xf32> -> vector<20x32xf32>
    %100 = arith.addf %81, %99 : vector<20x32xf32>
    %101 = vector.extract_strided_slice %63 {offsets = [0, 16], sizes = [20, 8], strides = [1, 1]} : vector<20x96xf32> to vector<20x8xf32>
    %102 = vector.extract_strided_slice %63 {offsets = [0, 48], sizes = [20, 8], strides = [1, 1]} : vector<20x96xf32> to vector<20x8xf32>
    %103 = vector.extract_strided_slice %63 {offsets = [0, 80], sizes = [20, 8], strides = [1, 1]} : vector<20x96xf32> to vector<20x8xf32>
    %cst_50 = arith.constant dense<0.000000e+00> : vector<20x20xf32>
    %104 = tpu.matmul %101, %102, %cst_50 {dimension_numbers = #tpu.dot_dimension_numbers<[1], [1], [0], [0], [0, 0, 1, 0], [], []>} : vector<20x8xf32>, vector<20x8xf32>, vector<20x20xf32> -> vector<20x20xf32>
    %105 = arith.addf %104, %7 : vector<20x20xf32>
    %cst_51 = arith.constant dense<0xFF800000> : vector<20xf32>
    %106 = vector.multi_reduction <maximumf>, %105, %cst_51 [1] : vector<20x20xf32> to vector<20xf32>
    %107 = vector.shape_cast %106 : vector<20xf32> to vector<20x1xf32>
    %108 = vector.broadcast %107 : vector<20x1xf32> to vector<20x20xf32>
    %109 = arith.subf %105, %108 : vector<20x20xf32>
    %110 = math.exp %109 : vector<20x20xf32>
    %cst_52 = arith.constant dense<0.000000e+00> : vector<20xf32>
    %111 = vector.multi_reduction <add>, %110, %cst_52 [1] : vector<20x20xf32> to vector<20xf32>
    %112 = vector.shape_cast %111 : vector<20xf32> to vector<20x1xf32>
    %113 = tpu.reciprocal %112 {approx = true} : vector<20x1xf32> -> vector<20x1xf32>
    %114 = vector.broadcast %113 : vector<20x1xf32> to vector<20x20xf32>
    %115 = arith.mulf %110, %114 : vector<20x20xf32>
    %cst_53 = arith.constant dense<0.000000e+00> : vector<20x8xf32>
    %116 = tpu.matmul %115, %103, %cst_53 {dimension_numbers = #tpu.dot_dimension_numbers<[1], [0], [0], [1], [0, 0, 1, 1], [], []>} : vector<20x20xf32>, vector<20x8xf32>, vector<20x8xf32> -> vector<20x8xf32>
    %117 = vector.extract_strided_slice %48 {offsets = [16, 0], sizes = [8, 32], strides = [1, 1]} : vector<32x32xf32> to vector<8x32xf32>
    %cst_54 = arith.constant dense<0.000000e+00> : vector<20x32xf32>
    %118 = tpu.matmul %116, %117, %cst_54 {dimension_numbers = #tpu.dot_dimension_numbers<[1], [0], [0], [1], [0, 0, 1, 1], [], []>} : vector<20x8xf32>, vector<8x32xf32>, vector<20x32xf32> -> vector<20x32xf32>
    %119 = arith.addf %100, %118 : vector<20x32xf32>
    %120 = vector.extract_strided_slice %63 {offsets = [0, 24], sizes = [20, 8], strides = [1, 1]} : vector<20x96xf32> to vector<20x8xf32>
    %121 = vector.extract_strided_slice %63 {offsets = [0, 56], sizes = [20, 8], strides = [1, 1]} : vector<20x96xf32> to vector<20x8xf32>
    %122 = vector.extract_strided_slice %63 {offsets = [0, 88], sizes = [20, 8], strides = [1, 1]} : vector<20x96xf32> to vector<20x8xf32>
    %cst_55 = arith.constant dense<0.000000e+00> : vector<20x20xf32>
    %123 = tpu.matmul %120, %121, %cst_55 {dimension_numbers = #tpu.dot_dimension_numbers<[1], [1], [0], [0], [0, 0, 1, 0], [], []>} : vector<20x8xf32>, vector<20x8xf32>, vector<20x20xf32> -> vector<20x20xf32>
    %124 = arith.addf %123, %7 : vector<20x20xf32>
    %cst_56 = arith.constant dense<0xFF800000> : vector<20xf32>
    %125 = vector.multi_reduction <maximumf>, %124, %cst_56 [1] : vector<20x20xf32> to vector<20xf32>
    %126 = vector.shape_cast %125 : vector<20xf32> to vector<20x1xf32>
    %127 = vector.broadcast %126 : vector<20x1xf32> to vector<20x20xf32>
    %128 = arith.subf %124, %127 : vector<20x20xf32>
    %129 = math.exp %128 : vector<20x20xf32>
    %cst_57 = arith.constant dense<0.000000e+00> : vector<20xf32>
    %130 = vector.multi_reduction <add>, %129, %cst_57 [1] : vector<20x20xf32> to vector<20xf32>
    %131 = vector.shape_cast %130 : vector<20xf32> to vector<20x1xf32>
    %132 = tpu.reciprocal %131 {approx = true} : vector<20x1xf32> -> vector<20x1xf32>
    %133 = vector.broadcast %132 : vector<20x1xf32> to vector<20x20xf32>
    %134 = arith.mulf %129, %133 : vector<20x20xf32>
    %cst_58 = arith.constant dense<0.000000e+00> : vector<20x8xf32>
    %135 = tpu.matmul %134, %122, %cst_58 {dimension_numbers = #tpu.dot_dimension_numbers<[1], [0], [0], [1], [0, 0, 1, 1], [], []>} : vector<20x20xf32>, vector<20x8xf32>, vector<20x8xf32> -> vector<20x8xf32>
    %136 = vector.extract_strided_slice %48 {offsets = [24, 0], sizes = [8, 32], strides = [1, 1]} : vector<32x32xf32> to vector<8x32xf32>
    %cst_59 = arith.constant dense<0.000000e+00> : vector<20x32xf32>
    %137 = tpu.matmul %135, %136, %cst_59 {dimension_numbers = #tpu.dot_dimension_numbers<[1], [0], [0], [1], [0, 0, 1, 1], [], []>} : vector<20x8xf32>, vector<8x32xf32>, vector<20x32xf32> -> vector<20x32xf32>
    %138 = arith.addf %119, %137 : vector<20x32xf32>
    %139 = arith.addf %42, %138 : vector<20x32xf32>
    %140 = vector.broadcast %54 : vector<1x32xf32> to vector<20x32xf32>
    %141 = arith.addf %139, %140 : vector<20x32xf32>
    %cst_60 = arith.constant dense<0.000000e+00> : vector<20xf32>
    %142 = vector.multi_reduction <add>, %141, %cst_60 [1] : vector<20x32xf32> to vector<20xf32>
    %143 = vector.shape_cast %142 : vector<20xf32> to vector<20x1xf32>
    %cst_61 = arith.constant 3.200000e+01 : f32
    %144 = vector.broadcast %cst_61 : f32 to vector<20x1xf32>
    %145 = arith.divf %143, %144 : vector<20x1xf32>
    %146 = vector.broadcast %145 : vector<20x1xf32> to vector<20x32xf32>
    %147 = arith.subf %141, %146 : vector<20x32xf32>
    %148 = arith.mulf %147, %147 : vector<20x32xf32>
    %cst_62 = arith.constant dense<0.000000e+00> : vector<20xf32>
    %149 = vector.multi_reduction <add>, %148, %cst_62 [1] : vector<20x32xf32> to vector<20xf32>
    %150 = vector.shape_cast %149 : vector<20xf32> to vector<20x1xf32>
    %cst_63 = arith.constant 3.200000e+01 : f32
    %151 = vector.broadcast %cst_63 : f32 to vector<20x1xf32>
    %152 = arith.divf %150, %151 : vector<20x1xf32>
    %153 = vector.broadcast %145 : vector<20x1xf32> to vector<20x32xf32>
    %154 = arith.subf %141, %153 : vector<20x32xf32>
    %cst_64 = arith.constant 9.99999974E-6 : f32
    %155 = vector.broadcast %cst_64 : f32 to vector<20x1xf32>
    %156 = arith.addf %152, %155 : vector<20x1xf32>
    %157 = math.rsqrt %156 : vector<20x1xf32>
    %158 = vector.broadcast %157 : vector<20x1xf32> to vector<20x32xf32>
    %159 = arith.mulf %154, %158 : vector<20x32xf32>
    %160 = vector.broadcast %55 : vector<1x32xf32> to vector<20x32xf32>
    %161 = arith.mulf %159, %160 : vector<20x32xf32>
    %162 = vector.broadcast %56 : vector<1x32xf32> to vector<20x32xf32>
    %163 = arith.addf %161, %162 : vector<20x32xf32>
    %cst_65 = arith.constant dense<0.000000e+00> : vector<20x64xf32>
    %164 = tpu.matmul %163, %46, %cst_65 {dimension_numbers = #tpu.dot_dimension_numbers<[1], [0], [0], [1], [0, 0, 1, 1], [], []>} : vector<20x32xf32>, vector<32x64xf32>, vector<20x64xf32> -> vector<20x64xf32>
    %165 = vector.broadcast %57 : vector<1x64xf32> to vector<20x64xf32>
    %166 = arith.addf %164, %165 : vector<20x64xf32>
    %cst_66 = arith.constant 0.000000e+00 : f32
    %167 = vector.broadcast %cst_66 : f32 to vector<20x64xf32>
    %168 = arith.maximumf %166, %167 : vector<20x64xf32>
    %cst_67 = arith.constant dense<0.000000e+00> : vector<20x32xf32>
    %169 = tpu.matmul %168, %50, %cst_67 {dimension_numbers = #tpu.dot_dimension_numbers<[1], [0], [0], [1], [0, 0, 1, 1], [], []>} : vector<20x64xf32>, vector<64x32xf32>, vector<20x32xf32> -> vector<20x32xf32>
    %170 = vector.broadcast %58 : vector<1x32xf32> to vector<20x32xf32>
    %171 = arith.addf %169, %170 : vector<20x32xf32>
    %172 = arith.addf %163, %171 : vector<20x32xf32>
    %cst_68 = arith.constant dense<0.000000e+00> : vector<20xf32>
    %173 = vector.multi_reduction <add>, %172, %cst_68 [1] : vector<20x32xf32> to vector<20xf32>
    %174 = vector.shape_cast %173 : vector<20xf32> to vector<20x1xf32>
    %cst_69 = arith.constant 3.200000e+01 : f32
    %175 = vector.broadcast %cst_69 : f32 to vector<20x1xf32>
    %176 = arith.divf %174, %175 : vector<20x1xf32>
    %177 = vector.broadcast %176 : vector<20x1xf32> to vector<20x32xf32>
    %178 = arith.subf %172, %177 : vector<20x32xf32>
    %179 = arith.mulf %178, %178 : vector<20x32xf32>
    %cst_70 = arith.constant dense<0.000000e+00> : vector<20xf32>
    %180 = vector.multi_reduction <add>, %179, %cst_70 [1] : vector<20x32xf32> to vector<20xf32>
    %181 = vector.shape_cast %180 : vector<20xf32> to vector<20x1xf32>
    %cst_71 = arith.constant 3.200000e+01 : f32
    %182 = vector.broadcast %cst_71 : f32 to vector<20x1xf32>
    %183 = arith.divf %181, %182 : vector<20x1xf32>
    %184 = vector.broadcast %176 : vector<20x1xf32> to vector<20x32xf32>
    %185 = arith.subf %172, %184 : vector<20x32xf32>
    %cst_72 = arith.constant 9.99999974E-6 : f32
    %186 = vector.broadcast %cst_72 : f32 to vector<20x1xf32>
    %187 = arith.addf %183, %186 : vector<20x1xf32>
    %188 = math.rsqrt %187 : vector<20x1xf32>
    %189 = vector.broadcast %188 : vector<20x1xf32> to vector<20x32xf32>
    %190 = arith.mulf %185, %189 : vector<20x32xf32>
    %191 = vector.broadcast %59 : vector<1x32xf32> to vector<20x32xf32>
    %192 = arith.mulf %190, %191 : vector<20x32xf32>
    %193 = vector.broadcast %60 : vector<1x32xf32> to vector<20x32xf32>
    %194 = arith.addf %192, %193 : vector<20x32xf32>
    %c1_73 = arith.constant 1 : index
    %c0_74 = arith.constant 0 : index
    %c0_75 = arith.constant 0 : index
    %195 = vector.load %arg3[%c1_73, %c0_74, %c0_75] : memref<2x32x96xf32, #tpu.memory_space<vmem>>, vector<1x32x96xf32>
    %196 = vector.shape_cast %195 : vector<1x32x96xf32> to vector<32x96xf32>
    %c1_76 = arith.constant 1 : index
    %c0_77 = arith.constant 0 : index
    %c0_78 = arith.constant 0 : index
    %197 = vector.load %arg4[%c1_76, %c0_77, %c0_78] : memref<2x32x64xf32, #tpu.memory_space<vmem>>, vector<1x32x64xf32>
    %198 = vector.shape_cast %197 : vector<1x32x64xf32> to vector<32x64xf32>
    %c1_79 = arith.constant 1 : index
    %c0_80 = arith.constant 0 : index
    %c0_81 = arith.constant 0 : index
    %199 = vector.load %arg5[%c1_79, %c0_80, %c0_81] : memref<2x32x32xf32, #tpu.memory_space<vmem>>, vector<1x32x32xf32>
    %200 = vector.shape_cast %199 : vector<1x32x32xf32> to vector<32x32xf32>
    %c1_82 = arith.constant 1 : index
    %c0_83 = arith.constant 0 : index
    %c0_84 = arith.constant 0 : index
    %201 = vector.load %arg6[%c1_82, %c0_83, %c0_84] : memref<2x64x32xf32, #tpu.memory_space<vmem>>, vector<1x64x32xf32>
    %202 = vector.shape_cast %201 : vector<1x64x32xf32> to vector<64x32xf32>
    %c1_85 = arith.constant 1 : index
    %c0_86 = arith.constant 0 : index
    %c0_87 = arith.constant 0 : index
    %203 = vector.load %arg7[%c1_85, %c0_86, %c0_87] : memref<2x8x96xf32, #tpu.memory_space<vmem>>, vector<1x8x96xf32>
    %204 = vector.shape_cast %203 : vector<1x8x96xf32> to vector<8x96xf32>
    %205 = vector.extract_strided_slice %204 {offsets = [0, 0], sizes = [1, 96], strides = [1, 1]} : vector<8x96xf32> to vector<1x96xf32>
    %206 = vector.extract_strided_slice %204 {offsets = [1, 0], sizes = [1, 32], strides = [1, 1]} : vector<8x96xf32> to vector<1x32xf32>
    %207 = vector.extract_strided_slice %204 {offsets = [2, 0], sizes = [1, 32], strides = [1, 1]} : vector<8x96xf32> to vector<1x32xf32>
    %208 = vector.extract_strided_slice %204 {offsets = [3, 0], sizes = [1, 32], strides = [1, 1]} : vector<8x96xf32> to vector<1x32xf32>
    %209 = vector.extract_strided_slice %204 {offsets = [4, 0], sizes = [1, 64], strides = [1, 1]} : vector<8x96xf32> to vector<1x64xf32>
    %210 = vector.extract_strided_slice %204 {offsets = [5, 0], sizes = [1, 32], strides = [1, 1]} : vector<8x96xf32> to vector<1x32xf32>
    %211 = vector.extract_strided_slice %204 {offsets = [6, 0], sizes = [1, 32], strides = [1, 1]} : vector<8x96xf32> to vector<1x32xf32>
    %212 = vector.extract_strided_slice %204 {offsets = [7, 0], sizes = [1, 32], strides = [1, 1]} : vector<8x96xf32> to vector<1x32xf32>
    %cst_88 = arith.constant dense<0.000000e+00> : vector<20x96xf32>
    %213 = tpu.matmul %194, %196, %cst_88 {dimension_numbers = #tpu.dot_dimension_numbers<[1], [0], [0], [1], [0, 0, 1, 1], [], []>} : vector<20x32xf32>, vector<32x96xf32>, vector<20x96xf32> -> vector<20x96xf32>
    %214 = vector.broadcast %205 : vector<1x96xf32> to vector<20x96xf32>
    %215 = arith.addf %213, %214 : vector<20x96xf32>
    %216 = vector.extract_strided_slice %215 {offsets = [0, 0], sizes = [20, 8], strides = [1, 1]} : vector<20x96xf32> to vector<20x8xf32>
    %217 = vector.extract_strided_slice %215 {offsets = [0, 32], sizes = [20, 8], strides = [1, 1]} : vector<20x96xf32> to vector<20x8xf32>
    %218 = vector.extract_strided_slice %215 {offsets = [0, 64], sizes = [20, 8], strides = [1, 1]} : vector<20x96xf32> to vector<20x8xf32>
    %cst_89 = arith.constant dense<0.000000e+00> : vector<20x20xf32>
    %219 = tpu.matmul %216, %217, %cst_89 {dimension_numbers = #tpu.dot_dimension_numbers<[1], [1], [0], [0], [0, 0, 1, 0], [], []>} : vector<20x8xf32>, vector<20x8xf32>, vector<20x20xf32> -> vector<20x20xf32>
    %220 = arith.addf %219, %7 : vector<20x20xf32>
    %cst_90 = arith.constant dense<0xFF800000> : vector<20xf32>
    %221 = vector.multi_reduction <maximumf>, %220, %cst_90 [1] : vector<20x20xf32> to vector<20xf32>
    %222 = vector.shape_cast %221 : vector<20xf32> to vector<20x1xf32>
    %223 = vector.broadcast %222 : vector<20x1xf32> to vector<20x20xf32>
    %224 = arith.subf %220, %223 : vector<20x20xf32>
    %225 = math.exp %224 : vector<20x20xf32>
    %cst_91 = arith.constant dense<0.000000e+00> : vector<20xf32>
    %226 = vector.multi_reduction <add>, %225, %cst_91 [1] : vector<20x20xf32> to vector<20xf32>
    %227 = vector.shape_cast %226 : vector<20xf32> to vector<20x1xf32>
    %228 = tpu.reciprocal %227 {approx = true} : vector<20x1xf32> -> vector<20x1xf32>
    %229 = vector.broadcast %228 : vector<20x1xf32> to vector<20x20xf32>
    %230 = arith.mulf %225, %229 : vector<20x20xf32>
    %cst_92 = arith.constant dense<0.000000e+00> : vector<20x8xf32>
    %231 = tpu.matmul %230, %218, %cst_92 {dimension_numbers = #tpu.dot_dimension_numbers<[1], [0], [0], [1], [0, 0, 1, 1], [], []>} : vector<20x20xf32>, vector<20x8xf32>, vector<20x8xf32> -> vector<20x8xf32>
    %232 = vector.extract_strided_slice %200 {offsets = [0, 0], sizes = [8, 32], strides = [1, 1]} : vector<32x32xf32> to vector<8x32xf32>
    %cst_93 = arith.constant dense<0.000000e+00> : vector<20x32xf32>
    %233 = tpu.matmul %231, %232, %cst_93 {dimension_numbers = #tpu.dot_dimension_numbers<[1], [0], [0], [1], [0, 0, 1, 1], [], []>} : vector<20x8xf32>, vector<8x32xf32>, vector<20x32xf32> -> vector<20x32xf32>
    %234 = vector.extract_strided_slice %215 {offsets = [0, 8], sizes = [20, 8], strides = [1, 1]} : vector<20x96xf32> to vector<20x8xf32>
    %235 = vector.extract_strided_slice %215 {offsets = [0, 40], sizes = [20, 8], strides = [1, 1]} : vector<20x96xf32> to vector<20x8xf32>
    %236 = vector.extract_strided_slice %215 {offsets = [0, 72], sizes = [20, 8], strides = [1, 1]} : vector<20x96xf32> to vector<20x8xf32>
    %cst_94 = arith.constant dense<0.000000e+00> : vector<20x20xf32>
    %237 = tpu.matmul %234, %235, %cst_94 {dimension_numbers = #tpu.dot_dimension_numbers<[1], [1], [0], [0], [0, 0, 1, 0], [], []>} : vector<20x8xf32>, vector<20x8xf32>, vector<20x20xf32> -> vector<20x20xf32>
    %238 = arith.addf %237, %7 : vector<20x20xf32>
    %cst_95 = arith.constant dense<0xFF800000> : vector<20xf32>
    %239 = vector.multi_reduction <maximumf>, %238, %cst_95 [1] : vector<20x20xf32> to vector<20xf32>
    %240 = vector.shape_cast %239 : vector<20xf32> to vector<20x1xf32>
    %241 = vector.broadcast %240 : vector<20x1xf32> to vector<20x20xf32>
    %242 = arith.subf %238, %241 : vector<20x20xf32>
    %243 = math.exp %242 : vector<20x20xf32>
    %cst_96 = arith.constant dense<0.000000e+00> : vector<20xf32>
    %244 = vector.multi_reduction <add>, %243, %cst_96 [1] : vector<20x20xf32> to vector<20xf32>
    %245 = vector.shape_cast %244 : vector<20xf32> to vector<20x1xf32>
    %246 = tpu.reciprocal %245 {approx = true} : vector<20x1xf32> -> vector<20x1xf32>
    %247 = vector.broadcast %246 : vector<20x1xf32> to vector<20x20xf32>
    %248 = arith.mulf %243, %247 : vector<20x20xf32>
    %cst_97 = arith.constant dense<0.000000e+00> : vector<20x8xf32>
    %249 = tpu.matmul %248, %236, %cst_97 {dimension_numbers = #tpu.dot_dimension_numbers<[1], [0], [0], [1], [0, 0, 1, 1], [], []>} : vector<20x20xf32>, vector<20x8xf32>, vector<20x8xf32> -> vector<20x8xf32>
    %250 = vector.extract_strided_slice %200 {offsets = [8, 0], sizes = [8, 32], strides = [1, 1]} : vector<32x32xf32> to vector<8x32xf32>
    %cst_98 = arith.constant dense<0.000000e+00> : vector<20x32xf32>
    %251 = tpu.matmul %249, %250, %cst_98 {dimension_numbers = #tpu.dot_dimension_numbers<[1], [0], [0], [1], [0, 0, 1, 1], [], []>} : vector<20x8xf32>, vector<8x32xf32>, vector<20x32xf32> -> vector<20x32xf32>
    %252 = arith.addf %233, %251 : vector<20x32xf32>
    %253 = vector.extract_strided_slice %215 {offsets = [0, 16], sizes = [20, 8], strides = [1, 1]} : vector<20x96xf32> to vector<20x8xf32>
    %254 = vector.extract_strided_slice %215 {offsets = [0, 48], sizes = [20, 8], strides = [1, 1]} : vector<20x96xf32> to vector<20x8xf32>
    %255 = vector.extract_strided_slice %215 {offsets = [0, 80], sizes = [20, 8], strides = [1, 1]} : vector<20x96xf32> to vector<20x8xf32>
    %cst_99 = arith.constant dense<0.000000e+00> : vector<20x20xf32>
    %256 = tpu.matmul %253, %254, %cst_99 {dimension_numbers = #tpu.dot_dimension_numbers<[1], [1], [0], [0], [0, 0, 1, 0], [], []>} : vector<20x8xf32>, vector<20x8xf32>, vector<20x20xf32> -> vector<20x20xf32>
    %257 = arith.addf %256, %7 : vector<20x20xf32>
    %cst_100 = arith.constant dense<0xFF800000> : vector<20xf32>
    %258 = vector.multi_reduction <maximumf>, %257, %cst_100 [1] : vector<20x20xf32> to vector<20xf32>
    %259 = vector.shape_cast %258 : vector<20xf32> to vector<20x1xf32>
    %260 = vector.broadcast %259 : vector<20x1xf32> to vector<20x20xf32>
    %261 = arith.subf %257, %260 : vector<20x20xf32>
    %262 = math.exp %261 : vector<20x20xf32>
    %cst_101 = arith.constant dense<0.000000e+00> : vector<20xf32>
    %263 = vector.multi_reduction <add>, %262, %cst_101 [1] : vector<20x20xf32> to vector<20xf32>
    %264 = vector.shape_cast %263 : vector<20xf32> to vector<20x1xf32>
    %265 = tpu.reciprocal %264 {approx = true} : vector<20x1xf32> -> vector<20x1xf32>
    %266 = vector.broadcast %265 : vector<20x1xf32> to vector<20x20xf32>
    %267 = arith.mulf %262, %266 : vector<20x20xf32>
    %cst_102 = arith.constant dense<0.000000e+00> : vector<20x8xf32>
    %268 = tpu.matmul %267, %255, %cst_102 {dimension_numbers = #tpu.dot_dimension_numbers<[1], [0], [0], [1], [0, 0, 1, 1], [], []>} : vector<20x20xf32>, vector<20x8xf32>, vector<20x8xf32> -> vector<20x8xf32>
    %269 = vector.extract_strided_slice %200 {offsets = [16, 0], sizes = [8, 32], strides = [1, 1]} : vector<32x32xf32> to vector<8x32xf32>
    %cst_103 = arith.constant dense<0.000000e+00> : vector<20x32xf32>
    %270 = tpu.matmul %268, %269, %cst_103 {dimension_numbers = #tpu.dot_dimension_numbers<[1], [0], [0], [1], [0, 0, 1, 1], [], []>} : vector<20x8xf32>, vector<8x32xf32>, vector<20x32xf32> -> vector<20x32xf32>
    %271 = arith.addf %252, %270 : vector<20x32xf32>
    %272 = vector.extract_strided_slice %215 {offsets = [0, 24], sizes = [20, 8], strides = [1, 1]} : vector<20x96xf32> to vector<20x8xf32>
    %273 = vector.extract_strided_slice %215 {offsets = [0, 56], sizes = [20, 8], strides = [1, 1]} : vector<20x96xf32> to vector<20x8xf32>
    %274 = vector.extract_strided_slice %215 {offsets = [0, 88], sizes = [20, 8], strides = [1, 1]} : vector<20x96xf32> to vector<20x8xf32>
    %cst_104 = arith.constant dense<0.000000e+00> : vector<20x20xf32>
    %275 = tpu.matmul %272, %273, %cst_104 {dimension_numbers = #tpu.dot_dimension_numbers<[1], [1], [0], [0], [0, 0, 1, 0], [], []>} : vector<20x8xf32>, vector<20x8xf32>, vector<20x20xf32> -> vector<20x20xf32>
    %276 = arith.addf %275, %7 : vector<20x20xf32>
    %cst_105 = arith.constant dense<0xFF800000> : vector<20xf32>
    %277 = vector.multi_reduction <maximumf>, %276, %cst_105 [1] : vector<20x20xf32> to vector<20xf32>
    %278 = vector.shape_cast %277 : vector<20xf32> to vector<20x1xf32>
    %279 = vector.broadcast %278 : vector<20x1xf32> to vector<20x20xf32>
    %280 = arith.subf %276, %279 : vector<20x20xf32>
    %281 = math.exp %280 : vector<20x20xf32>
    %cst_106 = arith.constant dense<0.000000e+00> : vector<20xf32>
    %282 = vector.multi_reduction <add>, %281, %cst_106 [1] : vector<20x20xf32> to vector<20xf32>
    %283 = vector.shape_cast %282 : vector<20xf32> to vector<20x1xf32>
    %284 = tpu.reciprocal %283 {approx = true} : vector<20x1xf32> -> vector<20x1xf32>
    %285 = vector.broadcast %284 : vector<20x1xf32> to vector<20x20xf32>
    %286 = arith.mulf %281, %285 : vector<20x20xf32>
    %cst_107 = arith.constant dense<0.000000e+00> : vector<20x8xf32>
    %287 = tpu.matmul %286, %274, %cst_107 {dimension_numbers = #tpu.dot_dimension_numbers<[1], [0], [0], [1], [0, 0, 1, 1], [], []>} : vector<20x20xf32>, vector<20x8xf32>, vector<20x8xf32> -> vector<20x8xf32>
    %288 = vector.extract_strided_slice %200 {offsets = [24, 0], sizes = [8, 32], strides = [1, 1]} : vector<32x32xf32> to vector<8x32xf32>
    %cst_108 = arith.constant dense<0.000000e+00> : vector<20x32xf32>
    %289 = tpu.matmul %287, %288, %cst_108 {dimension_numbers = #tpu.dot_dimension_numbers<[1], [0], [0], [1], [0, 0, 1, 1], [], []>} : vector<20x8xf32>, vector<8x32xf32>, vector<20x32xf32> -> vector<20x32xf32>
    %290 = arith.addf %271, %289 : vector<20x32xf32>
    %291 = arith.addf %194, %290 : vector<20x32xf32>
    %292 = vector.broadcast %206 : vector<1x32xf32> to vector<20x32xf32>
    %293 = arith.addf %291, %292 : vector<20x32xf32>
    %cst_109 = arith.constant dense<0.000000e+00> : vector<20xf32>
    %294 = vector.multi_reduction <add>, %293, %cst_109 [1] : vector<20x32xf32> to vector<20xf32>
    %295 = vector.shape_cast %294 : vector<20xf32> to vector<20x1xf32>
    %cst_110 = arith.constant 3.200000e+01 : f32
    %296 = vector.broadcast %cst_110 : f32 to vector<20x1xf32>
    %297 = arith.divf %295, %296 : vector<20x1xf32>
    %298 = vector.broadcast %297 : vector<20x1xf32> to vector<20x32xf32>
    %299 = arith.subf %293, %298 : vector<20x32xf32>
    %300 = arith.mulf %299, %299 : vector<20x32xf32>
    %cst_111 = arith.constant dense<0.000000e+00> : vector<20xf32>
    %301 = vector.multi_reduction <add>, %300, %cst_111 [1] : vector<20x32xf32> to vector<20xf32>
    %302 = vector.shape_cast %301 : vector<20xf32> to vector<20x1xf32>
    %cst_112 = arith.constant 3.200000e+01 : f32
    %303 = vector.broadcast %cst_112 : f32 to vector<20x1xf32>
    %304 = arith.divf %302, %303 : vector<20x1xf32>
    %305 = vector.broadcast %297 : vector<20x1xf32> to vector<20x32xf32>
    %306 = arith.subf %293, %305 : vector<20x32xf32>
    %cst_113 = arith.constant 9.99999974E-6 : f32
    %307 = vector.broadcast %cst_113 : f32 to vector<20x1xf32>
    %308 = arith.addf %304, %307 : vector<20x1xf32>
    %309 = math.rsqrt %308 : vector<20x1xf32>
    %310 = vector.broadcast %309 : vector<20x1xf32> to vector<20x32xf32>
    %311 = arith.mulf %306, %310 : vector<20x32xf32>
    %312 = vector.broadcast %207 : vector<1x32xf32> to vector<20x32xf32>
    %313 = arith.mulf %311, %312 : vector<20x32xf32>
    %314 = vector.broadcast %208 : vector<1x32xf32> to vector<20x32xf32>
    %315 = arith.addf %313, %314 : vector<20x32xf32>
    %cst_114 = arith.constant dense<0.000000e+00> : vector<20x64xf32>
    %316 = tpu.matmul %315, %198, %cst_114 {dimension_numbers = #tpu.dot_dimension_numbers<[1], [0], [0], [1], [0, 0, 1, 1], [], []>} : vector<20x32xf32>, vector<32x64xf32>, vector<20x64xf32> -> vector<20x64xf32>
    %317 = vector.broadcast %209 : vector<1x64xf32> to vector<20x64xf32>
    %318 = arith.addf %316, %317 : vector<20x64xf32>
    %cst_115 = arith.constant 0.000000e+00 : f32
    %319 = vector.broadcast %cst_115 : f32 to vector<20x64xf32>
    %320 = arith.maximumf %318, %319 : vector<20x64xf32>
    %cst_116 = arith.constant dense<0.000000e+00> : vector<20x32xf32>
    %321 = tpu.matmul %320, %202, %cst_116 {dimension_numbers = #tpu.dot_dimension_numbers<[1], [0], [0], [1], [0, 0, 1, 1], [], []>} : vector<20x64xf32>, vector<64x32xf32>, vector<20x32xf32> -> vector<20x32xf32>
    %322 = vector.broadcast %210 : vector<1x32xf32> to vector<20x32xf32>
    %323 = arith.addf %321, %322 : vector<20x32xf32>
    %324 = arith.addf %315, %323 : vector<20x32xf32>
    %cst_117 = arith.constant dense<0.000000e+00> : vector<20xf32>
    %325 = vector.multi_reduction <add>, %324, %cst_117 [1] : vector<20x32xf32> to vector<20xf32>
    %326 = vector.shape_cast %325 : vector<20xf32> to vector<20x1xf32>
    %cst_118 = arith.constant 3.200000e+01 : f32
    %327 = vector.broadcast %cst_118 : f32 to vector<20x1xf32>
    %328 = arith.divf %326, %327 : vector<20x1xf32>
    %329 = vector.broadcast %328 : vector<20x1xf32> to vector<20x32xf32>
    %330 = arith.subf %324, %329 : vector<20x32xf32>
    %331 = arith.mulf %330, %330 : vector<20x32xf32>
    %cst_119 = arith.constant dense<0.000000e+00> : vector<20xf32>
    %332 = vector.multi_reduction <add>, %331, %cst_119 [1] : vector<20x32xf32> to vector<20xf32>
    %333 = vector.shape_cast %332 : vector<20xf32> to vector<20x1xf32>
    %cst_120 = arith.constant 3.200000e+01 : f32
    %334 = vector.broadcast %cst_120 : f32 to vector<20x1xf32>
    %335 = arith.divf %333, %334 : vector<20x1xf32>
    %336 = vector.broadcast %328 : vector<20x1xf32> to vector<20x32xf32>
    %337 = arith.subf %324, %336 : vector<20x32xf32>
    %cst_121 = arith.constant 9.99999974E-6 : f32
    %338 = vector.broadcast %cst_121 : f32 to vector<20x1xf32>
    %339 = arith.addf %335, %338 : vector<20x1xf32>
    %340 = math.rsqrt %339 : vector<20x1xf32>
    %341 = vector.broadcast %340 : vector<20x1xf32> to vector<20x32xf32>
    %342 = arith.mulf %337, %341 : vector<20x32xf32>
    %343 = vector.broadcast %211 : vector<1x32xf32> to vector<20x32xf32>
    %344 = arith.mulf %342, %343 : vector<20x32xf32>
    %345 = vector.broadcast %212 : vector<1x32xf32> to vector<20x32xf32>
    %346 = arith.addf %344, %345 : vector<20x32xf32>
    %347 = vector.extract_strided_slice %346 {offsets = [8, 0], sizes = [1, 32], strides = [1, 1]} : vector<20x32xf32> to vector<1x32xf32>
    %348 = vector.extract_strided_slice %346 {offsets = [18, 0], sizes = [1, 32], strides = [1, 1]} : vector<20x32xf32> to vector<1x32xf32>
    %349 = tpu.concatenate %347, %348 in 0 : vector<1x32xf32>, vector<1x32xf32> -> vector<2x32xf32>
    %c3 = arith.constant 3 : index
    %c0_122 = arith.constant 0 : index
    %c0_123 = arith.constant 0 : index
    %350 = vector.load %arg2[%c3, %c0_122, %c0_123] : memref<6x32x32xf32, #tpu.memory_space<vmem>>, vector<1x32x32xf32>
    %351 = vector.shape_cast %350 : vector<1x32x32xf32> to vector<32x32xf32>
    %cst_124 = arith.constant dense<0.000000e+00> : vector<2x32xf32>
    %352 = tpu.matmul %349, %351, %cst_124 {dimension_numbers = #tpu.dot_dimension_numbers<[1], [0], [0], [1], [0, 0, 1, 1], [], []>} : vector<2x32xf32>, vector<32x32xf32>, vector<2x32xf32> -> vector<2x32xf32>
    %353 = vector.broadcast %3 : vector<1x32xf32> to vector<2x32xf32>
    %354 = arith.addf %352, %353 : vector<2x32xf32>
    %cst_125 = arith.constant 0.000000e+00 : f32
    %355 = vector.broadcast %cst_125 : f32 to vector<2x32xf32>
    %356 = arith.maximumf %354, %355 : vector<2x32xf32>
    %c4 = arith.constant 4 : index
    %c0_126 = arith.constant 0 : index
    %c0_127 = arith.constant 0 : index
    %357 = vector.load %arg2[%c4, %c0_126, %c0_127] : memref<6x32x32xf32, #tpu.memory_space<vmem>>, vector<1x32x32xf32>
    %358 = vector.shape_cast %357 : vector<1x32x32xf32> to vector<32x32xf32>
    %cst_128 = arith.constant dense<0.000000e+00> : vector<2x32xf32>
    %359 = tpu.matmul %356, %358, %cst_128 {dimension_numbers = #tpu.dot_dimension_numbers<[1], [0], [0], [1], [0, 0, 1, 1], [], []>} : vector<2x32xf32>, vector<32x32xf32>, vector<2x32xf32> -> vector<2x32xf32>
    %360 = vector.broadcast %4 : vector<1x32xf32> to vector<2x32xf32>
    %361 = arith.addf %359, %360 : vector<2x32xf32>
    %cst_129 = arith.constant 0.000000e+00 : f32
    %362 = vector.broadcast %cst_129 : f32 to vector<2x32xf32>
    %363 = arith.maximumf %361, %362 : vector<2x32xf32>
    %c5 = arith.constant 5 : index
    %c0_130 = arith.constant 0 : index
    %c0_131 = arith.constant 0 : index
    %364 = vector.load %arg2[%c5, %c0_130, %c0_131] : memref<6x32x32xf32, #tpu.memory_space<vmem>>, vector<1x32x32xf32>
    %365 = vector.shape_cast %364 : vector<1x32x32xf32> to vector<32x32xf32>
    %cst_132 = arith.constant dense<0.000000e+00> : vector<2x32xf32>
    %366 = tpu.matmul %363, %365, %cst_132 {dimension_numbers = #tpu.dot_dimension_numbers<[1], [0], [0], [1], [0, 0, 1, 1], [], []>} : vector<2x32xf32>, vector<32x32xf32>, vector<2x32xf32> -> vector<2x32xf32>
    %367 = vector.broadcast %5 : vector<1x32xf32> to vector<2x32xf32>
    %368 = arith.addf %366, %367 : vector<2x32xf32>
    %c0_133 = arith.constant 0 : index
    %c0_134 = arith.constant 0 : index
    %369 = vector.load %arg9[%c0_133, %c0_134] : memref<2x32xf32, #tpu.memory_space<vmem>>, vector<2x32xf32>
    tpu.vector_store %arg9[%c0_133, %c0_134], %368 {strides = array<i32>} : memref<2x32xf32, #tpu.memory_space<vmem>>, vector<2x32xf32>,
    return
  }
}

</mosaic_0001>

<llo_original>
// kernel: tpu_custom_call.1
$region0: #{tpu_custom_call.1}
  #allocation0 [shape = 'u32[]', space=smem, size = 0x4, offset = 0x4, fixed_abs, tag = 'smem constant byte address 0x4 - core index']
  #allocation1 [shape = 'u32[144,128]{1,0:T(1,128)}', space=vmem, size = 0x12000, scoped, tag = 'internal scratch']
  %s0 = inlined_call_operand.vmem [shape: f32[20,32], index: 0, kind: input, shape index: {}]
  %s1 = inlined_call_operand.vmem [shape: f32[2,32], index: 1, kind: input, shape index: {}]
  %s2 = inlined_call_operand.vmem [shape: f32[6,32,32], index: 2, kind: input, shape index: {}]
  %s3 = inlined_call_operand.vmem [shape: f32[2,32,96], index: 3, kind: input, shape index: {}]
  %s4 = inlined_call_operand.hbm [shape: f32[2,32,64], index: 4, kind: input, shape index: {}]
  %s5 = inlined_call_operand.hbm [shape: f32[2,32,32], index: 5, kind: input, shape index: {}]
  %s6 = inlined_call_operand.vmem [shape: f32[2,64,32], index: 6, kind: input, shape index: {}]
  %s7 = inlined_call_operand.vmem [shape: f32[2,8,96], index: 7, kind: input, shape index: {}]
  %s8 = inlined_call_operand.vmem [shape: f32[120,32], index: 8, kind: input, shape index: {}]
  %s9 = inlined_call_operand.hbm [shape: f32[2,32], index: 9, kind: output, shape index: {}]
  %s10 = sld [smem:[#allocation0]]
  $region54: #{tpu_custom_call.1} parent=0
    _
  %s12 = ssub.s32 1, %s10
  %s13 = scalar_select 0, %s12, %s10
  $region1: #{tpu_custom_call.1} parent=0
    #allocation2 [shape = 'u8[32768]{0}', space=vmem, size = 0x8000, scoped, tag = 'input window, operand 4, single buffered']
    #allocation3 [shape = 's32[1]{0}', space=sflag, size = 0x4, scoped, tag = 'scoped memory for tpu_custom_call.1']
    #allocation4 [shape = 's32[1]{0}', space=sflag, size = 0x4, scoped, tag = 'scoped memory for tpu_custom_call.1']
    #allocation5 [shape = 'u8[32768]{0}', space=vmem, size = 0x8000, scoped, tag = 'input window, operand 5, single buffered']
    #allocation6 [shape = 's32[1]{0}', space=sflag, size = 0x4, scoped, tag = 'scoped memory for tpu_custom_call.1']
    #allocation7 [shape = 'u8[1024]{0}', space=vmem, size = 0x400, scoped, tag = 'output window, operand 0, single buffered']
    %14 = vsyncpa [#allocation3], 0
    %15 = vsyncpa [#allocation6], 0
    %16 = vsyncpa [#allocation4], 0
    // Predicated region
    $region2: #{tpu_custom_call.1} parent=1 // pred_check
      _
    $region3: #{tpu_custom_call.1} parent=1 // pred_check_branch
      %18 = sbr.rel (0) target = $region5
    $region4: #{tpu_custom_call.1} parent=1 // pred_region
      _
    $region5: #{tpu_custom_call.1} parent=1 // pred_fallthru
      _
    // Predicated region
    $region6: #{tpu_custom_call.1} parent=1 // pred_check
      _
    $region7: #{tpu_custom_call.1} parent=1 // pred_check_branch
      %20 = sbr.rel (0) target = $region9
    $region8: #{tpu_custom_call.1} parent=1 // pred_region
      _
    $region9: #{tpu_custom_call.1} parent=1 // pred_fallthru
      _
    // Predicated region
    $region10: #{tpu_custom_call.1} parent=1 // pred_check
      _
    $region11: #{tpu_custom_call.1} parent=1 // pred_check_branch
      %22 = sbr.rel (0) target = $region13
    $region12: #{tpu_custom_call.1} parent=1 // pred_region
      _
    $region13: #{tpu_custom_call.1} parent=1 // pred_fallthru
      _
    // Predicated region
    $region14: #{tpu_custom_call.1} parent=1 // pred_check
      _
    $region15: #{tpu_custom_call.1} parent=1 // pred_check_branch
      %24 = sbr.rel (0) target = $region17
    $region16: #{tpu_custom_call.1} parent=1 // pred_region
      _
    $region17: #{tpu_custom_call.1} parent=1 // pred_fallthru
      _
    // Predicated region
    $region18: #{tpu_custom_call.1} parent=1 // pred_check
      _
    $region19: #{tpu_custom_call.1} parent=1 // pred_check_branch
      %26 = sbr.rel (0) target = $region21
    $region20: #{tpu_custom_call.1} parent=1 // pred_region
      %s28 = ssub.s32 1024, 1024
      %29 = vsyncadd [#allocation3], %s28
      %s30 = sshll.u32 [#allocation2], 4
      %s31 = int_to_ptr.vmem [resolvable:$true] %s30
      %36 = dma.hbm_to_vmem [thread:$0]  %s4, 1024, %s31, [#allocation3], 128, 128, 8
    $region21: #{tpu_custom_call.1} parent=1 // pred_fallthru
      _
    // Predicated region
    $region22: #{tpu_custom_call.1} parent=1 // pred_check
      _
    $region23: #{tpu_custom_call.1} parent=1 // pred_check_branch
      %38 = sbr.rel (0) target = $region25
    $region24: #{tpu_custom_call.1} parent=1 // pred_region
      %s40 = ssub.s32 1024, 1024
      %41 = vsyncadd [#allocation6], %s40
      %s42 = sshll.u32 [#allocation5], 4
      %s43 = int_to_ptr.vmem [resolvable:$true] %s42
      %48 = dma.hbm_to_vmem [thread:$0]  %s5, 1024, %s43, [#allocation6], 128, 128, 8
    $region25: #{tpu_custom_call.1} parent=1 // pred_fallthru
      _
    // Predicated region
    $region26: #{tpu_custom_call.1} parent=1 // pred_check
      _
    $region27: #{tpu_custom_call.1} parent=1 // pred_check_branch
      %50 = sbr.rel (0) target = $region29
    $region28: #{tpu_custom_call.1} parent=1 // pred_region
      _
    $region29: #{tpu_custom_call.1} parent=1 // pred_fallthru
      _
    // Predicated region
    $region30: #{tpu_custom_call.1} parent=1 // pred_check
      _
    $region31: #{tpu_custom_call.1} parent=1 // pred_check_branch
      %52 = sbr.rel (0) target = $region33
    $region32: #{tpu_custom_call.1} parent=1 // pred_region
      _
    $region33: #{tpu_custom_call.1} parent=1 // pred_fallthru
      _
    // Predicated region
    $region34: #{tpu_custom_call.1} parent=1 // pred_check
      _
    $region35: #{tpu_custom_call.1} parent=1 // pred_check_branch
      %54 = sbr.rel (0) target = $region37
    $region36: #{tpu_custom_call.1} parent=1 // pred_region
      _
    $region37: #{tpu_custom_call.1} parent=1 // pred_fallthru
      _
    // Predicated region
    $region38: #{tpu_custom_call.1} parent=1 // pred_check
      _
    $region39: #{tpu_custom_call.1} parent=1 // pred_check_branch
      %56 = sbr.rel (0) target = $region41
    $region40: #{tpu_custom_call.1} parent=1 // pred_region
      %57 = dma.done [#allocation3], 1024
    $region41: #{tpu_custom_call.1} parent=1 // pred_fallthru
      _
    // Predicated region
    $region42: #{tpu_custom_call.1} parent=1 // pred_check
      _
    $region43: #{tpu_custom_call.1} parent=1 // pred_check_branch
      %59 = sbr.rel (0) target = $region45
    $region44: #{tpu_custom_call.1} parent=1 // pred_region
      %60 = dma.done [#allocation6], 1024
    $region45: #{tpu_custom_call.1} parent=1 // pred_fallthru
      _
    %v61 = vld [vmem:[%s8] sm:$0x1]
    %v62 = vld [vmem:[%s8 + $0x8] sm:$0x1]
    %v63 = vld [vmem:[%s8 + $0x10] sm:$0x1]
    %v64 = vld [vmem:[%s8 + $0x18] sm:$0x1]
    %v65 = vld [vmem:[%s8 + $0x20] sm:$0x1]
    %v66 = vld [vmem:[%s8 + $0x28] sm:$0x1]
    %v67 = vld [vmem:[%s8 + $0x30] sm:$0xff]
    %v68 = vld [vmem:[%s8 + $0x38] sm:$0xff]
    %v69 = vld [vmem:[%s8 + $0x40] sm:$0xf]
    %v70 = vld [vmem:[%s8 + $0x48] sm:$0xff]
    %v71 = vld [vmem:[%s8 + $0x50] sm:$0xff]
    %v72 = vld [vmem:[%s8 + $0x58] sm:$0xf]
    %v73 = vld [vmem:[%s8 + $0x60] sm:$0xff]
    %v74 = vld [vmem:[%s8 + $0x68] sm:$0xff]
    %v75 = vld [vmem:[%s8 + $0x70] sm:$0xf]
    %v76 = vld [vmem:[%s1] sm:$0x3]
    %v77 = vld [vmem:[%s2] sm:$0xff]
    %v78 = vld [vmem:[%s2 + $0x8] sm:$0xff]
    %v79 = vld [vmem:[%s2 + $0x10] sm:$0xff]
    %v80 = vld [vmem:[%s2 + $0x18] sm:$0xff]
    %v81 = vlaneseq
    %v82 = vshrl.u32 %v81, 7
    %v83 = vsub.s32 0, %v82
    %v84 = vrot.slane %v61, %v83
    %vm85 = vcmask 261120
    %v87 = vsel %vm85, %v76, 0
    %89 = vmatprep.subr.mxu0 0.0
    %90 = vmatpush1.msra.mxu0 %v77
    %91 = vmatprep.subr.mxu0 0.0
    %92 = vmatpush1.msra.mxu0 %v78
    %93 = vmatprep.subr.mxu0 0.0
    %94 = vmatpush1.msra.mxu0 %v79
    %95 = vmatprep.subr.mxu0 0.0
    %96 = vmatpush1.msra.mxu0 %v80
    %97 = vmatprep.subr.mxu0 0.0
    %98 = vmatpush1.msra.mxu0 0.0
    %99 = vmatprep.subr.mxu0 0.0
    %100 = vmatpush1.msra.mxu0 0.0
    %101 = vmatprep.subr.mxu0 0.0
    %102 = vmatpush1.msra.mxu0 0.0
    %103 = vmatprep.subr.mxu0 0.0
    %104 = vmatpush1.msra.mxu0 0.0
    %105 = vmatprep.subr.mxu0 0.0
    %106 = vmatpush1.msra.mxu0 0.0
    %107 = vmatprep.subr.mxu0 0.0
    %108 = vmatpush1.msra.mxu0 0.0
    %109 = vmatprep.subr.mxu0 0.0
    %110 = vmatpush1.msra.mxu0 0.0
    %111 = vmatprep.subr.mxu0 0.0
    %112 = vmatpush1.msra.mxu0 0.0
    %113 = vmatprep.subr.mxu0 0.0
    %114 = vmatpush1.msra.mxu0 0.0
    %115 = vmatprep.subr.mxu0 0.0
    %116 = vmatpush1.msra.mxu0 0.0
    %117 = vmatprep.subr.mxu0 0.0
    %118 = vmatpush1.msra.mxu0 0.0
    %119 = vmatprep.subr.mxu0 0.0
    %120 = vmatpush1.msra.mxu0 0.0
    %121 = vmatprep.subr.mxu0 0.0
    %122 = vmatpush1.msra.mxu0 0.0
    %123 = vmatprep.subr.mxu0 0.0
    %124 = vmatpush1.msra.mxu0 0.0
    %125 = vmatprep.subr.mxu0 0.0
    %126 = vmatpush1.msra.mxu0 0.0
    %127 = vmatprep.subr.mxu0 0.0
    %128 = vmatpush1.msra.mxu0 0.0
    %129 = vmatprep.subr.mxu0 0.0
    %130 = vmatpush1.msra.mxu0 0.0
    %131 = vmatprep.subr.mxu0 0.0
    %132 = vmatpush1.msra.mxu0 0.0
    %133 = vmatprep.subr.mxu0 0.0
    %134 = vmatpush1.msra.mxu0 0.0
    %135 = vmatprep.subr.mxu0 0.0
    %136 = vmatpush1.msra.mxu0 0.0
    %137 = vmatprep.subr.mxu0 0.0
    %138 = vmatpush1.msra.mxu0 0.0
    %139 = vmatprep.subr.mxu0 0.0
    %140 = vmatpush1.msra.mxu0 0.0
    %141 = vmatprep.subr.mxu0 0.0
    %142 = vmatpush1.msra.mxu0 0.0
    %143 = vmatprep.subr.mxu0 0.0
    %144 = vmatpush1.msra.mxu0 0.0
    %145 = vmatprep.subr.mxu0 0.0
    %146 = vmatpush1.msra.mxu0 0.0
    %147 = vmatprep.subr.mxu0 0.0
    %148 = vmatpush1.msra.mxu0 0.0
    %149 = vmatprep.subr.mxu0 0.0
    %150 = vmatpush1.msra.mxu0 0.0
    %151 = vmatprep.subr.mxu0 0.0
    %152 = vmatpush1.msra.mxu0 0.0
    %153 = vmatprep.mubr.f32.mxu0 0.0
    %154 = vmatmul.mubr.f32.gmra.mrb[0].mxu0 %v87
    %v155 = vpop.f32.mrb[0].mxu0
    %v156 = vadd.f32 %v84, %v155
    %v157 = vpop.f32.mrb[0].mxu0
    %158 = vdwg.mxu0
    %v159 = vmax.f32 %v156, 0.0
    %s160 = scalar_lea.vmem %s2, 32
    %v161 = vld [vmem:[%s160] sm:$0xff]
    %v162 = vld [vmem:[%s160 + $0x8] sm:$0xff]
    %v163 = vld [vmem:[%s160 + $0x10] sm:$0xff]
    %v164 = vld [vmem:[%s160 + $0x18] sm:$0xff]
    %v165 = vlaneseq
    %v166 = vshrl.u32 %v165, 7
    %v167 = vsub.s32 0, %v166
    %v168 = vrot.slane %v62, %v167
    %v170 = vsel %vm85, %v159, 0
    %172 = vmatprep.subr.mxu0 0.0
    %173 = vmatpush1.msra.mxu0 %v161
    %174 = vmatprep.subr.mxu0 0.0
    %175 = vmatpush1.msra.mxu0 %v162
    %176 = vmatprep.subr.mxu0 0.0
    %177 = vmatpush1.msra.mxu0 %v163
    %178 = vmatprep.subr.mxu0 0.0
    %179 = vmatpush1.msra.mxu0 %v164
    %180 = vmatprep.subr.mxu0 0.0
    %181 = vmatpush1.msra.mxu0 0.0
    %182 = vmatprep.subr.mxu0 0.0
    %183 = vmatpush1.msra.mxu0 0.0
    %184 = vmatprep.subr.mxu0 0.0
    %185 = vmatpush1.msra.mxu0 0.0
    %186 = vmatprep.subr.mxu0 0.0
    %187 = vmatpush1.msra.mxu0 0.0
    %188 = vmatprep.subr.mxu0 0.0
    %189 = vmatpush1.msra.mxu0 0.0
    %190 = vmatprep.subr.mxu0 0.0
    %191 = vmatpush1.msra.mxu0 0.0
    %192 = vmatprep.subr.mxu0 0.0
    %193 = vmatpush1.msra.mxu0 0.0
    %194 = vmatprep.subr.mxu0 0.0
    %195 = vmatpush1.msra.mxu0 0.0
    %196 = vmatprep.subr.mxu0 0.0
    %197 = vmatpush1.msra.mxu0 0.0
    %198 = vmatprep.subr.mxu0 0.0
    %199 = vmatpush1.msra.mxu0 0.0
    %200 = vmatprep.subr.mxu0 0.0
    %201 = vmatpush1.msra.mxu0 0.0
    %202 = vmatprep.subr.mxu0 0.0
    %203 = vmatpush1.msra.mxu0 0.0
    %204 = vmatprep.subr.mxu0 0.0
    %205 = vmatpush1.msra.mxu0 0.0
    %206 = vmatprep.subr.mxu0 0.0
    %207 = vmatpush1.msra.mxu0 0.0
    %208 = vmatprep.subr.mxu0 0.0
    %209 = vmatpush1.msra.mxu0 0.0
    %210 = vmatprep.subr.mxu0 0.0
    %211 = vmatpush1.msra.mxu0 0.0
    %212 = vmatprep.subr.mxu0 0.0
    %213 = vmatpush1.msra.mxu0 0.0
    %214 = vmatprep.subr.mxu0 0.0
    %215 = vmatpush1.msra.mxu0 0.0
    %216 = vmatprep.subr.mxu0 0.0
    %217 = vmatpush1.msra.mxu0 0.0
    %218 = vmatprep.subr.mxu0 0.0
    %219 = vmatpush1.msra.mxu0 0.0
    %220 = vmatprep.subr.mxu0 0.0
    %221 = vmatpush1.msra.mxu0 0.0
    %222 = vmatprep.subr.mxu0 0.0
    %223 = vmatpush1.msra.mxu0 0.0
    %224 = vmatprep.subr.mxu0 0.0
    %225 = vmatpush1.msra.mxu0 0.0
    %226 = vmatprep.subr.mxu0 0.0
    %227 = vmatpush1.msra.mxu0 0.0
    %228 = vmatprep.subr.mxu0 0.0
    %229 = vmatpush1.msra.mxu0 0.0
    %230 = vmatprep.subr.mxu0 0.0
    %231 = vmatpush1.msra.mxu0 0.0
    %232 = vmatprep.subr.mxu0 0.0
    %233 = vmatpush1.msra.mxu0 0.0
    %234 = vmatprep.subr.mxu0 0.0
    %235 = vmatpush1.msra.mxu0 0.0
    %236 = vmatprep.mubr.f32.mxu0 0.0
    %237 = vmatmul.mubr.f32.gmra.mrb[0].mxu0 %v170
    %v238 = vpop.f32.mrb[0].mxu0
    %v239 = vadd.f32 %v168, %v238
    %v240 = vpop.f32.mrb[0].mxu0
    %241 = vdwg.mxu0
    %v242 = vmax.f32 %v239, 0.0
    %s243 = scalar_lea.vmem %s2, 64
    %v244 = vld [vmem:[%s243] sm:$0xff]
    %v245 = vld [vmem:[%s243 + $0x8] sm:$0xff]
    %v246 = vld [vmem:[%s243 + $0x10] sm:$0xff]
    %v247 = vld [vmem:[%s243 + $0x18] sm:$0xff]
    %v248 = vlaneseq
    %v249 = vshrl.u32 %v248, 7
    %v250 = vsub.s32 0, %v249
    %v251 = vrot.slane %v63, %v250
    %v253 = vsel %vm85, %v242, 0
    %255 = vmatprep.subr.mxu0 0.0
    %256 = vmatpush1.msra.mxu0 %v244
    %257 = vmatprep.subr.mxu0 0.0
    %258 = vmatpush1.msra.mxu0 %v245
    %259 = vmatprep.subr.mxu0 0.0
    %260 = vmatpush1.msra.mxu0 %v246
    %261 = vmatprep.subr.mxu0 0.0
    %262 = vmatpush1.msra.mxu0 %v247
    %263 = vmatprep.subr.mxu0 0.0
    %264 = vmatpush1.msra.mxu0 0.0
    %265 = vmatprep.subr.mxu0 0.0
    %266 = vmatpush1.msra.mxu0 0.0
    %267 = vmatprep.subr.mxu0 0.0
    %268 = vmatpush1.msra.mxu0 0.0
    %269 = vmatprep.subr.mxu0 0.0
    %270 = vmatpush1.msra.mxu0 0.0
    %271 = vmatprep.subr.mxu0 0.0
    %272 = vmatpush1.msra.mxu0 0.0
    %273 = vmatprep.subr.mxu0 0.0
    %274 = vmatpush1.msra.mxu0 0.0
    %275 = vmatprep.subr.mxu0 0.0
    %276 = vmatpush1.msra.mxu0 0.0
    %277 = vmatprep.subr.mxu0 0.0
    %278 = vmatpush1.msra.mxu0 0.0
    %279 = vmatprep.subr.mxu0 0.0
    %280 = vmatpush1.msra.mxu0 0.0
    %281 = vmatprep.subr.mxu0 0.0
    %282 = vmatpush1.msra.mxu0 0.0
    %283 = vmatprep.subr.mxu0 0.0
    %284 = vmatpush1.msra.mxu0 0.0
    %285 = vmatprep.subr.mxu0 0.0
    %286 = vmatpush1.msra.mxu0 0.0
    %287 = vmatprep.subr.mxu0 0.0
    %288 = vmatpush1.msra.mxu0 0.0
    %289 = vmatprep.subr.mxu0 0.0
    %290 = vmatpush1.msra.mxu0 0.0
    %291 = vmatprep.subr.mxu0 0.0
    %292 = vmatpush1.msra.mxu0 0.0
    %293 = vmatprep.subr.mxu0 0.0
    %294 = vmatpush1.msra.mxu0 0.0
    %295 = vmatprep.subr.mxu0 0.0
    %296 = vmatpush1.msra.mxu0 0.0
    %297 = vmatprep.subr.mxu0 0.0
    %298 = vmatpush1.msra.mxu0 0.0
    %299 = vmatprep.subr.mxu0 0.0
    %300 = vmatpush1.msra.mxu0 0.0
    %301 = vmatprep.subr.mxu0 0.0
    %302 = vmatpush1.msra.mxu0 0.0
    %303 = vmatprep.subr.mxu0 0.0
    %304 = vmatpush1.msra.mxu0 0.0
    %305 = vmatprep.subr.mxu0 0.0
    %306 = vmatpush1.msra.mxu0 0.0
    %307 = vmatprep.subr.mxu0 0.0
    %308 = vmatpush1.msra.mxu0 0.0
    %309 = vmatprep.subr.mxu0 0.0
    %310 = vmatpush1.msra.mxu0 0.0
    %311 = vmatprep.subr.mxu0 0.0
    %312 = vmatpush1.msra.mxu0 0.0
    %313 = vmatprep.subr.mxu0 0.0
    %314 = vmatpush1.msra.mxu0 0.0
    %315 = vmatprep.subr.mxu0 0.0
    %316 = vmatpush1.msra.mxu0 0.0
    %317 = vmatprep.subr.mxu0 0.0
    %318 = vmatpush1.msra.mxu0 0.0
    %319 = vmatprep.mubr.f32.mxu0 0.0
    %320 = vmatmul.mubr.f32.gmra.mrb[0].mxu0 %v253
    %v321 = vpop.f32.mrb[0].mxu0
    %v322 = vadd.f32 %v251, %v321
    %v323 = vpop.f32.mrb[0].mxu0
    %324 = vdwg.mxu0
    %v325 = vld [vmem:[%s0] sm:$0xff]
    %v326 = vld [vmem:[%s0 + $0x8] sm:$0xff]
    %v327 = vld [vmem:[%s0 + $0x10] sm:$0xf]
    %v328 = vadd.f32 %v325, %v67
    %v329 = vadd.f32 %v326, %v68
    %v330 = vadd.f32 %v327, %v69
    %332 = vset.pattern.permute.xlu0 0
    %333 = vperm.xlu0 %332, %v73
    %v334 = vpop.permute.xlu0 %333
    %337 = vset.pattern.permute.xlu0 0
    %338 = vperm.xlu0 %337, %v74
    %v339 = vpop.permute.xlu0 %338
    %342 = vset.pattern.permute.xlu0 0
    %343 = vperm.xlu0 %342, %v75
    %v344 = vpop.permute.xlu0 %343
    %v346 = vlaneseq
    %v347 = vshrl.u32 %v346, 7
    %v348 = vsub.s32 0, %v347
    %v349 = vrot.slane %v322, %v348
    %v350 = vmul.f32 %v334, %v349
    %v351 = vmul.f32 %v339, %v349
    %v352 = vmul.f32 %v344, %v349
    %v353 = vadd.f32 %v328, %v350
    %v354 = vadd.f32 %v329, %v351
    %v355 = vadd.f32 %v330, %v352
    %356 = vset.pattern.permute.xlu0 1
    %357 = vperm.xlu0 %356, %v73
    %v358 = vpop.permute.xlu0 %357
    %360 = vset.pattern.permute.xlu0 1
    %361 = vperm.xlu0 %360, %v74
    %v362 = vpop.permute.xlu0 %361
    %364 = vset.pattern.permute.xlu0 1
    %365 = vperm.xlu0 %364, %v75
    %v366 = vpop.permute.xlu0 %365
    %v368 = vlaneseq
    %v369 = vshrl.u32 %v368, 7
    %v370 = vsub.s32 1, %v369
    %v371 = vrot.slane %v322, %v370
    %v372 = vmul.f32 %v358, %v371
    %v373 = vmul.f32 %v362, %v371
    %v374 = vmul.f32 %v366, %v371
    %v375 = vadd.f32 %v353, %v372
    %v376 = vadd.f32 %v354, %v373
    %v377 = vadd.f32 %v355, %v374
    %v378 = vld [vmem:[%s3] sm:$0xff]
    %v379 = vld [vmem:[%s3 + $0x8] sm:$0xff]
    %v380 = vld [vmem:[%s3 + $0x10] sm:$0xff]
    %v381 = vld [vmem:[%s3 + $0x18] sm:$0xff]
    %v382 = vld [vmem:[#allocation2] sm:$0xff]
    %v383 = vld [vmem:[#allocation2 + $0x8] sm:$0xff]
    %v384 = vld [vmem:[#allocation2 + $0x10] sm:$0xff]
    %v385 = vld [vmem:[#allocation2 + $0x18] sm:$0xff]
    %v386 = vld [vmem:[#allocation5] sm:$0xff]
    %v387 = vld [vmem:[#allocation5 + $0x8] sm:$0xff]
    %v388 = vld [vmem:[#allocation5 + $0x10] sm:$0xff]
    %v389 = vld [vmem:[#allocation5 + $0x18] sm:$0xff]
    %v390 = vld [vmem:[%s6] sm:$0xff]
    %v391 = vld [vmem:[%s6 + $0x8] sm:$0xff]
    %v392 = vld [vmem:[%s6 + $0x10] sm:$0xff]
    %v393 = vld [vmem:[%s6 + $0x18] sm:$0xff]
    %v394 = vld [vmem:[%s6 + $0x20] sm:$0xff]
    %v395 = vld [vmem:[%s6 + $0x28] sm:$0xff]
    %v396 = vld [vmem:[%s6 + $0x30] sm:$0xff]
    %v397 = vld [vmem:[%s6 + $0x38] sm:$0xff]
    %v398 = vld [vmem:[%s7] sm:$0xff]
    %v399 = vlaneseq
    %v400 = vshrl.u32 %v399, 7
    %v401 = vsub.s32 0, %v400
    %v402 = vrot.slane %v398, %v401
    %v404 = vsel %vm85, %v375, 0
    %v407 = vsel %vm85, %v376, 0
    %v410 = vsel %vm85, %v377, 0
    %412 = vmatprep.subr.mxu0 0.0
    %413 = vmatpush1.msra.mxu0 %v378
    %414 = vmatprep.subr.mxu0 0.0
    %415 = vmatpush1.msra.mxu0 %v379
    %416 = vmatprep.subr.mxu0 0.0
    %417 = vmatpush1.msra.mxu0 %v380
    %418 = vmatprep.subr.mxu0 0.0
    %419 = vmatpush1.msra.mxu0 %v381
    %420 = vmatprep.subr.mxu0 0.0
    %421 = vmatpush1.msra.mxu0 0.0
    %422 = vmatprep.subr.mxu0 0.0
    %423 = vmatpush1.msra.mxu0 0.0
    %424 = vmatprep.subr.mxu0 0.0
    %425 = vmatpush1.msra.mxu0 0.0
    %426 = vmatprep.subr.mxu0 0.0
    %427 = vmatpush1.msra.mxu0 0.0
    %428 = vmatprep.subr.mxu0 0.0
    %429 = vmatpush1.msra.mxu0 0.0
    %430 = vmatprep.subr.mxu0 0.0
    %431 = vmatpush1.msra.mxu0 0.0
    %432 = vmatprep.subr.mxu0 0.0
    %433 = vmatpush1.msra.mxu0 0.0
    %434 = vmatprep.subr.mxu0 0.0
    %435 = vmatpush1.msra.mxu0 0.0
    %436 = vmatprep.subr.mxu0 0.0
    %437 = vmatpush1.msra.mxu0 0.0
    %438 = vmatprep.subr.mxu0 0.0
    %439 = vmatpush1.msra.mxu0 0.0
    %440 = vmatprep.subr.mxu0 0.0
    %441 = vmatpush1.msra.mxu0 0.0
    %442 = vmatprep.subr.mxu0 0.0
    %443 = vmatpush1.msra.mxu0 0.0
    %444 = vmatprep.subr.mxu0 0.0
    %445 = vmatpush1.msra.mxu0 0.0
    %446 = vmatprep.subr.mxu0 0.0
    %447 = vmatpush1.msra.mxu0 0.0
    %448 = vmatprep.subr.mxu0 0.0
    %449 = vmatpush1.msra.mxu0 0.0
    %450 = vmatprep.subr.mxu0 0.0
    %451 = vmatpush1.msra.mxu0 0.0
    %452 = vmatprep.subr.mxu0 0.0
    %453 = vmatpush1.msra.mxu0 0.0
    %454 = vmatprep.subr.mxu0 0.0
    %455 = vmatpush1.msra.mxu0 0.0
    %456 = vmatprep.subr.mxu0 0.0
    %457 = vmatpush1.msra.mxu0 0.0
    %458 = vmatprep.subr.mxu0 0.0
    %459 = vmatpush1.msra.mxu0 0.0
    %460 = vmatprep.subr.mxu0 0.0
    %461 = vmatpush1.msra.mxu0 0.0
    %462 = vmatprep.subr.mxu0 0.0
    %463 = vmatpush1.msra.mxu0 0.0
    %464 = vmatprep.subr.mxu0 0.0
    %465 = vmatpush1.msra.mxu0 0.0
    %466 = vmatprep.subr.mxu0 0.0
    %467 = vmatpush1.msra.mxu0 0.0
    %468 = vmatprep.subr.mxu0 0.0
    %469 = vmatpush1.msra.mxu0 0.0
    %470 = vmatprep.subr.mxu0 0.0
    %471 = vmatpush1.msra.mxu0 0.0
    %472 = vmatprep.subr.mxu0 0.0
    %473 = vmatpush1.msra.mxu0 0.0
    %474 = vmatprep.subr.mxu0 0.0
    %475 = vmatpush1.msra.mxu0 0.0
    %476 = vmatprep.mubr.f32.mxu0 0.0
    %477 = vmatmul.mubr.f32.gmra.mrb[0].mxu0 %v404
    %v478 = vpop.f32.mrb[0].mxu0
    %v479 = vadd.f32 %v402, %v478
    %v480 = vpop.f32.mrb[0].mxu0
    %481 = vmatprep.mubr.f32.mxu0 0.0
    %482 = vmatmul.mubr.f32.gmra.mrb[0].mxu0 %v407
    %v483 = vpop.f32.mrb[0].mxu0
    %v484 = vadd.f32 %v402, %v483
    %v485 = vpop.f32.mrb[0].mxu0
    %486 = vmatprep.mubr.f32.mxu0 0.0
    %487 = vmatmul.mubr.f32.gmra.mrb[0].mxu0 %v410
    %v488 = vpop.f32.mrb[0].mxu0
    %v489 = vadd.f32 %v402, %v488
    %v490 = vpop.f32.mrb[0].mxu0
    %491 = vdwg.mxu0
    %495 = vrot.lane.b32.xlu0 %v479, 96
    %v496 = vpop.permute.xlu0 %495
    %497 = vrot.lane.b32.xlu0 %v484, 96
    %v498 = vpop.permute.xlu0 %497
    %499 = vrot.lane.b32.xlu0 %v489, 96
    %v500 = vpop.permute.xlu0 %499
    %vm501 = vcmask 64512
    %v502 = vsel %vm501, %v479, 0
    %v504 = vsel %vm501, %v484, 0
    %v506 = vsel %vm501, %v489, 0
    %v508 = vsel %vm501, %v496, 0
    %v510 = vsel %vm501, %v498, 0
    %v512 = vsel %vm501, %v500, 0
    %514 = vmatprep.subr.mxu0 0.0
    %515 = vmatpush1.xpose.msra.mxu0 %v508
    %516 = vmatprep.subr.mxu0 0.0
    %517 = vmatpush1.xpose.msra.mxu0 %v510
    %518 = vmatprep.subr.mxu0 0.0
    %519 = vmatpush1.xpose.msra.mxu0 %v512
    %520 = vmatprep.subr.mxu0 0.0
    %521 = vmatpush1.xpose.msra.mxu0 0.0
    %522 = vmatprep.subr.mxu0 0.0
    %523 = vmatpush1.xpose.msra.mxu0 0.0
    %524 = vmatprep.subr.mxu0 0.0
    %525 = vmatpush1.xpose.msra.mxu0 0.0
    %526 = vmatprep.subr.mxu0 0.0
    %527 = vmatpush1.xpose.msra.mxu0 0.0
    %528 = vmatprep.subr.mxu0 0.0
    %529 = vmatpush1.xpose.msra.mxu0 0.0
    %530 = vmatprep.subr.mxu0 0.0
    %531 = vmatpush1.xpose.msra.mxu0 0.0
    %532 = vmatprep.subr.mxu0 0.0
    %533 = vmatpush1.xpose.msra.mxu0 0.0
    %534 = vmatprep.subr.mxu0 0.0
    %535 = vmatpush1.xpose.msra.mxu0 0.0
    %536 = vmatprep.subr.mxu0 0.0
    %537 = vmatpush1.xpose.msra.mxu0 0.0
    %538 = vmatprep.subr.mxu0 0.0
    %539 = vmatpush1.xpose.msra.mxu0 0.0
    %540 = vmatprep.subr.mxu0 0.0
    %541 = vmatpush1.xpose.msra.mxu0 0.0
    %542 = vmatprep.subr.mxu0 0.0
    %543 = vmatpush1.xpose.msra.mxu0 0.0
    %544 = vmatprep.subr.mxu0 0.0
    %545 = vmatpush1.xpose.msra.mxu0 0.0
    %546 = vmatprep.subr.mxu0 0.0
    %547 = vmatpush1.xpose.msra.mxu0 0.0
    %548 = vmatprep.subr.mxu0 0.0
    %549 = vmatpush1.xpose.msra.mxu0 0.0
    %550 = vmatprep.subr.mxu0 0.0
    %551 = vmatpush1.xpose.msra.mxu0 0.0
    %552 = vmatprep.subr.mxu0 0.0
    %553 = vmatpush1.xpose.msra.mxu0 0.0
    %554 = vmatprep.subr.mxu0 0.0
    %555 = vmatpush1.xpose.msra.mxu0 0.0
    %556 = vmatprep.subr.mxu0 0.0
    %557 = vmatpush1.xpose.msra.mxu0 0.0
    %558 = vmatprep.subr.mxu0 0.0
    %559 = vmatpush1.xpose.msra.mxu0 0.0
    %560 = vmatprep.subr.mxu0 0.0
    %561 = vmatpush1.xpose.msra.mxu0 0.0
    %562 = vmatprep.subr.mxu0 0.0
    %563 = vmatpush1.xpose.msra.mxu0 0.0
    %564 = vmatprep.subr.mxu0 0.0
    %565 = vmatpush1.xpose.msra.mxu0 0.0
    %566 = vmatprep.subr.mxu0 0.0
    %567 = vmatpush1.xpose.msra.mxu0 0.0
    %568 = vmatprep.subr.mxu0 0.0
    %569 = vmatpush1.xpose.msra.mxu0 0.0
    %570 = vmatprep.subr.mxu0 0.0
    %571 = vmatpush1.xpose.msra.mxu0 0.0
    %572 = vmatprep.subr.mxu0 0.0
    %573 = vmatpush1.xpose.msra.mxu0 0.0
    %574 = vmatprep.subr.mxu0 0.0
    %575 = vmatpush1.xpose.msra.mxu0 0.0
    %576 = vmatprep.subr.mxu0 0.0
    %577 = vmatpush1.xpose.msra.mxu0 0.0
    %578 = vmatprep.mubr.f32.mxu0 0.0
    %579 = vmatmul.mubr.f32.gmra.mrb[0].mxu0 %v502
    %v580 = vpop.f32.mrb[0].mxu0
    %v581 = vadd.f32 %v70, %v580
    %v582 = vpop.f32.mrb[0].mxu0
    %583 = vmatprep.mubr.f32.mxu0 0.0
    %584 = vmatmul.mubr.f32.gmra.mrb[0].mxu0 %v504
    %v585 = vpop.f32.mrb[0].mxu0
    %v586 = vadd.f32 %v71, %v585
    %v587 = vpop.f32.mrb[0].mxu0
    %588 = vmatprep.mubr.f32.mxu0 0.0
    %589 = vmatmul.mubr.f32.gmra.mrb[0].mxu0 %v506
    %v590 = vpop.f32.mrb[0].mxu0
    %v591 = vadd.f32 %v72, %v590
    %v592 = vpop.f32.mrb[0].mxu0
    %593 = vdwg.mxu0
    %vm594 = vcmask 162816
    %v595 = vsel %vm594, %v581, -inf
    %596 = vmax.xlane.f32.xlu0 %v595
    %v597 = vpop.xlane.xlu0 %596
    %v598 = vsel %vm594, %v586, -inf
    %599 = vmax.xlane.f32.xlu0 %v598
    %v600 = vpop.xlane.xlu0 %599
    %vm601 = vcmask 158720
    %v602 = vsel %vm601, %v591, -inf
    %603 = vmax.xlane.f32.xlu0 %v602
    %v604 = vpop.xlane.xlu0 %603
    %v605 = vsub.f32 %v581, %v597
    %v606 = vsub.f32 %v586, %v600
    %v607 = vsub.f32 %v591, %v604
    %v608 = vmul.f32 %v605, 1.442695
    %v609 = vpow.pop %v608
    %v610 = vmul.f32 %v606, 1.442695
    %v611 = vpow.pop %v610
    %v612 = vmul.f32 %v607, 1.442695
    %v613 = vpow.pop %v612
    %v614 = vsel %vm594, %v609, 0.0
    %615 = vadd.xlane.f32.xlu0 %v614
    %v616 = vpop.xlane.xlu0 %615
    %v617 = vsel %vm594, %v611, 0.0
    %618 = vadd.xlane.f32.xlu0 %v617
    %v619 = vpop.xlane.xlu0 %618
    %v620 = vsel %vm601, %v613, 0.0
    %621 = vadd.xlane.f32.xlu0 %v620
    %v622 = vpop.xlane.xlu0 %621
    %v623 = vrcp.pop %v616
    %v624 = vrcp.pop %v619
    %v625 = vrcp.pop %v622
    %v626 = vmul.f32 %v609, %v623
    %v627 = vmul.f32 %v611, %v624
    %v628 = vmul.f32 %v613, %v625
    %629 = vrot.lane.b32.xlu0 %v479, 64
    %v630 = vpop.permute.xlu0 %629
    %631 = vrot.lane.b32.xlu0 %v484, 64
    %v632 = vpop.permute.xlu0 %631
    %633 = vrot.lane.b32.xlu0 %v489, 64
    %v634 = vpop.permute.xlu0 %633
    %v638 = vsel %vm594, %v626, 0
    %v641 = vsel %vm594, %v627, 0
    %v644 = vsel %vm594, %v628, 0
    %vm646 = vcmask 1043456
    %v647 = vsel %vm646, %v634, 0
    %649 = vmatprep.subr.mxu0 0.0
    %650 = vmatpush1.msra.mxu0 %v630
    %651 = vmatprep.subr.mxu0 0.0
    %652 = vmatpush1.msra.mxu0 %v632
    %653 = vmatprep.subr.mxu0 0.0
    %654 = vmatpush1.msra.mxu0 %v647
    %655 = vmatprep.subr.mxu0 0.0
    %656 = vmatpush1.msra.mxu0 0.0
    %657 = vmatprep.subr.mxu0 0.0
    %658 = vmatpush1.msra.mxu0 0.0
    %659 = vmatprep.subr.mxu0 0.0
    %660 = vmatpush1.msra.mxu0 0.0
    %661 = vmatprep.subr.mxu0 0.0
    %662 = vmatpush1.msra.mxu0 0.0
    %663 = vmatprep.subr.mxu0 0.0
    %664 = vmatpush1.msra.mxu0 0.0
    %665 = vmatprep.subr.mxu0 0.0
    %666 = vmatpush1.msra.mxu0 0.0
    %667 = vmatprep.subr.mxu0 0.0
    %668 = vmatpush1.msra.mxu0 0.0
    %669 = vmatprep.subr.mxu0 0.0
    %670 = vmatpush1.msra.mxu0 0.0
    %671 = vmatprep.subr.mxu0 0.0
    %672 = vmatpush1.msra.mxu0 0.0
    %673 = vmatprep.subr.mxu0 0.0
    %674 = vmatpush1.msra.mxu0 0.0
    %675 = vmatprep.subr.mxu0 0.0
    %676 = vmatpush1.msra.mxu0 0.0
    %677 = vmatprep.subr.mxu0 0.0
    %678 = vmatpush1.msra.mxu0 0.0
    %679 = vmatprep.subr.mxu0 0.0
    %680 = vmatpush1.msra.mxu0 0.0
    %681 = vmatprep.subr.mxu0 0.0
    %682 = vmatpush1.msra.mxu0 0.0
    %683 = vmatprep.subr.mxu0 0.0
    %684 = vmatpush1.msra.mxu0 0.0
    %685 = vmatprep.subr.mxu0 0.0
    %686 = vmatpush1.msra.mxu0 0.0
    %687 = vmatprep.subr.mxu0 0.0
    %688 = vmatpush1.msra.mxu0 0.0
    %689 = vmatprep.subr.mxu0 0.0
    %690 = vmatpush1.msra.mxu0 0.0
    %691 = vmatprep.subr.mxu0 0.0
    %692 = vmatpush1.msra.mxu0 0.0
    %693 = vmatprep.subr.mxu0 0.0
    %694 = vmatpush1.msra.mxu0 0.0
    %695 = vmatprep.subr.mxu0 0.0
    %696 = vmatpush1.msra.mxu0 0.0
    %697 = vmatprep.subr.mxu0 0.0
    %698 = vmatpush1.msra.mxu0 0.0
    %699 = vmatprep.subr.mxu0 0.0
    %700 = vmatpush1.msra.mxu0 0.0
    %701 = vmatprep.subr.mxu0 0.0
    %702 = vmatpush1.msra.mxu0 0.0
    %703 = vmatprep.subr.mxu0 0.0
    %704 = vmatpush1.msra.mxu0 0.0
    %705 = vmatprep.subr.mxu0 0.0
    %706 = vmatpush1.msra.mxu0 0.0
    %707 = vmatprep.subr.mxu0 0.0
    %708 = vmatpush1.msra.mxu0 0.0
    %709 = vmatprep.subr.mxu0 0.0
    %710 = vmatpush1.msra.mxu0 0.0
    %711 = vmatprep.subr.mxu0 0.0
    %712 = vmatpush1.msra.mxu0 0.0
    %713 = vmatprep.mubr.f32.mxu0 0.0
    %714 = vmatmul.mubr.f32.gmra.mrb[0].mxu0 %v638
    %v715 = vpop.f32.mrb[0].mxu0
    %v716 = vadd.f32 0.0, %v715
    %v717 = vpop.f32.mrb[0].mxu0
    %718 = vmatprep.mubr.f32.mxu0 0.0
    %719 = vmatmul.mubr.f32.gmra.mrb[0].mxu0 %v641
    %v720 = vpop.f32.mrb[0].mxu0
    %v721 = vadd.f32 0.0, %v720
    %v722 = vpop.f32.mrb[0].mxu0
    %723 = vmatprep.mubr.f32.mxu0 0.0
    %724 = vmatmul.mubr.f32.gmra.mrb[0].mxu0 %v644
    %v725 = vpop.f32.mrb[0].mxu0
    %v726 = vadd.f32 0.0, %v725
    %v727 = vpop.f32.mrb[0].mxu0
    %728 = vdwg.mxu0
    %729 = vrot.lane.b32.xlu0 %v479, 120
    %v730 = vpop.permute.xlu0 %729
    %731 = vrot.lane.b32.xlu0 %v484, 120
    %v732 = vpop.permute.xlu0 %731
    %733 = vrot.lane.b32.xlu0 %v489, 120
    %v734 = vpop.permute.xlu0 %733
    %735 = vrot.lane.b32.xlu0 %v479, 88
    %v736 = vpop.permute.xlu0 %735
    %737 = vrot.lane.b32.xlu0 %v484, 88
    %v738 = vpop.permute.xlu0 %737
    %739 = vrot.lane.b32.xlu0 %v489, 88
    %v740 = vpop.permute.xlu0 %739
    %v741 = vsel %vm501, %v730, 0
    %v743 = vsel %vm501, %v732, 0
    %v745 = vsel %vm501, %v734, 0
    %v747 = vsel %vm501, %v736, 0
    %v749 = vsel %vm501, %v738, 0
    %v751 = vsel %vm501, %v740, 0
    %753 = vmatprep.subr.mxu0 0.0
    %754 = vmatpush1.xpose.msra.mxu0 %v747
    %755 = vmatprep.subr.mxu0 0.0
    %756 = vmatpush1.xpose.msra.mxu0 %v749
    %757 = vmatprep.subr.mxu0 0.0
    %758 = vmatpush1.xpose.msra.mxu0 %v751
    %759 = vmatprep.subr.mxu0 0.0
    %760 = vmatpush1.xpose.msra.mxu0 0.0
    %761 = vmatprep.subr.mxu0 0.0
    %762 = vmatpush1.xpose.msra.mxu0 0.0
    %763 = vmatprep.subr.mxu0 0.0
    %764 = vmatpush1.xpose.msra.mxu0 0.0
    %765 = vmatprep.subr.mxu0 0.0
    %766 = vmatpush1.xpose.msra.mxu0 0.0
    %767 = vmatprep.subr.mxu0 0.0
    %768 = vmatpush1.xpose.msra.mxu0 0.0
    %769 = vmatprep.subr.mxu0 0.0
    %770 = vmatpush1.xpose.msra.mxu0 0.0
    %771 = vmatprep.subr.mxu0 0.0
    %772 = vmatpush1.xpose.msra.mxu0 0.0
    %773 = vmatprep.subr.mxu0 0.0
    %774 = vmatpush1.xpose.msra.mxu0 0.0
    %775 = vmatprep.subr.mxu0 0.0
    %776 = vmatpush1.xpose.msra.mxu0 0.0
    %777 = vmatprep.subr.mxu0 0.0
    %778 = vmatpush1.xpose.msra.mxu0 0.0
    %779 = vmatprep.subr.mxu0 0.0
    %780 = vmatpush1.xpose.msra.mxu0 0.0
    %781 = vmatprep.subr.mxu0 0.0
    %782 = vmatpush1.xpose.msra.mxu0 0.0
    %783 = vmatprep.subr.mxu0 0.0
    %784 = vmatpush1.xpose.msra.mxu0 0.0
    %785 = vmatprep.subr.mxu0 0.0
    %786 = vmatpush1.xpose.msra.mxu0 0.0
    %787 = vmatprep.subr.mxu0 0.0
    %788 = vmatpush1.xpose.msra.mxu0 0.0
    %789 = vmatprep.subr.mxu0 0.0
    %790 = vmatpush1.xpose.msra.mxu0 0.0
    %791 = vmatprep.subr.mxu0 0.0
    %792 = vmatpush1.xpose.msra.mxu0 0.0
    %793 = vmatprep.subr.mxu0 0.0
    %794 = vmatpush1.xpose.msra.mxu0 0.0
    %795 = vmatprep.subr.mxu0 0.0
    %796 = vmatpush1.xpose.msra.mxu0 0.0
    %797 = vmatprep.subr.mxu0 0.0
    %798 = vmatpush1.xpose.msra.mxu0 0.0
    %799 = vmatprep.subr.mxu0 0.0
    %800 = vmatpush1.xpose.msra.mxu0 0.0
    %801 = vmatprep.subr.mxu0 0.0
    %802 = vmatpush1.xpose.msra.mxu0 0.0
    %803 = vmatprep.subr.mxu0 0.0
    %804 = vmatpush1.xpose.msra.mxu0 0.0
    %805 = vmatprep.subr.mxu0 0.0
    %806 = vmatpush1.xpose.msra.mxu0 0.0
    %807 = vmatprep.subr.mxu0 0.0
    %808 = vmatpush1.xpose.msra.mxu0 0.0
    %809 = vmatprep.subr.mxu0 0.0
    %810 = vmatpush1.xpose.msra.mxu0 0.0
    %811 = vmatprep.subr.mxu0 0.0
    %812 = vmatpush1.xpose.msra.mxu0 0.0
    %813 = vmatprep.subr.mxu0 0.0
    %814 = vmatpush1.xpose.msra.mxu0 0.0
    %815 = vmatprep.subr.mxu0 0.0
    %816 = vmatpush1.xpose.msra.mxu0 0.0
    %817 = vmatprep.mubr.f32.mxu0 0.0
    %818 = vmatmul.mubr.f32.gmra.mrb[0].mxu0 %v741
    %v819 = vpop.f32.mrb[0].mxu0
    %v820 = vadd.f32 %v70, %v819
    %v821 = vpop.f32.mrb[0].mxu0
    %822 = vmatprep.mubr.f32.mxu0 0.0
    %823 = vmatmul.mubr.f32.gmra.mrb[0].mxu0 %v743
    %v824 = vpop.f32.mrb[0].mxu0
    %v825 = vadd.f32 %v71, %v824
    %v826 = vpop.f32.mrb[0].mxu0
    %827 = vmatprep.mubr.f32.mxu0 0.0
    %828 = vmatmul.mubr.f32.gmra.mrb[0].mxu0 %v745
    %v829 = vpop.f32.mrb[0].mxu0
    %v830 = vadd.f32 %v72, %v829
    %v831 = vpop.f32.mrb[0].mxu0
    %832 = vdwg.mxu0
    %v833 = vsel %vm594, %v820, -inf
    %834 = vmax.xlane.f32.xlu0 %v833
    %v835 = vpop.xlane.xlu0 %834
    %v836 = vsel %vm594, %v825, -inf
    %837 = vmax.xlane.f32.xlu0 %v836
    %v838 = vpop.xlane.xlu0 %837
    %v839 = vsel %vm601, %v830, -inf
    %840 = vmax.xlane.f32.xlu0 %v839
    %v841 = vpop.xlane.xlu0 %840
    %v842 = vsub.f32 %v820, %v835
    %v843 = vsub.f32 %v825, %v838
    %v844 = vsub.f32 %v830, %v841
    %v845 = vmul.f32 %v842, 1.442695
    %v846 = vpow.pop %v845
    %v847 = vmul.f32 %v843, 1.442695
    %v848 = vpow.pop %v847
    %v849 = vmul.f32 %v844, 1.442695
    %v850 = vpow.pop %v849
    %v851 = vsel %vm594, %v846, 0.0
    %852 = vadd.xlane.f32.xlu0 %v851
    %v853 = vpop.xlane.xlu0 %852
    %v854 = vsel %vm594, %v848, 0.0
    %855 = vadd.xlane.f32.xlu0 %v854
    %v856 = vpop.xlane.xlu0 %855
    %v857 = vsel %vm601, %v850, 0.0
    %858 = vadd.xlane.f32.xlu0 %v857
    %v859 = vpop.xlane.xlu0 %858
    %v860 = vrcp.pop %v853
    %v861 = vrcp.pop %v856
    %v862 = vrcp.pop %v859
    %v863 = vmul.f32 %v846, %v860
    %v864 = vmul.f32 %v848, %v861
    %v865 = vmul.f32 %v850, %v862
    %866 = vrot.lane.b32.xlu0 %v479, 56
    %v867 = vpop.permute.xlu0 %866
    %868 = vrot.lane.b32.xlu0 %v484, 56
    %v869 = vpop.permute.xlu0 %868
    %870 = vrot.lane.b32.xlu0 %v489, 56
    %v871 = vpop.permute.xlu0 %870
    %v875 = vsel %vm594, %v863, 0
    %v878 = vsel %vm594, %v864, 0
    %v881 = vsel %vm594, %v865, 0
    %v883 = vsel %vm646, %v871, 0
    %885 = vmatprep.subr.mxu0 0.0
    %886 = vmatpush1.msra.mxu0 %v867
    %887 = vmatprep.subr.mxu0 0.0
    %888 = vmatpush1.msra.mxu0 %v869
    %889 = vmatprep.subr.mxu0 0.0
    %890 = vmatpush1.msra.mxu0 %v883
    %891 = vmatprep.subr.mxu0 0.0
    %892 = vmatpush1.msra.mxu0 0.0
    %893 = vmatprep.subr.mxu0 0.0
    %894 = vmatpush1.msra.mxu0 0.0
    %895 = vmatprep.subr.mxu0 0.0
    %896 = vmatpush1.msra.mxu0 0.0
    %897 = vmatprep.subr.mxu0 0.0
    %898 = vmatpush1.msra.mxu0 0.0
    %899 = vmatprep.subr.mxu0 0.0
    %900 = vmatpush1.msra.mxu0 0.0
    %901 = vmatprep.subr.mxu0 0.0
    %902 = vmatpush1.msra.mxu0 0.0
    %903 = vmatprep.subr.mxu0 0.0
    %904 = vmatpush1.msra.mxu0 0.0
    %905 = vmatprep.subr.mxu0 0.0
    %906 = vmatpush1.msra.mxu0 0.0
    %907 = vmatprep.subr.mxu0 0.0
    %908 = vmatpush1.msra.mxu0 0.0
    %909 = vmatprep.subr.mxu0 0.0
    %910 = vmatpush1.msra.mxu0 0.0
    %911 = vmatprep.subr.mxu0 0.0
    %912 = vmatpush1.msra.mxu0 0.0
    %913 = vmatprep.subr.mxu0 0.0
    %914 = vmatpush1.msra.mxu0 0.0
    %915 = vmatprep.subr.mxu0 0.0
    %916 = vmatpush1.msra.mxu0 0.0
    %917 = vmatprep.subr.mxu0 0.0
    %918 = vmatpush1.msra.mxu0 0.0
    %919 = vmatprep.subr.mxu0 0.0
    %920 = vmatpush1.msra.mxu0 0.0
    %921 = vmatprep.subr.mxu0 0.0
    %922 = vmatpush1.msra.mxu0 0.0
    %923 = vmatprep.subr.mxu0 0.0
    %924 = vmatpush1.msra.mxu0 0.0
    %925 = vmatprep.subr.mxu0 0.0
    %926 = vmatpush1.msra.mxu0 0.0
    %927 = vmatprep.subr.mxu0 0.0
    %928 = vmatpush1.msra.mxu0 0.0
    %929 = vmatprep.subr.mxu0 0.0
    %930 = vmatpush1.msra.mxu0 0.0
    %931 = vmatprep.subr.mxu0 0.0
    %932 = vmatpush1.msra.mxu0 0.0
    %933 = vmatprep.subr.mxu0 0.0
    %934 = vmatpush1.msra.mxu0 0.0
    %935 = vmatprep.subr.mxu0 0.0
    %936 = vmatpush1.msra.mxu0 0.0
    %937 = vmatprep.subr.mxu0 0.0
    %938 = vmatpush1.msra.mxu0 0.0
    %939 = vmatprep.subr.mxu0 0.0
    %940 = vmatpush1.msra.mxu0 0.0
    %941 = vmatprep.subr.mxu0 0.0
    %942 = vmatpush1.msra.mxu0 0.0
    %943 = vmatprep.subr.mxu0 0.0
    %944 = vmatpush1.msra.mxu0 0.0
    %945 = vmatprep.subr.mxu0 0.0
    %946 = vmatpush1.msra.mxu0 0.0
    %947 = vmatprep.subr.mxu0 0.0
    %948 = vmatpush1.msra.mxu0 0.0
    %949 = vmatprep.mubr.f32.mxu0 0.0
    %950 = vmatmul.mubr.f32.gmra.mrb[0].mxu0 %v875
    %v951 = vpop.f32.mrb[0].mxu0
    %v952 = vadd.f32 0.0, %v951
    %v953 = vpop.f32.mrb[0].mxu0
    %954 = vmatprep.mubr.f32.mxu0 0.0
    %955 = vmatmul.mubr.f32.gmra.mrb[0].mxu0 %v878
    %v956 = vpop.f32.mrb[0].mxu0
    %v957 = vadd.f32 0.0, %v956
    %v958 = vpop.f32.mrb[0].mxu0
    %959 = vmatprep.mubr.f32.mxu0 0.0
    %960 = vmatmul.mubr.f32.gmra.mrb[0].mxu0 %v881
    %v961 = vpop.f32.mrb[0].mxu0
    %v962 = vadd.f32 0.0, %v961
    %v963 = vpop.f32.mrb[0].mxu0
    %964 = vdwg.mxu0
    %v966 = vsel %vm501, %v952, 0
    %v969 = vsel %vm501, %v957, 0
    %v972 = vsel %vm501, %v962, 0
    %974 = vmatprep.subr.mxu0 0.0
    %975 = vmatpush1.msra.mxu0 %v387
    %976 = vmatprep.subr.mxu0 0.0
    %977 = vmatpush1.msra.mxu0 0.0
    %978 = vmatprep.subr.mxu0 0.0
    %979 = vmatpush1.msra.mxu0 0.0
    %980 = vmatprep.subr.mxu0 0.0
    %981 = vmatpush1.msra.mxu0 0.0
    %982 = vmatprep.subr.mxu0 0.0
    %983 = vmatpush1.msra.mxu0 0.0
    %984 = vmatprep.subr.mxu0 0.0
    %985 = vmatpush1.msra.mxu0 0.0
    %986 = vmatprep.subr.mxu0 0.0
    %987 = vmatpush1.msra.mxu0 0.0
    %988 = vmatprep.subr.mxu0 0.0
    %989 = vmatpush1.msra.mxu0 0.0
    %990 = vmatprep.subr.mxu0 0.0
    %991 = vmatpush1.msra.mxu0 0.0
    %992 = vmatprep.subr.mxu0 0.0
    %993 = vmatpush1.msra.mxu0 0.0
    %994 = vmatprep.subr.mxu0 0.0
    %995 = vmatpush1.msra.mxu0 0.0
    %996 = vmatprep.subr.mxu0 0.0
    %997 = vmatpush1.msra.mxu0 0.0
    %998 = vmatprep.subr.mxu0 0.0
    %999 = vmatpush1.msra.mxu0 0.0
    %1000 = vmatprep.subr.mxu0 0.0
    %1001 = vmatpush1.msra.mxu0 0.0
    %1002 = vmatprep.subr.mxu0 0.0
    %1003 = vmatpush1.msra.mxu0 0.0
    %1004 = vmatprep.subr.mxu0 0.0
    %1005 = vmatpush1.msra.mxu0 0.0
    %1006 = vmatprep.subr.mxu0 0.0
    %1007 = vmatpush1.msra.mxu0 0.0
    %1008 = vmatprep.subr.mxu0 0.0
    %1009 = vmatpush1.msra.mxu0 0.0
    %1010 = vmatprep.subr.mxu0 0.0
    %1011 = vmatpush1.msra.mxu0 0.0
    %1012 = vmatprep.subr.mxu0 0.0
    %1013 = vmatpush1.msra.mxu0 0.0
    %1014 = vmatprep.subr.mxu0 0.0
    %1015 = vmatpush1.msra.mxu0 0.0
    %1016 = vmatprep.subr.mxu0 0.0
    %1017 = vmatpush1.msra.mxu0 0.0
    %1018 = vmatprep.subr.mxu0 0.0
    %1019 = vmatpush1.msra.mxu0 0.0
    %1020 = vmatprep.subr.mxu0 0.0
    %1021 = vmatpush1.msra.mxu0 0.0
    %1022 = vmatprep.subr.mxu0 0.0
    %1023 = vmatpush1.msra.mxu0 0.0
    %1024 = vmatprep.subr.mxu0 0.0
    %1025 = vmatpush1.msra.mxu0 0.0
    %1026 = vmatprep.subr.mxu0 0.0
    %1027 = vmatpush1.msra.mxu0 0.0
    %1028 = vmatprep.subr.mxu0 0.0
    %1029 = vmatpush1.msra.mxu0 0.0
    %1030 = vmatprep.subr.mxu0 0.0
    %1031 = vmatpush1.msra.mxu0 0.0
    %1032 = vmatprep.subr.mxu0 0.0
    %1033 = vmatpush1.msra.mxu0 0.0
    %1034 = vmatprep.subr.mxu0 0.0
    %1035 = vmatpush1.msra.mxu0 0.0
    %1036 = vmatprep.subr.mxu0 0.0
    %1037 = vmatpush1.msra.mxu0 0.0
    %1038 = vmatprep.mubr.f32.mxu0 0.0
    %1039 = vmatmul.mubr.f32.gmra.mrb[0].mxu0 %v966
    %v1040 = vpop.f32.mrb[0].mxu0
    %v1041 = vadd.f32 0.0, %v1040
    %v1042 = vpop.f32.mrb[0].mxu0
    %1043 = vmatprep.mubr.f32.mxu0 0.0
    %1044 = vmatmul.mubr.f32.gmra.mrb[0].mxu0 %v969
    %v1045 = vpop.f32.mrb[0].mxu0
    %v1046 = vadd.f32 0.0, %v1045
    %v1047 = vpop.f32.mrb[0].mxu0
    %1048 = vmatprep.mubr.f32.mxu0 0.0
    %1049 = vmatmul.mubr.f32.gmra.mrb[0].mxu0 %v972
    %v1050 = vpop.f32.mrb[0].mxu0
    %v1051 = vadd.f32 0.0, %v1050
    %v1052 = vpop.f32.mrb[0].mxu0
    %1053 = vdwg.mxu0
    %v1055 = vsel %vm501, %v716, 0
    %v1058 = vsel %vm501, %v721, 0
    %v1061 = vsel %vm501, %v726, 0
    %1063 = vmatprep.subr.mxu0 0.0
    %1064 = vmatpush1.msra.mxu0 %v386
    %1065 = vmatprep.subr.mxu0 0.0
    %1066 = vmatpush1.msra.mxu0 0.0
    %1067 = vmatprep.subr.mxu0 0.0
    %1068 = vmatpush1.msra.mxu0 0.0
    %1069 = vmatprep.subr.mxu0 0.0
    %1070 = vmatpush1.msra.mxu0 0.0
    %1071 = vmatprep.subr.mxu0 0.0
    %1072 = vmatpush1.msra.mxu0 0.0
    %1073 = vmatprep.subr.mxu0 0.0
    %1074 = vmatpush1.msra.mxu0 0.0
    %1075 = vmatprep.subr.mxu0 0.0
    %1076 = vmatpush1.msra.mxu0 0.0
    %1077 = vmatprep.subr.mxu0 0.0
    %1078 = vmatpush1.msra.mxu0 0.0
    %1079 = vmatprep.subr.mxu0 0.0
    %1080 = vmatpush1.msra.mxu0 0.0
    %1081 = vmatprep.subr.mxu0 0.0
    %1082 = vmatpush1.msra.mxu0 0.0
    %1083 = vmatprep.subr.mxu0 0.0
    %1084 = vmatpush1.msra.mxu0 0.0
    %1085 = vmatprep.subr.mxu0 0.0
    %1086 = vmatpush1.msra.mxu0 0.0
    %1087 = vmatprep.subr.mxu0 0.0
    %1088 = vmatpush1.msra.mxu0 0.0
    %1089 = vmatprep.subr.mxu0 0.0
    %1090 = vmatpush1.msra.mxu0 0.0
    %1091 = vmatprep.subr.mxu0 0.0
    %1092 = vmatpush1.msra.mxu0 0.0
    %1093 = vmatprep.subr.mxu0 0.0
    %1094 = vmatpush1.msra.mxu0 0.0
    %1095 = vmatprep.subr.mxu0 0.0
    %1096 = vmatpush1.msra.mxu0 0.0
    %1097 = vmatprep.subr.mxu0 0.0
    %1098 = vmatpush1.msra.mxu0 0.0
    %1099 = vmatprep.subr.mxu0 0.0
    %1100 = vmatpush1.msra.mxu0 0.0
    %1101 = vmatprep.subr.mxu0 0.0
    %1102 = vmatpush1.msra.mxu0 0.0
    %1103 = vmatprep.subr.mxu0 0.0
    %1104 = vmatpush1.msra.mxu0 0.0
    %1105 = vmatprep.subr.mxu0 0.0
    %1106 = vmatpush1.msra.mxu0 0.0
    %1107 = vmatprep.subr.mxu0 0.0
    %1108 = vmatpush1.msra.mxu0 0.0
    %1109 = vmatprep.subr.mxu0 0.0
    %1110 = vmatpush1.msra.mxu0 0.0
    %1111 = vmatprep.subr.mxu0 0.0
    %1112 = vmatpush1.msra.mxu0 0.0
    %1113 = vmatprep.subr.mxu0 0.0
    %1114 = vmatpush1.msra.mxu0 0.0
    %1115 = vmatprep.subr.mxu0 0.0
    %1116 = vmatpush1.msra.mxu0 0.0
    %1117 = vmatprep.subr.mxu0 0.0
    %1118 = vmatpush1.msra.mxu0 0.0
    %1119 = vmatprep.subr.mxu0 0.0
    %1120 = vmatpush1.msra.mxu0 0.0
    %1121 = vmatprep.subr.mxu0 0.0
    %1122 = vmatpush1.msra.mxu0 0.0
    %1123 = vmatprep.subr.mxu0 0.0
    %1124 = vmatpush1.msra.mxu0 0.0
    %1125 = vmatprep.subr.mxu0 0.0
    %1126 = vmatpush1.msra.mxu0 0.0
    %1127 = vmatprep.mubr.f32.mxu0 0.0
    %1128 = vmatmul.mubr.f32.gmra.mrb[0].mxu0 %v1055
    %v1129 = vpop.f32.mrb[0].mxu0
    %v1130 = vadd.f32 %v1041, %v1129
    %v1131 = vpop.f32.mrb[0].mxu0
    %1132 = vmatprep.mubr.f32.mxu0 0.0
    %1133 = vmatmul.mubr.f32.gmra.mrb[0].mxu0 %v1058
    %v1134 = vpop.f32.mrb[0].mxu0
    %v1135 = vadd.f32 %v1046, %v1134
    %v1136 = vpop.f32.mrb[0].mxu0
    %1137 = vmatprep.mubr.f32.mxu0 0.0
    %1138 = vmatmul.mubr.f32.gmra.mrb[0].mxu0 %v1061
    %v1139 = vpop.f32.mrb[0].mxu0
    %v1140 = vadd.f32 %v1051, %v1139
    %v1141 = vpop.f32.mrb[0].mxu0
    %1142 = vdwg.mxu0
    %1143 = vrot.lane.b32.xlu0 %v479, 112
    %v1144 = vpop.permute.xlu0 %1143
    %1145 = vrot.lane.b32.xlu0 %v484, 112
    %v1146 = vpop.permute.xlu0 %1145
    %1147 = vrot.lane.b32.xlu0 %v489, 112
    %v1148 = vpop.permute.xlu0 %1147
    %1149 = vrot.lane.b32.xlu0 %v479, 80
    %v1150 = vpop.permute.xlu0 %1149
    %1151 = vrot.lane.b32.xlu0 %v484, 80
    %v1152 = vpop.permute.xlu0 %1151
    %1153 = vrot.lane.b32.xlu0 %v489, 80
    %v1154 = vpop.permute.xlu0 %1153
    %v1155 = vsel %vm501, %v1144, 0
    %v1157 = vsel %vm501, %v1146, 0
    %v1159 = vsel %vm501, %v1148, 0
    %v1161 = vsel %vm501, %v1150, 0
    %v1163 = vsel %vm501, %v1152, 0
    %v1165 = vsel %vm501, %v1154, 0
    %1167 = vmatprep.subr.mxu0 0.0
    %1168 = vmatpush1.xpose.msra.mxu0 %v1161
    %1169 = vmatprep.subr.mxu0 0.0
    %1170 = vmatpush1.xpose.msra.mxu0 %v1163
    %1171 = vmatprep.subr.mxu0 0.0
    %1172 = vmatpush1.xpose.msra.mxu0 %v1165
    %1173 = vmatprep.subr.mxu0 0.0
    %1174 = vmatpush1.xpose.msra.mxu0 0.0
    %1175 = vmatprep.subr.mxu0 0.0
    %1176 = vmatpush1.xpose.msra.mxu0 0.0
    %1177 = vmatprep.subr.mxu0 0.0
    %1178 = vmatpush1.xpose.msra.mxu0 0.0
    %1179 = vmatprep.subr.mxu0 0.0
    %1180 = vmatpush1.xpose.msra.mxu0 0.0
    %1181 = vmatprep.subr.mxu0 0.0
    %1182 = vmatpush1.xpose.msra.mxu0 0.0
    %1183 = vmatprep.subr.mxu0 0.0
    %1184 = vmatpush1.xpose.msra.mxu0 0.0
    %1185 = vmatprep.subr.mxu0 0.0
    %1186 = vmatpush1.xpose.msra.mxu0 0.0
    %1187 = vmatprep.subr.mxu0 0.0
    %1188 = vmatpush1.xpose.msra.mxu0 0.0
    %1189 = vmatprep.subr.mxu0 0.0
    %1190 = vmatpush1.xpose.msra.mxu0 0.0
    %1191 = vmatprep.subr.mxu0 0.0
    %1192 = vmatpush1.xpose.msra.mxu0 0.0
    %1193 = vmatprep.subr.mxu0 0.0
    %1194 = vmatpush1.xpose.msra.mxu0 0.0
    %1195 = vmatprep.subr.mxu0 0.0
    %1196 = vmatpush1.xpose.msra.mxu0 0.0
    %1197 = vmatprep.subr.mxu0 0.0
    %1198 = vmatpush1.xpose.msra.mxu0 0.0
    %1199 = vmatprep.subr.mxu0 0.0
    %1200 = vmatpush1.xpose.msra.mxu0 0.0
    %1201 = vmatprep.subr.mxu0 0.0
    %1202 = vmatpush1.xpose.msra.mxu0 0.0
    %1203 = vmatprep.subr.mxu0 0.0
    %1204 = vmatpush1.xpose.msra.mxu0 0.0
    %1205 = vmatprep.subr.mxu0 0.0
    %1206 = vmatpush1.xpose.msra.mxu0 0.0
    %1207 = vmatprep.subr.mxu0 0.0
    %1208 = vmatpush1.xpose.msra.mxu0 0.0
    %1209 = vmatprep.subr.mxu0 0.0
    %1210 = vmatpush1.xpose.msra.mxu0 0.0
    %1211 = vmatprep.subr.mxu0 0.0
    %1212 = vmatpush1.xpose.msra.mxu0 0.0
    %1213 = vmatprep.subr.mxu0 0.0
    %1214 = vmatpush1.xpose.msra.mxu0 0.0
    %1215 = vmatprep.subr.mxu0 0.0
    %1216 = vmatpush1.xpose.msra.mxu0 0.0
    %1217 = vmatprep.subr.mxu0 0.0
    %1218 = vmatpush1.xpose.msra.mxu0 0.0
    %1219 = vmatprep.subr.mxu0 0.0
    %1220 = vmatpush1.xpose.msra.mxu0 0.0
    %1221 = vmatprep.subr.mxu0 0.0
    %1222 = vmatpush1.xpose.msra.mxu0 0.0
    %1223 = vmatprep.subr.mxu0 0.0
    %1224 = vmatpush1.xpose.msra.mxu0 0.0
    %1225 = vmatprep.subr.mxu0 0.0
    %1226 = vmatpush1.xpose.msra.mxu0 0.0
    %1227 = vmatprep.subr.mxu0 0.0
    %1228 = vmatpush1.xpose.msra.mxu0 0.0
    %1229 = vmatprep.subr.mxu0 0.0
    %1230 = vmatpush1.xpose.msra.mxu0 0.0
    %1231 = vmatprep.mubr.f32.mxu0 0.0
    %1232 = vmatmul.mubr.f32.gmra.mrb[0].mxu0 %v1155
    %v1233 = vpop.f32.mrb[0].mxu0
    %v1234 = vadd.f32 %v70, %v1233
    %v1235 = vpop.f32.mrb[0].mxu0
    %1236 = vmatprep.mubr.f32.mxu0 0.0
    %1237 = vmatmul.mubr.f32.gmra.mrb[0].mxu0 %v1157
    %v1238 = vpop.f32.mrb[0].mxu0
    %v1239 = vadd.f32 %v71, %v1238
    %v1240 = vpop.f32.mrb[0].mxu0
    %1241 = vmatprep.mubr.f32.mxu0 0.0
    %1242 = vmatmul.mubr.f32.gmra.mrb[0].mxu0 %v1159
    %v1243 = vpop.f32.mrb[0].mxu0
    %v1244 = vadd.f32 %v72, %v1243
    %v1245 = vpop.f32.mrb[0].mxu0
    %1246 = vdwg.mxu0
    %v1247 = vsel %vm594, %v1234, -inf
    %1248 = vmax.xlane.f32.xlu0 %v1247
    %v1249 = vpop.xlane.xlu0 %1248
    %v1250 = vsel %vm594, %v1239, -inf
    %1251 = vmax.xlane.f32.xlu0 %v1250
    %v1252 = vpop.xlane.xlu0 %1251
    %v1253 = vsel %vm601, %v1244, -inf
    %1254 = vmax.xlane.f32.xlu0 %v1253
    %v1255 = vpop.xlane.xlu0 %1254
    %v1256 = vsub.f32 %v1234, %v1249
    %v1257 = vsub.f32 %v1239, %v1252
    %v1258 = vsub.f32 %v1244, %v1255
    %v1259 = vmul.f32 %v1256, 1.442695
    %v1260 = vpow.pop %v1259
    %v1261 = vmul.f32 %v1257, 1.442695
    %v1262 = vpow.pop %v1261
    %v1263 = vmul.f32 %v1258, 1.442695
    %v1264 = vpow.pop %v1263
    %v1265 = vsel %vm594, %v1260, 0.0
    %1266 = vadd.xlane.f32.xlu0 %v1265
    %v1267 = vpop.xlane.xlu0 %1266
    %v1268 = vsel %vm594, %v1262, 0.0
    %1269 = vadd.xlane.f32.xlu0 %v1268
    %v1270 = vpop.xlane.xlu0 %1269
    %v1271 = vsel %vm601, %v1264, 0.0
    %1272 = vadd.xlane.f32.xlu0 %v1271
    %v1273 = vpop.xlane.xlu0 %1272
    %v1274 = vrcp.pop %v1267
    %v1275 = vrcp.pop %v1270
    %v1276 = vrcp.pop %v1273
    %v1277 = vmul.f32 %v1260, %v1274
    %v1278 = vmul.f32 %v1262, %v1275
    %v1279 = vmul.f32 %v1264, %v1276
    %1280 = vrot.lane.b32.xlu0 %v479, 48
    %v1281 = vpop.permute.xlu0 %1280
    %1282 = vrot.lane.b32.xlu0 %v484, 48
    %v1283 = vpop.permute.xlu0 %1282
    %1284 = vrot.lane.b32.xlu0 %v489, 48
    %v1285 = vpop.permute.xlu0 %1284
    %v1289 = vsel %vm594, %v1277, 0
    %v1292 = vsel %vm594, %v1278, 0
    %v1295 = vsel %vm594, %v1279, 0
    %v1297 = vsel %vm646, %v1285, 0
    %1299 = vmatprep.subr.mxu0 0.0
    %1300 = vmatpush1.msra.mxu0 %v1281
    %1301 = vmatprep.subr.mxu0 0.0
    %1302 = vmatpush1.msra.mxu0 %v1283
    %1303 = vmatprep.subr.mxu0 0.0
    %1304 = vmatpush1.msra.mxu0 %v1297
    %1305 = vmatprep.subr.mxu0 0.0
    %1306 = vmatpush1.msra.mxu0 0.0
    %1307 = vmatprep.subr.mxu0 0.0
    %1308 = vmatpush1.msra.mxu0 0.0
    %1309 = vmatprep.subr.mxu0 0.0
    %1310 = vmatpush1.msra.mxu0 0.0
    %1311 = vmatprep.subr.mxu0 0.0
    %1312 = vmatpush1.msra.mxu0 0.0
    %1313 = vmatprep.subr.mxu0 0.0
    %1314 = vmatpush1.msra.mxu0 0.0
    %1315 = vmatprep.subr.mxu0 0.0
    %1316 = vmatpush1.msra.mxu0 0.0
    %1317 = vmatprep.subr.mxu0 0.0
    %1318 = vmatpush1.msra.mxu0 0.0
    %1319 = vmatprep.subr.mxu0 0.0
    %1320 = vmatpush1.msra.mxu0 0.0
    %1321 = vmatprep.subr.mxu0 0.0
    %1322 = vmatpush1.msra.mxu0 0.0
    %1323 = vmatprep.subr.mxu0 0.0
    %1324 = vmatpush1.msra.mxu0 0.0
    %1325 = vmatprep.subr.mxu0 0.0
    %1326 = vmatpush1.msra.mxu0 0.0
    %1327 = vmatprep.subr.mxu0 0.0
    %1328 = vmatpush1.msra.mxu0 0.0
    %1329 = vmatprep.subr.mxu0 0.0
    %1330 = vmatpush1.msra.mxu0 0.0
    %1331 = vmatprep.subr.mxu0 0.0
    %1332 = vmatpush1.msra.mxu0 0.0
    %1333 = vmatprep.subr.mxu0 0.0
    %1334 = vmatpush1.msra.mxu0 0.0
    %1335 = vmatprep.subr.mxu0 0.0
    %1336 = vmatpush1.msra.mxu0 0.0
    %1337 = vmatprep.subr.mxu0 0.0
    %1338 = vmatpush1.msra.mxu0 0.0
    %1339 = vmatprep.subr.mxu0 0.0
    %1340 = vmatpush1.msra.mxu0 0.0
    %1341 = vmatprep.subr.mxu0 0.0
    %1342 = vmatpush1.msra.mxu0 0.0
    %1343 = vmatprep.subr.mxu0 0.0
    %1344 = vmatpush1.msra.mxu0 0.0
    %1345 = vmatprep.subr.mxu0 0.0
    %1346 = vmatpush1.msra.mxu0 0.0
    %1347 = vmatprep.subr.mxu0 0.0
    %1348 = vmatpush1.msra.mxu0 0.0
    %1349 = vmatprep.subr.mxu0 0.0
    %1350 = vmatpush1.msra.mxu0 0.0
    %1351 = vmatprep.subr.mxu0 0.0
    %1352 = vmatpush1.msra.mxu0 0.0
    %1353 = vmatprep.subr.mxu0 0.0
    %1354 = vmatpush1.msra.mxu0 0.0
    %1355 = vmatprep.subr.mxu0 0.0
    %1356 = vmatpush1.msra.mxu0 0.0
    %1357 = vmatprep.subr.mxu0 0.0
    %1358 = vmatpush1.msra.mxu0 0.0
    %1359 = vmatprep.subr.mxu0 0.0
    %1360 = vmatpush1.msra.mxu0 0.0
    %1361 = vmatprep.subr.mxu0 0.0
    %1362 = vmatpush1.msra.mxu0 0.0
    %1363 = vmatprep.mubr.f32.mxu0 0.0
    %1364 = vmatmul.mubr.f32.gmra.mrb[0].mxu0 %v1289
    %v1365 = vpop.f32.mrb[0].mxu0
    %v1366 = vadd.f32 0.0, %v1365
    %v1367 = vpop.f32.mrb[0].mxu0
    %1368 = vmatprep.mubr.f32.mxu0 0.0
    %1369 = vmatmul.mubr.f32.gmra.mrb[0].mxu0 %v1292
    %v1370 = vpop.f32.mrb[0].mxu0
    %v1371 = vadd.f32 0.0, %v1370
    %v1372 = vpop.f32.mrb[0].mxu0
    %1373 = vmatprep.mubr.f32.mxu0 0.0
    %1374 = vmatmul.mubr.f32.gmra.mrb[0].mxu0 %v1295
    %v1375 = vpop.f32.mrb[0].mxu0
    %v1376 = vadd.f32 0.0, %v1375
    %v1377 = vpop.f32.mrb[0].mxu0
    %1378 = vdwg.mxu0
    %v1380 = vsel %vm501, %v1366, 0
    %v1383 = vsel %vm501, %v1371, 0
    %v1386 = vsel %vm501, %v1376, 0
    %1388 = vmatprep.subr.mxu0 0.0
    %1389 = vmatpush1.msra.mxu0 %v388
    %1390 = vmatprep.subr.mxu0 0.0
    %1391 = vmatpush1.msra.mxu0 0.0
    %1392 = vmatprep.subr.mxu0 0.0
    %1393 = vmatpush1.msra.mxu0 0.0
    %1394 = vmatprep.subr.mxu0 0.0
    %1395 = vmatpush1.msra.mxu0 0.0
    %1396 = vmatprep.subr.mxu0 0.0
    %1397 = vmatpush1.msra.mxu0 0.0
    %1398 = vmatprep.subr.mxu0 0.0
    %1399 = vmatpush1.msra.mxu0 0.0
    %1400 = vmatprep.subr.mxu0 0.0
    %1401 = vmatpush1.msra.mxu0 0.0
    %1402 = vmatprep.subr.mxu0 0.0
    %1403 = vmatpush1.msra.mxu0 0.0
    %1404 = vmatprep.subr.mxu0 0.0
    %1405 = vmatpush1.msra.mxu0 0.0
    %1406 = vmatprep.subr.mxu0 0.0
    %1407 = vmatpush1.msra.mxu0 0.0
    %1408 = vmatprep.subr.mxu0 0.0
    %1409 = vmatpush1.msra.mxu0 0.0
    %1410 = vmatprep.subr.mxu0 0.0
    %1411 = vmatpush1.msra.mxu0 0.0
    %1412 = vmatprep.subr.mxu0 0.0
    %1413 = vmatpush1.msra.mxu0 0.0
    %1414 = vmatprep.subr.mxu0 0.0
    %1415 = vmatpush1.msra.mxu0 0.0
    %1416 = vmatprep.subr.mxu0 0.0
    %1417 = vmatpush1.msra.mxu0 0.0
    %1418 = vmatprep.subr.mxu0 0.0
    %1419 = vmatpush1.msra.mxu0 0.0
    %1420 = vmatprep.subr.mxu0 0.0
    %1421 = vmatpush1.msra.mxu0 0.0
    %1422 = vmatprep.subr.mxu0 0.0
    %1423 = vmatpush1.msra.mxu0 0.0
    %1424 = vmatprep.subr.mxu0 0.0
    %1425 = vmatpush1.msra.mxu0 0.0
    %1426 = vmatprep.subr.mxu0 0.0
    %1427 = vmatpush1.msra.mxu0 0.0
    %1428 = vmatprep.subr.mxu0 0.0
    %1429 = vmatpush1.msra.mxu0 0.0
    %1430 = vmatprep.subr.mxu0 0.0
    %1431 = vmatpush1.msra.mxu0 0.0
    %1432 = vmatprep.subr.mxu0 0.0
    %1433 = vmatpush1.msra.mxu0 0.0
    %1434 = vmatprep.subr.mxu0 0.0
    %1435 = vmatpush1.msra.mxu0 0.0
    %1436 = vmatprep.subr.mxu0 0.0
    %1437 = vmatpush1.msra.mxu0 0.0
    %1438 = vmatprep.subr.mxu0 0.0
    %1439 = vmatpush1.msra.mxu0 0.0
    %1440 = vmatprep.subr.mxu0 0.0
    %1441 = vmatpush1.msra.mxu0 0.0
    %1442 = vmatprep.subr.mxu0 0.0
    %1443 = vmatpush1.msra.mxu0 0.0
    %1444 = vmatprep.subr.mxu0 0.0
    %1445 = vmatpush1.msra.mxu0 0.0
    %1446 = vmatprep.subr.mxu0 0.0
    %1447 = vmatpush1.msra.mxu0 0.0
    %1448 = vmatprep.subr.mxu0 0.0
    %1449 = vmatpush1.msra.mxu0 0.0
    %1450 = vmatprep.subr.mxu0 0.0
    %1451 = vmatpush1.msra.mxu0 0.0
    %1452 = vmatprep.mubr.f32.mxu0 0.0
    %1453 = vmatmul.mubr.f32.gmra.mrb[0].mxu0 %v1380
    %v1454 = vpop.f32.mrb[0].mxu0
    %v1455 = vadd.f32 0.0, %v1454
    %v1456 = vpop.f32.mrb[0].mxu0
    %1457 = vmatprep.mubr.f32.mxu0 0.0
    %1458 = vmatmul.mubr.f32.gmra.mrb[0].mxu0 %v1383
    %v1459 = vpop.f32.mrb[0].mxu0
    %v1460 = vadd.f32 0.0, %v1459
    %v1461 = vpop.f32.mrb[0].mxu0
    %1462 = vmatprep.mubr.f32.mxu0 0.0
    %1463 = vmatmul.mubr.f32.gmra.mrb[0].mxu0 %v1386
    %v1464 = vpop.f32.mrb[0].mxu0
    %v1465 = vadd.f32 0.0, %v1464
    %v1466 = vpop.f32.mrb[0].mxu0
    %1467 = vdwg.mxu0
    %v1468 = vadd.f32 %v1130, %v1455
    %v1469 = vadd.f32 %v1135, %v1460
    %v1470 = vadd.f32 %v1140, %v1465
    %1471 = vrot.lane.b32.xlu0 %v479, 104
    %v1472 = vpop.permute.xlu0 %1471
    %1473 = vrot.lane.b32.xlu0 %v484, 104
    %v1474 = vpop.permute.xlu0 %1473
    %1475 = vrot.lane.b32.xlu0 %v489, 104
    %v1476 = vpop.permute.xlu0 %1475
    %1477 = vrot.lane.b32.xlu0 %v479, 72
    %v1478 = vpop.permute.xlu0 %1477
    %1479 = vrot.lane.b32.xlu0 %v484, 72
    %v1480 = vpop.permute.xlu0 %1479
    %1481 = vrot.lane.b32.xlu0 %v489, 72
    %v1482 = vpop.permute.xlu0 %1481
    %v1483 = vsel %vm501, %v1472, 0
    %v1485 = vsel %vm501, %v1474, 0
    %v1487 = vsel %vm501, %v1476, 0
    %v1489 = vsel %vm501, %v1478, 0
    %v1491 = vsel %vm501, %v1480, 0
    %v1493 = vsel %vm501, %v1482, 0
    %1495 = vmatprep.subr.mxu0 0.0
    %1496 = vmatpush1.xpose.msra.mxu0 %v1489
    %1497 = vmatprep.subr.mxu0 0.0
    %1498 = vmatpush1.xpose.msra.mxu0 %v1491
    %1499 = vmatprep.subr.mxu0 0.0
    %1500 = vmatpush1.xpose.msra.mxu0 %v1493
    %1501 = vmatprep.subr.mxu0 0.0
    %1502 = vmatpush1.xpose.msra.mxu0 0.0
    %1503 = vmatprep.subr.mxu0 0.0
    %1504 = vmatpush1.xpose.msra.mxu0 0.0
    %1505 = vmatprep.subr.mxu0 0.0
    %1506 = vmatpush1.xpose.msra.mxu0 0.0
    %1507 = vmatprep.subr.mxu0 0.0
    %1508 = vmatpush1.xpose.msra.mxu0 0.0
    %1509 = vmatprep.subr.mxu0 0.0
    %1510 = vmatpush1.xpose.msra.mxu0 0.0
    %1511 = vmatprep.subr.mxu0 0.0
    %1512 = vmatpush1.xpose.msra.mxu0 0.0
    %1513 = vmatprep.subr.mxu0 0.0
    %1514 = vmatpush1.xpose.msra.mxu0 0.0
    %1515 = vmatprep.subr.mxu0 0.0
    %1516 = vmatpush1.xpose.msra.mxu0 0.0
    %1517 = vmatprep.subr.mxu0 0.0
    %1518 = vmatpush1.xpose.msra.mxu0 0.0
    %1519 = vmatprep.subr.mxu0 0.0
    %1520 = vmatpush1.xpose.msra.mxu0 0.0
    %1521 = vmatprep.subr.mxu0 0.0
    %1522 = vmatpush1.xpose.msra.mxu0 0.0
    %1523 = vmatprep.subr.mxu0 0.0
    %1524 = vmatpush1.xpose.msra.mxu0 0.0
    %1525 = vmatprep.subr.mxu0 0.0
    %1526 = vmatpush1.xpose.msra.mxu0 0.0
    %1527 = vmatprep.subr.mxu0 0.0
    %1528 = vmatpush1.xpose.msra.mxu0 0.0
    %1529 = vmatprep.subr.mxu0 0.0
    %1530 = vmatpush1.xpose.msra.mxu0 0.0
    %1531 = vmatprep.subr.mxu0 0.0
    %1532 = vmatpush1.xpose.msra.mxu0 0.0
    %1533 = vmatprep.subr.mxu0 0.0
    %1534 = vmatpush1.xpose.msra.mxu0 0.0
    %1535 = vmatprep.subr.mxu0 0.0
    %1536 = vmatpush1.xpose.msra.mxu0 0.0
    %1537 = vmatprep.subr.mxu0 0.0
    %1538 = vmatpush1.xpose.msra.mxu0 0.0
    %1539 = vmatprep.subr.mxu0 0.0
    %1540 = vmatpush1.xpose.msra.mxu0 0.0
    %1541 = vmatprep.subr.mxu0 0.0
    %1542 = vmatpush1.xpose.msra.mxu0 0.0
    %1543 = vmatprep.subr.mxu0 0.0
    %1544 = vmatpush1.xpose.msra.mxu0 0.0
    %1545 = vmatprep.subr.mxu0 0.0
    %1546 = vmatpush1.xpose.msra.mxu0 0.0
    %1547 = vmatprep.subr.mxu0 0.0
    %1548 = vmatpush1.xpose.msra.mxu0 0.0
    %1549 = vmatprep.subr.mxu0 0.0
    %1550 = vmatpush1.xpose.msra.mxu0 0.0
    %1551 = vmatprep.subr.mxu0 0.0
    %1552 = vmatpush1.xpose.msra.mxu0 0.0
    %1553 = vmatprep.subr.mxu0 0.0
    %1554 = vmatpush1.xpose.msra.mxu0 0.0
    %1555 = vmatprep.subr.mxu0 0.0
    %1556 = vmatpush1.xpose.msra.mxu0 0.0
    %1557 = vmatprep.subr.mxu0 0.0
    %1558 = vmatpush1.xpose.msra.mxu0 0.0
    %1559 = vmatprep.mubr.f32.mxu0 0.0
    %1560 = vmatmul.mubr.f32.gmra.mrb[0].mxu0 %v1483
    %v1561 = vpop.f32.mrb[0].mxu0
    %v1562 = vadd.f32 %v70, %v1561
    %v1563 = vpop.f32.mrb[0].mxu0
    %1564 = vmatprep.mubr.f32.mxu0 0.0
    %1565 = vmatmul.mubr.f32.gmra.mrb[0].mxu0 %v1485
    %v1566 = vpop.f32.mrb[0].mxu0
    %v1567 = vadd.f32 %v71, %v1566
    %v1568 = vpop.f32.mrb[0].mxu0
    %1569 = vmatprep.mubr.f32.mxu0 0.0
    %1570 = vmatmul.mubr.f32.gmra.mrb[0].mxu0 %v1487
    %v1571 = vpop.f32.mrb[0].mxu0
    %v1572 = vadd.f32 %v72, %v1571
    %v1573 = vpop.f32.mrb[0].mxu0
    %1574 = vdwg.mxu0
    %v1575 = vsel %vm594, %v1562, -inf
    %1576 = vmax.xlane.f32.xlu0 %v1575
    %v1577 = vpop.xlane.xlu0 %1576
    %v1578 = vsel %vm594, %v1567, -inf
    %1579 = vmax.xlane.f32.xlu0 %v1578
    %v1580 = vpop.xlane.xlu0 %1579
    %v1581 = vsel %vm601, %v1572, -inf
    %1582 = vmax.xlane.f32.xlu0 %v1581
    %v1583 = vpop.xlane.xlu0 %1582
    %v1584 = vsub.f32 %v1562, %v1577
    %v1585 = vsub.f32 %v1567, %v1580
    %v1586 = vsub.f32 %v1572, %v1583
    %v1587 = vmul.f32 %v1584, 1.442695
    %v1588 = vpow.pop %v1587
    %v1589 = vmul.f32 %v1585, 1.442695
    %v1590 = vpow.pop %v1589
    %v1591 = vmul.f32 %v1586, 1.442695
    %v1592 = vpow.pop %v1591
    %v1593 = vsel %vm594, %v1588, 0.0
    %1594 = vadd.xlane.f32.xlu0 %v1593
    %v1595 = vpop.xlane.xlu0 %1594
    %v1596 = vsel %vm594, %v1590, 0.0
    %1597 = vadd.xlane.f32.xlu0 %v1596
    %v1598 = vpop.xlane.xlu0 %1597
    %v1599 = vsel %vm601, %v1592, 0.0
    %1600 = vadd.xlane.f32.xlu0 %v1599
    %v1601 = vpop.xlane.xlu0 %1600
    %v1602 = vrcp.pop %v1595
    %v1603 = vrcp.pop %v1598
    %v1604 = vrcp.pop %v1601
    %v1605 = vmul.f32 %v1588, %v1602
    %v1606 = vmul.f32 %v1590, %v1603
    %v1607 = vmul.f32 %v1592, %v1604
    %1608 = vrot.lane.b32.xlu0 %v479, 40
    %v1609 = vpop.permute.xlu0 %1608
    %1610 = vrot.lane.b32.xlu0 %v484, 40
    %v1611 = vpop.permute.xlu0 %1610
    %1612 = vrot.lane.b32.xlu0 %v489, 40
    %v1613 = vpop.permute.xlu0 %1612
    %v1617 = vsel %vm594, %v1605, 0
    %v1620 = vsel %vm594, %v1606, 0
    %v1623 = vsel %vm594, %v1607, 0
    %v1625 = vsel %vm646, %v1613, 0
    %1627 = vmatprep.subr.mxu0 0.0
    %1628 = vmatpush1.msra.mxu0 %v1609
    %1629 = vmatprep.subr.mxu0 0.0
    %1630 = vmatpush1.msra.mxu0 %v1611
    %1631 = vmatprep.subr.mxu0 0.0
    %1632 = vmatpush1.msra.mxu0 %v1625
    %1633 = vmatprep.subr.mxu0 0.0
    %1634 = vmatpush1.msra.mxu0 0.0
    %1635 = vmatprep.subr.mxu0 0.0
    %1636 = vmatpush1.msra.mxu0 0.0
    %1637 = vmatprep.subr.mxu0 0.0
    %1638 = vmatpush1.msra.mxu0 0.0
    %1639 = vmatprep.subr.mxu0 0.0
    %1640 = vmatpush1.msra.mxu0 0.0
    %1641 = vmatprep.subr.mxu0 0.0
    %1642 = vmatpush1.msra.mxu0 0.0
    %1643 = vmatprep.subr.mxu0 0.0
    %1644 = vmatpush1.msra.mxu0 0.0
    %1645 = vmatprep.subr.mxu0 0.0
    %1646 = vmatpush1.msra.mxu0 0.0
    %1647 = vmatprep.subr.mxu0 0.0
    %1648 = vmatpush1.msra.mxu0 0.0
    %1649 = vmatprep.subr.mxu0 0.0
    %1650 = vmatpush1.msra.mxu0 0.0
    %1651 = vmatprep.subr.mxu0 0.0
    %1652 = vmatpush1.msra.mxu0 0.0
    %1653 = vmatprep.subr.mxu0 0.0
    %1654 = vmatpush1.msra.mxu0 0.0
    %1655 = vmatprep.subr.mxu0 0.0
    %1656 = vmatpush1.msra.mxu0 0.0
    %1657 = vmatprep.subr.mxu0 0.0
    %1658 = vmatpush1.msra.mxu0 0.0
    %1659 = vmatprep.subr.mxu0 0.0
    %1660 = vmatpush1.msra.mxu0 0.0
    %1661 = vmatprep.subr.mxu0 0.0
    %1662 = vmatpush1.msra.mxu0 0.0
    %1663 = vmatprep.subr.mxu0 0.0
    %1664 = vmatpush1.msra.mxu0 0.0
    %1665 = vmatprep.subr.mxu0 0.0
    %1666 = vmatpush1.msra.mxu0 0.0
    %1667 = vmatprep.subr.mxu0 0.0
    %1668 = vmatpush1.msra.mxu0 0.0
    %1669 = vmatprep.subr.mxu0 0.0
    %1670 = vmatpush1.msra.mxu0 0.0
    %1671 = vmatprep.subr.mxu0 0.0
    %1672 = vmatpush1.msra.mxu0 0.0
    %1673 = vmatprep.subr.mxu0 0.0
    %1674 = vmatpush1.msra.mxu0 0.0
    %1675 = vmatprep.subr.mxu0 0.0
    %1676 = vmatpush1.msra.mxu0 0.0
    %1677 = vmatprep.subr.mxu0 0.0
    %1678 = vmatpush1.msra.mxu0 0.0
    %1679 = vmatprep.subr.mxu0 0.0
    %1680 = vmatpush1.msra.mxu0 0.0
    %1681 = vmatprep.subr.mxu0 0.0
    %1682 = vmatpush1.msra.mxu0 0.0
    %1683 = vmatprep.subr.mxu0 0.0
    %1684 = vmatpush1.msra.mxu0 0.0
    %1685 = vmatprep.subr.mxu0 0.0
    %1686 = vmatpush1.msra.mxu0 0.0
    %1687 = vmatprep.subr.mxu0 0.0
    %1688 = vmatpush1.msra.mxu0 0.0
    %1689 = vmatprep.subr.mxu0 0.0
    %1690 = vmatpush1.msra.mxu0 0.0
    %1691 = vmatprep.mubr.f32.mxu0 0.0
    %1692 = vmatmul.mubr.f32.gmra.mrb[0].mxu0 %v1617
    %v1693 = vpop.f32.mrb[0].mxu0
    %v1694 = vadd.f32 0.0, %v1693
    %v1695 = vpop.f32.mrb[0].mxu0
    %1696 = vmatprep.mubr.f32.mxu0 0.0
    %1697 = vmatmul.mubr.f32.gmra.mrb[0].mxu0 %v1620
    %v1698 = vpop.f32.mrb[0].mxu0
    %v1699 = vadd.f32 0.0, %v1698
    %v1700 = vpop.f32.mrb[0].mxu0
    %1701 = vmatprep.mubr.f32.mxu0 0.0
    %1702 = vmatmul.mubr.f32.gmra.mrb[0].mxu0 %v1623
    %v1703 = vpop.f32.mrb[0].mxu0
    %v1704 = vadd.f32 0.0, %v1703
    %v1705 = vpop.f32.mrb[0].mxu0
    %1706 = vdwg.mxu0
    %v1708 = vsel %vm501, %v1694, 0
    %v1711 = vsel %vm501, %v1699, 0
    %v1714 = vsel %vm501, %v1704, 0
    %1716 = vmatprep.subr.mxu0 0.0
    %1717 = vmatpush1.msra.mxu0 %v389
    %1718 = vmatprep.subr.mxu0 0.0
    %1719 = vmatpush1.msra.mxu0 0.0
    %1720 = vmatprep.subr.mxu0 0.0
    %1721 = vmatpush1.msra.mxu0 0.0
    %1722 = vmatprep.subr.mxu0 0.0
    %1723 = vmatpush1.msra.mxu0 0.0
    %1724 = vmatprep.subr.mxu0 0.0
    %1725 = vmatpush1.msra.mxu0 0.0
    %1726 = vmatprep.subr.mxu0 0.0
    %1727 = vmatpush1.msra.mxu0 0.0
    %1728 = vmatprep.subr.mxu0 0.0
    %1729 = vmatpush1.msra.mxu0 0.0
    %1730 = vmatprep.subr.mxu0 0.0
    %1731 = vmatpush1.msra.mxu0 0.0
    %1732 = vmatprep.subr.mxu0 0.0
    %1733 = vmatpush1.msra.mxu0 0.0
    %1734 = vmatprep.subr.mxu0 0.0
    %1735 = vmatpush1.msra.mxu0 0.0
    %1736 = vmatprep.subr.mxu0 0.0
    %1737 = vmatpush1.msra.mxu0 0.0
    %1738 = vmatprep.subr.mxu0 0.0
    %1739 = vmatpush1.msra.mxu0 0.0
    %1740 = vmatprep.subr.mxu0 0.0
    %1741 = vmatpush1.msra.mxu0 0.0
    %1742 = vmatprep.subr.mxu0 0.0
    %1743 = vmatpush1.msra.mxu0 0.0
    %1744 = vmatprep.subr.mxu0 0.0
    %1745 = vmatpush1.msra.mxu0 0.0
    %1746 = vmatprep.subr.mxu0 0.0
    %1747 = vmatpush1.msra.mxu0 0.0
    %1748 = vmatprep.subr.mxu0 0.0
    %1749 = vmatpush1.msra.mxu0 0.0
    %1750 = vmatprep.subr.mxu0 0.0
    %1751 = vmatpush1.msra.mxu0 0.0
    %1752 = vmatprep.subr.mxu0 0.0
    %1753 = vmatpush1.msra.mxu0 0.0
    %1754 = vmatprep.subr.mxu0 0.0
    %1755 = vmatpush1.msra.mxu0 0.0
    %1756 = vmatprep.subr.mxu0 0.0
    %1757 = vmatpush1.msra.mxu0 0.0
    %1758 = vmatprep.subr.mxu0 0.0
    %1759 = vmatpush1.msra.mxu0 0.0
    %1760 = vmatprep.subr.mxu0 0.0
    %1761 = vmatpush1.msra.mxu0 0.0
    %1762 = vmatprep.subr.mxu0 0.0
    %1763 = vmatpush1.msra.mxu0 0.0
    %1764 = vmatprep.subr.mxu0 0.0
    %1765 = vmatpush1.msra.mxu0 0.0
    %1766 = vmatprep.subr.mxu0 0.0
    %1767 = vmatpush1.msra.mxu0 0.0
    %1768 = vmatprep.subr.mxu0 0.0
    %1769 = vmatpush1.msra.mxu0 0.0
    %1770 = vmatprep.subr.mxu0 0.0
    %1771 = vmatpush1.msra.mxu0 0.0
    %1772 = vmatprep.subr.mxu0 0.0
    %1773 = vmatpush1.msra.mxu0 0.0
    %1774 = vmatprep.subr.mxu0 0.0
    %1775 = vmatpush1.msra.mxu0 0.0
    %1776 = vmatprep.subr.mxu0 0.0
    %1777 = vmatpush1.msra.mxu0 0.0
    %1778 = vmatprep.subr.mxu0 0.0
    %1779 = vmatpush1.msra.mxu0 0.0
    %1780 = vmatprep.mubr.f32.mxu0 0.0
    %1781 = vmatmul.mubr.f32.gmra.mrb[0].mxu0 %v1708
    %v1782 = vpop.f32.mrb[0].mxu0
    %v1783 = vadd.f32 0.0, %v1782
    %v1784 = vpop.f32.mrb[0].mxu0
    %1785 = vmatprep.mubr.f32.mxu0 0.0
    %1786 = vmatmul.mubr.f32.gmra.mrb[0].mxu0 %v1711
    %v1787 = vpop.f32.mrb[0].mxu0
    %v1788 = vadd.f32 0.0, %v1787
    %v1789 = vpop.f32.mrb[0].mxu0
    %1790 = vmatprep.mubr.f32.mxu0 0.0
    %1791 = vmatmul.mubr.f32.gmra.mrb[0].mxu0 %v1714
    %v1792 = vpop.f32.mrb[0].mxu0
    %v1793 = vadd.f32 0.0, %v1792
    %v1794 = vpop.f32.mrb[0].mxu0
    %1795 = vdwg.mxu0
    %v1796 = vadd.f32 %v1468, %v1783
    %v1797 = vadd.f32 %v1469, %v1788
    %v1798 = vadd.f32 %v1470, %v1793
    %v1799 = vadd.f32 %v375, %v1796
    %v1800 = vadd.f32 %v376, %v1797
    %v1801 = vadd.f32 %v377, %v1798
    %v1802 = vlaneseq
    %v1803 = vshrl.u32 %v1802, 7
    %v1804 = vsub.s32 1, %v1803
    %v1805 = vrot.slane %v398, %v1804
    %v1806 = vadd.f32 %v1799, %v1805
    %v1807 = vadd.f32 %v1800, %v1805
    %v1808 = vadd.f32 %v1801, %v1805
    %v1809 = vsel %vm85, %v1806, 0.0
    %1810 = vadd.xlane.f32.xlu0 %v1809
    %v1811 = vpop.xlane.xlu0 %1810
    %v1812 = vsel %vm85, %v1807, 0.0
    %1813 = vadd.xlane.f32.xlu0 %v1812
    %v1814 = vpop.xlane.xlu0 %1813
    %vm1815 = vcmask 257024
    %v1816 = vsel %vm1815, %v1808, 0.0
    %1817 = vadd.xlane.f32.xlu0 %v1816
    %v1818 = vpop.xlane.xlu0 %1817
    %v1819 = vrcp.pop 32.0
    %v1820 = vmul.f32 %v1811, %v1819
    %v1821 = vmul.f32 %v1814, %v1819
    %v1822 = vmul.f32 %v1818, %v1819
    %v1823 = vsub.f32 %v1806, %v1820
    %v1824 = vsub.f32 %v1807, %v1821
    %v1825 = vsub.f32 %v1808, %v1822
    %v1826 = vmul.f32 %v1823, %v1823
    %v1827 = vmul.f32 %v1824, %v1824
    %v1828 = vmul.f32 %v1825, %v1825
    %v1829 = vsel %vm85, %v1826, 0.0
    %1830 = vadd.xlane.f32.xlu0 %v1829
    %v1831 = vpop.xlane.xlu0 %1830
    %v1832 = vsel %vm85, %v1827, 0.0
    %1833 = vadd.xlane.f32.xlu0 %v1832
    %v1834 = vpop.xlane.xlu0 %1833
    %v1835 = vsel %vm1815, %v1828, 0.0
    %1836 = vadd.xlane.f32.xlu0 %v1835
    %v1837 = vpop.xlane.xlu0 %1836
    %v1838 = vmul.f32 %v1831, %v1819
    %v1839 = vmul.f32 %v1834, %v1819
    %v1840 = vmul.f32 %v1837, %v1819
    %v1841 = vadd.f32 %v1838, 1e-05
    %v1842 = vadd.f32 %v1839, 1e-05
    %v1843 = vadd.f32 %v1840, 1e-05
    %v1844 = vrsqrt.pop %v1841
    %v1845 = vrsqrt.pop %v1842
    %v1846 = vrsqrt.pop %v1843
    %v1847 = vmul.f32 %v1823, %v1844
    %v1848 = vmul.f32 %v1824, %v1845
    %v1849 = vmul.f32 %v1825, %v1846
    %v1850 = vlaneseq
    %v1851 = vshrl.u32 %v1850, 7
    %v1852 = vsub.s32 2, %v1851
    %v1853 = vrot.slane %v398, %v1852
    %v1854 = vmul.f32 %v1847, %v1853
    %v1855 = vmul.f32 %v1848, %v1853
    %v1856 = vmul.f32 %v1849, %v1853
    %v1857 = vlaneseq
    %v1858 = vshrl.u32 %v1857, 7
    %v1859 = vsub.s32 3, %v1858
    %v1860 = vrot.slane %v398, %v1859
    %v1861 = vadd.f32 %v1854, %v1860
    %v1862 = vadd.f32 %v1855, %v1860
    %v1863 = vadd.f32 %v1856, %v1860
    %v1864 = vlaneseq
    %v1865 = vshrl.u32 %v1864, 7
    %v1866 = vsub.s32 4, %v1865
    %v1867 = vrot.slane %v398, %v1866
    %v1869 = vsel %vm85, %v1861, 0
    %v1872 = vsel %vm85, %v1862, 0
    %v1875 = vsel %vm85, %v1863, 0
    %1877 = vmatprep.subr.mxu0 0.0
    %1878 = vmatpush1.msra.mxu0 %v382
    %1879 = vmatprep.subr.mxu0 0.0
    %1880 = vmatpush1.msra.mxu0 %v383
    %1881 = vmatprep.subr.mxu0 0.0
    %1882 = vmatpush1.msra.mxu0 %v384
    %1883 = vmatprep.subr.mxu0 0.0
    %1884 = vmatpush1.msra.mxu0 %v385
    %1885 = vmatprep.subr.mxu0 0.0
    %1886 = vmatpush1.msra.mxu0 0.0
    %1887 = vmatprep.subr.mxu0 0.0
    %1888 = vmatpush1.msra.mxu0 0.0
    %1889 = vmatprep.subr.mxu0 0.0
    %1890 = vmatpush1.msra.mxu0 0.0
    %1891 = vmatprep.subr.mxu0 0.0
    %1892 = vmatpush1.msra.mxu0 0.0
    %1893 = vmatprep.subr.mxu0 0.0
    %1894 = vmatpush1.msra.mxu0 0.0
    %1895 = vmatprep.subr.mxu0 0.0
    %1896 = vmatpush1.msra.mxu0 0.0
    %1897 = vmatprep.subr.mxu0 0.0
    %1898 = vmatpush1.msra.mxu0 0.0
    %1899 = vmatprep.subr.mxu0 0.0
    %1900 = vmatpush1.msra.mxu0 0.0
    %1901 = vmatprep.subr.mxu0 0.0
    %1902 = vmatpush1.msra.mxu0 0.0
    %1903 = vmatprep.subr.mxu0 0.0
    %1904 = vmatpush1.msra.mxu0 0.0
    %1905 = vmatprep.subr.mxu0 0.0
    %1906 = vmatpush1.msra.mxu0 0.0
    %1907 = vmatprep.subr.mxu0 0.0
    %1908 = vmatpush1.msra.mxu0 0.0
    %1909 = vmatprep.subr.mxu0 0.0
    %1910 = vmatpush1.msra.mxu0 0.0
    %1911 = vmatprep.subr.mxu0 0.0
    %1912 = vmatpush1.msra.mxu0 0.0
    %1913 = vmatprep.subr.mxu0 0.0
    %1914 = vmatpush1.msra.mxu0 0.0
    %1915 = vmatprep.subr.mxu0 0.0
    %1916 = vmatpush1.msra.mxu0 0.0
    %1917 = vmatprep.subr.mxu0 0.0
    %1918 = vmatpush1.msra.mxu0 0.0
    %1919 = vmatprep.subr.mxu0 0.0
    %1920 = vmatpush1.msra.mxu0 0.0
    %1921 = vmatprep.subr.mxu0 0.0
    %1922 = vmatpush1.msra.mxu0 0.0
    %1923 = vmatprep.subr.mxu0 0.0
    %1924 = vmatpush1.msra.mxu0 0.0
    %1925 = vmatprep.subr.mxu0 0.0
    %1926 = vmatpush1.msra.mxu0 0.0
    %1927 = vmatprep.subr.mxu0 0.0
    %1928 = vmatpush1.msra.mxu0 0.0
    %1929 = vmatprep.subr.mxu0 0.0
    %1930 = vmatpush1.msra.mxu0 0.0
    %1931 = vmatprep.subr.mxu0 0.0
    %1932 = vmatpush1.msra.mxu0 0.0
    %1933 = vmatprep.subr.mxu0 0.0
    %1934 = vmatpush1.msra.mxu0 0.0
    %1935 = vmatprep.subr.mxu0 0.0
    %1936 = vmatpush1.msra.mxu0 0.0
    %1937 = vmatprep.subr.mxu0 0.0
    %1938 = vmatpush1.msra.mxu0 0.0
    %1939 = vmatprep.subr.mxu0 0.0
    %1940 = vmatpush1.msra.mxu0 0.0
    %1941 = vmatprep.mubr.f32.mxu0 0.0
    %1942 = vmatmul.mubr.f32.gmra.mrb[0].mxu0 %v1869
    %v1943 = vpop.f32.mrb[0].mxu0
    %v1944 = vadd.f32 %v1867, %v1943
    %v1945 = vpop.f32.mrb[0].mxu0
    %1946 = vmatprep.mubr.f32.mxu0 0.0
    %1947 = vmatmul.mubr.f32.gmra.mrb[0].mxu0 %v1872
    %v1948 = vpop.f32.mrb[0].mxu0
    %v1949 = vadd.f32 %v1867, %v1948
    %v1950 = vpop.f32.mrb[0].mxu0
    %1951 = vmatprep.mubr.f32.mxu0 0.0
    %1952 = vmatmul.mubr.f32.gmra.mrb[0].mxu0 %v1875
    %v1953 = vpop.f32.mrb[0].mxu0
    %v1954 = vadd.f32 %v1867, %v1953
    %v1955 = vpop.f32.mrb[0].mxu0
    %1956 = vdwg.mxu0
    %v1957 = vmax.f32 %v1944, 0.0
    %v1958 = vmax.f32 %v1949, 0.0
    %v1959 = vmax.f32 %v1954, 0.0
    %v1960 = vlaneseq
    %v1961 = vshrl.u32 %v1960, 7
    %v1962 = vsub.s32 5, %v1961
    %v1963 = vrot.slane %v398, %v1962
    %vm1964 = vcmask 523264
    %v1966 = vsel %vm1964, %v1957, 0
    %v1969 = vsel %vm1964, %v1958, 0
    %v1972 = vsel %vm1964, %v1959, 0
    %1974 = vmatprep.subr.mxu0 0.0
    %1975 = vmatpush1.msra.mxu0 %v390
    %1976 = vmatprep.subr.mxu0 0.0
    %1977 = vmatpush1.msra.mxu0 %v391
    %1978 = vmatprep.subr.mxu0 0.0
    %1979 = vmatpush1.msra.mxu0 %v392
    %1980 = vmatprep.subr.mxu0 0.0
    %1981 = vmatpush1.msra.mxu0 %v393
    %1982 = vmatprep.subr.mxu0 0.0
    %1983 = vmatpush1.msra.mxu0 %v394
    %1984 = vmatprep.subr.mxu0 0.0
    %1985 = vmatpush1.msra.mxu0 %v395
    %1986 = vmatprep.subr.mxu0 0.0
    %1987 = vmatpush1.msra.mxu0 %v396
    %1988 = vmatprep.subr.mxu0 0.0
    %1989 = vmatpush1.msra.mxu0 %v397
    %1990 = vmatprep.subr.mxu0 0.0
    %1991 = vmatpush1.msra.mxu0 0.0
    %1992 = vmatprep.subr.mxu0 0.0
    %1993 = vmatpush1.msra.mxu0 0.0
    %1994 = vmatprep.subr.mxu0 0.0
    %1995 = vmatpush1.msra.mxu0 0.0
    %1996 = vmatprep.subr.mxu0 0.0
    %1997 = vmatpush1.msra.mxu0 0.0
    %1998 = vmatprep.subr.mxu0 0.0
    %1999 = vmatpush1.msra.mxu0 0.0
    %2000 = vmatprep.subr.mxu0 0.0
    %2001 = vmatpush1.msra.mxu0 0.0
    %2002 = vmatprep.subr.mxu0 0.0
    %2003 = vmatpush1.msra.mxu0 0.0
    %2004 = vmatprep.subr.mxu0 0.0
    %2005 = vmatpush1.msra.mxu0 0.0
    %2006 = vmatprep.subr.mxu0 0.0
    %2007 = vmatpush1.msra.mxu0 0.0
    %2008 = vmatprep.subr.mxu0 0.0
    %2009 = vmatpush1.msra.mxu0 0.0
    %2010 = vmatprep.subr.mxu0 0.0
    %2011 = vmatpush1.msra.mxu0 0.0
    %2012 = vmatprep.subr.mxu0 0.0
    %2013 = vmatpush1.msra.mxu0 0.0
    %2014 = vmatprep.subr.mxu0 0.0
    %2015 = vmatpush1.msra.mxu0 0.0
    %2016 = vmatprep.subr.mxu0 0.0
    %2017 = vmatpush1.msra.mxu0 0.0
    %2018 = vmatprep.subr.mxu0 0.0
    %2019 = vmatpush1.msra.mxu0 0.0
    %2020 = vmatprep.subr.mxu0 0.0
    %2021 = vmatpush1.msra.mxu0 0.0
    %2022 = vmatprep.subr.mxu0 0.0
    %2023 = vmatpush1.msra.mxu0 0.0
    %2024 = vmatprep.subr.mxu0 0.0
    %2025 = vmatpush1.msra.mxu0 0.0
    %2026 = vmatprep.subr.mxu0 0.0
    %2027 = vmatpush1.msra.mxu0 0.0
    %2028 = vmatprep.subr.mxu0 0.0
    %2029 = vmatpush1.msra.mxu0 0.0
    %2030 = vmatprep.subr.mxu0 0.0
    %2031 = vmatpush1.msra.mxu0 0.0
    %2032 = vmatprep.subr.mxu0 0.0
    %2033 = vmatpush1.msra.mxu0 0.0
    %2034 = vmatprep.subr.mxu0 0.0
    %2035 = vmatpush1.msra.mxu0 0.0
    %2036 = vmatprep.subr.mxu0 0.0
    %2037 = vmatpush1.msra.mxu0 0.0
    %2038 = vmatprep.mubr.f32.mxu0 0.0
    %2039 = vmatmul.mubr.f32.gmra.mrb[0].mxu0 %v1966
    %v2040 = vpop.f32.mrb[0].mxu0
    %v2041 = vadd.f32 %v1963, %v2040
    %v2042 = vpop.f32.mrb[0].mxu0
    %2043 = vmatprep.mubr.f32.mxu0 0.0
    %2044 = vmatmul.mubr.f32.gmra.mrb[0].mxu0 %v1969
    %v2045 = vpop.f32.mrb[0].mxu0
    %v2046 = vadd.f32 %v1963, %v2045
    %v2047 = vpop.f32.mrb[0].mxu0
    %2048 = vmatprep.mubr.f32.mxu0 0.0
    %2049 = vmatmul.mubr.f32.gmra.mrb[0].mxu0 %v1972
    %v2050 = vpop.f32.mrb[0].mxu0
    %v2051 = vadd.f32 %v1963, %v2050
    %v2052 = vpop.f32.mrb[0].mxu0
    %2053 = vdwg.mxu0
    %v2054 = vadd.f32 %v1861, %v2041
    %v2055 = vadd.f32 %v1862, %v2046
    %v2056 = vadd.f32 %v1863, %v2051
    %v2057 = vsel %vm85, %v2054, 0.0
    %2058 = vadd.xlane.f32.xlu0 %v2057
    %v2059 = vpop.xlane.xlu0 %2058
    %v2060 = vsel %vm85, %v2055, 0.0
    %2061 = vadd.xlane.f32.xlu0 %v2060
    %v2062 = vpop.xlane.xlu0 %2061
    %v2063 = vsel %vm1815, %v2056, 0.0
    %2064 = vadd.xlane.f32.xlu0 %v2063
    %v2065 = vpop.xlane.xlu0 %2064
    %v2066 = vmul.f32 %v2059, %v1819
    %v2067 = vmul.f32 %v2062, %v1819
    %v2068 = vmul.f32 %v2065, %v1819
    %v2069 = vsub.f32 %v2054, %v2066
    %v2070 = vsub.f32 %v2055, %v2067
    %v2071 = vsub.f32 %v2056, %v2068
    %v2072 = vmul.f32 %v2069, %v2069
    %v2073 = vmul.f32 %v2070, %v2070
    %v2074 = vmul.f32 %v2071, %v2071
    %v2075 = vsel %vm85, %v2072, 0.0
    %2076 = vadd.xlane.f32.xlu0 %v2075
    %v2077 = vpop.xlane.xlu0 %2076
    %v2078 = vsel %vm85, %v2073, 0.0
    %2079 = vadd.xlane.f32.xlu0 %v2078
    %v2080 = vpop.xlane.xlu0 %2079
    %v2081 = vsel %vm1815, %v2074, 0.0
    %2082 = vadd.xlane.f32.xlu0 %v2081
    %v2083 = vpop.xlane.xlu0 %2082
    %v2084 = vmul.f32 %v2077, %v1819
    %v2085 = vmul.f32 %v2080, %v1819
    %v2086 = vmul.f32 %v2083, %v1819
    %v2087 = vadd.f32 %v2084, 1e-05
    %v2088 = vadd.f32 %v2085, 1e-05
    %v2089 = vadd.f32 %v2086, 1e-05
    %v2090 = vrsqrt.pop %v2087
    %v2091 = vrsqrt.pop %v2088
    %v2092 = vrsqrt.pop %v2089
    %v2093 = vmul.f32 %v2069, %v2090
    %v2094 = vmul.f32 %v2070, %v2091
    %v2095 = vmul.f32 %v2071, %v2092
    %v2096 = vlaneseq
    %v2097 = vshrl.u32 %v2096, 7
    %v2098 = vsub.s32 6, %v2097
    %v2099 = vrot.slane %v398, %v2098
    %v2100 = vmul.f32 %v2093, %v2099
    %v2101 = vmul.f32 %v2094, %v2099
    %v2102 = vmul.f32 %v2095, %v2099
    %v2103 = vlaneseq
    %v2104 = vshrl.u32 %v2103, 7
    %v2105 = vsub.s32 7, %v2104
    %v2106 = vrot.slane %v398, %v2105
    %v2107 = vadd.f32 %v2100, %v2106
    %v2108 = vadd.f32 %v2101, %v2106
    %v2109 = vadd.f32 %v2102, %v2106
    %s2110 = scalar_lea.vmem %s3, 32
    %v2111 = vld [vmem:[%s2110] sm:$0xff]
    %v2112 = vld [vmem:[%s2110 + $0x8] sm:$0xff]
    %v2113 = vld [vmem:[%s2110 + $0x10] sm:$0xff]
    %v2114 = vld [vmem:[%s2110 + $0x18] sm:$0xff]
    %s2115 = scalar_lea.vmem [#allocation2], 32
    %v2116 = vld [vmem:[%s2115] sm:$0xff]
    %v2117 = vld [vmem:[%s2115 + $0x8] sm:$0xff]
    %v2118 = vld [vmem:[%s2115 + $0x10] sm:$0xff]
    %v2119 = vld [vmem:[%s2115 + $0x18] sm:$0xff]
    %s2120 = scalar_lea.vmem [#allocation5], 32
    %v2121 = vld [vmem:[%s2120] sm:$0xff]
    %v2122 = vld [vmem:[%s2120 + $0x8] sm:$0xff]
    %v2123 = vld [vmem:[%s2120 + $0x10] sm:$0xff]
    %v2124 = vld [vmem:[%s2120 + $0x18] sm:$0xff]
    %s2125 = scalar_lea.vmem %s6, 64
    %v2126 = vld [vmem:[%s2125] sm:$0xff]
    %v2127 = vld [vmem:[%s2125 + $0x8] sm:$0xff]
    %v2128 = vld [vmem:[%s2125 + $0x10] sm:$0xff]
    %v2129 = vld [vmem:[%s2125 + $0x18] sm:$0xff]
    %v2130 = vld [vmem:[%s2125 + $0x20] sm:$0xff]
    %v2131 = vld [vmem:[%s2125 + $0x28] sm:$0xff]
    %v2132 = vld [vmem:[%s2125 + $0x30] sm:$0xff]
    %v2133 = vld [vmem:[%s2125 + $0x38] sm:$0xff]
    %s2134 = scalar_lea.vmem %s7, 8
    %v2135 = vld [vmem:[%s2134] sm:$0xff]
    %v2136 = vlaneseq
    %v2137 = vshrl.u32 %v2136, 7
    %v2138 = vsub.s32 0, %v2137
    %v2139 = vrot.slane %v2135, %v2138
    %v2141 = vsel %vm85, %v2107, 0
    %v2144 = vsel %vm85, %v2108, 0
    %v2147 = vsel %vm85, %v2109, 0
    %2149 = vmatprep.subr.mxu0 0.0
    %2150 = vmatpush1.msra.mxu0 %v2111
    %2151 = vmatprep.subr.mxu0 0.0
    %2152 = vmatpush1.msra.mxu0 %v2112
    %2153 = vmatprep.subr.mxu0 0.0
    %2154 = vmatpush1.msra.mxu0 %v2113
    %2155 = vmatprep.subr.mxu0 0.0
    %2156 = vmatpush1.msra.mxu0 %v2114
    %2157 = vmatprep.subr.mxu0 0.0
    %2158 = vmatpush1.msra.mxu0 0.0
    %2159 = vmatprep.subr.mxu0 0.0
    %2160 = vmatpush1.msra.mxu0 0.0
    %2161 = vmatprep.subr.mxu0 0.0
    %2162 = vmatpush1.msra.mxu0 0.0
    %2163 = vmatprep.subr.mxu0 0.0
    %2164 = vmatpush1.msra.mxu0 0.0
    %2165 = vmatprep.subr.mxu0 0.0
    %2166 = vmatpush1.msra.mxu0 0.0
    %2167 = vmatprep.subr.mxu0 0.0
    %2168 = vmatpush1.msra.mxu0 0.0
    %2169 = vmatprep.subr.mxu0 0.0
    %2170 = vmatpush1.msra.mxu0 0.0
    %2171 = vmatprep.subr.mxu0 0.0
    %2172 = vmatpush1.msra.mxu0 0.0
    %2173 = vmatprep.subr.mxu0 0.0
    %2174 = vmatpush1.msra.mxu0 0.0
    %2175 = vmatprep.subr.mxu0 0.0
    %2176 = vmatpush1.msra.mxu0 0.0
    %2177 = vmatprep.subr.mxu0 0.0
    %2178 = vmatpush1.msra.mxu0 0.0
    %2179 = vmatprep.subr.mxu0 0.0
    %2180 = vmatpush1.msra.mxu0 0.0
    %2181 = vmatprep.subr.mxu0 0.0
    %2182 = vmatpush1.msra.mxu0 0.0
    %2183 = vmatprep.subr.mxu0 0.0
    %2184 = vmatpush1.msra.mxu0 0.0
    %2185 = vmatprep.subr.mxu0 0.0
    %2186 = vmatpush1.msra.mxu0 0.0
    %2187 = vmatprep.subr.mxu0 0.0
    %2188 = vmatpush1.msra.mxu0 0.0
    %2189 = vmatprep.subr.mxu0 0.0
    %2190 = vmatpush1.msra.mxu0 0.0
    %2191 = vmatprep.subr.mxu0 0.0
    %2192 = vmatpush1.msra.mxu0 0.0
    %2193 = vmatprep.subr.mxu0 0.0
    %2194 = vmatpush1.msra.mxu0 0.0
    %2195 = vmatprep.subr.mxu0 0.0
    %2196 = vmatpush1.msra.mxu0 0.0
    %2197 = vmatprep.subr.mxu0 0.0
    %2198 = vmatpush1.msra.mxu0 0.0
    %2199 = vmatprep.subr.mxu0 0.0
    %2200 = vmatpush1.msra.mxu0 0.0
    %2201 = vmatprep.subr.mxu0 0.0
    %2202 = vmatpush1.msra.mxu0 0.0
    %2203 = vmatprep.subr.mxu0 0.0
    %2204 = vmatpush1.msra.mxu0 0.0
    %2205 = vmatprep.subr.mxu0 0.0
    %2206 = vmatpush1.msra.mxu0 0.0
    %2207 = vmatprep.subr.mxu0 0.0
    %2208 = vmatpush1.msra.mxu0 0.0
    %2209 = vmatprep.subr.mxu0 0.0
    %2210 = vmatpush1.msra.mxu0 0.0
    %2211 = vmatprep.subr.mxu0 0.0
    %2212 = vmatpush1.msra.mxu0 0.0
    %2213 = vmatprep.mubr.f32.mxu0 0.0
    %2214 = vmatmul.mubr.f32.gmra.mrb[0].mxu0 %v2141
    %v2215 = vpop.f32.mrb[0].mxu0
    %v2216 = vadd.f32 %v2139, %v2215
    %v2217 = vpop.f32.mrb[0].mxu0
    %2218 = vmatprep.mubr.f32.mxu0 0.0
    %2219 = vmatmul.mubr.f32.gmra.mrb[0].mxu0 %v2144
    %v2220 = vpop.f32.mrb[0].mxu0
    %v2221 = vadd.f32 %v2139, %v2220
    %v2222 = vpop.f32.mrb[0].mxu0
    %2223 = vmatprep.mubr.f32.mxu0 0.0
    %2224 = vmatmul.mubr.f32.gmra.mrb[0].mxu0 %v2147
    %v2225 = vpop.f32.mrb[0].mxu0
    %v2226 = vadd.f32 %v2139, %v2225
    %v2227 = vpop.f32.mrb[0].mxu0
    %2228 = vdwg.mxu0
    %2232 = vrot.lane.b32.xlu0 %v2216, 96
    %v2233 = vpop.permute.xlu0 %2232
    %2234 = vrot.lane.b32.xlu0 %v2221, 96
    %v2235 = vpop.permute.xlu0 %2234
    %2236 = vrot.lane.b32.xlu0 %v2226, 96
    %v2237 = vpop.permute.xlu0 %2236
    %v2238 = vsel %vm501, %v2216, 0
    %v2240 = vsel %vm501, %v2221, 0
    %v2242 = vsel %vm501, %v2226, 0
    %v2244 = vsel %vm501, %v2233, 0
    %v2246 = vsel %vm501, %v2235, 0
    %v2248 = vsel %vm501, %v2237, 0
    %2250 = vmatprep.subr.mxu0 0.0
    %2251 = vmatpush1.xpose.msra.mxu0 %v2244
    %2252 = vmatprep.subr.mxu0 0.0
    %2253 = vmatpush1.xpose.msra.mxu0 %v2246
    %2254 = vmatprep.subr.mxu0 0.0
    %2255 = vmatpush1.xpose.msra.mxu0 %v2248
    %2256 = vmatprep.subr.mxu0 0.0
    %2257 = vmatpush1.xpose.msra.mxu0 0.0
    %2258 = vmatprep.subr.mxu0 0.0
    %2259 = vmatpush1.xpose.msra.mxu0 0.0
    %2260 = vmatprep.subr.mxu0 0.0
    %2261 = vmatpush1.xpose.msra.mxu0 0.0
    %2262 = vmatprep.subr.mxu0 0.0
    %2263 = vmatpush1.xpose.msra.mxu0 0.0
    %2264 = vmatprep.subr.mxu0 0.0
    %2265 = vmatpush1.xpose.msra.mxu0 0.0
    %2266 = vmatprep.subr.mxu0 0.0
    %2267 = vmatpush1.xpose.msra.mxu0 0.0
    %2268 = vmatprep.subr.mxu0 0.0
    %2269 = vmatpush1.xpose.msra.mxu0 0.0
    %2270 = vmatprep.subr.mxu0 0.0
    %2271 = vmatpush1.xpose.msra.mxu0 0.0
    %2272 = vmatprep.subr.mxu0 0.0
    %2273 = vmatpush1.xpose.msra.mxu0 0.0
    %2274 = vmatprep.subr.mxu0 0.0
    %2275 = vmatpush1.xpose.msra.mxu0 0.0
    %2276 = vmatprep.subr.mxu0 0.0
    %2277 = vmatpush1.xpose.msra.mxu0 0.0
    %2278 = vmatprep.subr.mxu0 0.0
    %2279 = vmatpush1.xpose.msra.mxu0 0.0
    %2280 = vmatprep.subr.mxu0 0.0
    %2281 = vmatpush1.xpose.msra.mxu0 0.0
    %2282 = vmatprep.subr.mxu0 0.0
    %2283 = vmatpush1.xpose.msra.mxu0 0.0
    %2284 = vmatprep.subr.mxu0 0.0
    %2285 = vmatpush1.xpose.msra.mxu0 0.0
    %2286 = vmatprep.subr.mxu0 0.0
    %2287 = vmatpush1.xpose.msra.mxu0 0.0
    %2288 = vmatprep.subr.mxu0 0.0
    %2289 = vmatpush1.xpose.msra.mxu0 0.0
    %2290 = vmatprep.subr.mxu0 0.0
    %2291 = vmatpush1.xpose.msra.mxu0 0.0
    %2292 = vmatprep.subr.mxu0 0.0
    %2293 = vmatpush1.xpose.msra.mxu0 0.0
    %2294 = vmatprep.subr.mxu0 0.0
    %2295 = vmatpush1.xpose.msra.mxu0 0.0
    %2296 = vmatprep.subr.mxu0 0.0
    %2297 = vmatpush1.xpose.msra.mxu0 0.0
    %2298 = vmatprep.subr.mxu0 0.0
    %2299 = vmatpush1.xpose.msra.mxu0 0.0
    %2300 = vmatprep.subr.mxu0 0.0
    %2301 = vmatpush1.xpose.msra.mxu0 0.0
    %2302 = vmatprep.subr.mxu0 0.0
    %2303 = vmatpush1.xpose.msra.mxu0 0.0
    %2304 = vmatprep.subr.mxu0 0.0
    %2305 = vmatpush1.xpose.msra.mxu0 0.0
    %2306 = vmatprep.subr.mxu0 0.0
    %2307 = vmatpush1.xpose.msra.mxu0 0.0
    %2308 = vmatprep.subr.mxu0 0.0
    %2309 = vmatpush1.xpose.msra.mxu0 0.0
    %2310 = vmatprep.subr.mxu0 0.0
    %2311 = vmatpush1.xpose.msra.mxu0 0.0
    %2312 = vmatprep.subr.mxu0 0.0
    %2313 = vmatpush1.xpose.msra.mxu0 0.0
    %2314 = vmatprep.mubr.f32.mxu0 0.0
    %2315 = vmatmul.mubr.f32.gmra.mrb[0].mxu0 %v2238
    %v2316 = vpop.f32.mrb[0].mxu0
    %v2317 = vadd.f32 %v70, %v2316
    %v2318 = vpop.f32.mrb[0].mxu0
    %2319 = vmatprep.mubr.f32.mxu0 0.0
    %2320 = vmatmul.mubr.f32.gmra.mrb[0].mxu0 %v2240
    %v2321 = vpop.f32.mrb[0].mxu0
    %v2322 = vadd.f32 %v71, %v2321
    %v2323 = vpop.f32.mrb[0].mxu0
    %2324 = vmatprep.mubr.f32.mxu0 0.0
    %2325 = vmatmul.mubr.f32.gmra.mrb[0].mxu0 %v2242
    %v2326 = vpop.f32.mrb[0].mxu0
    %v2327 = vadd.f32 %v72, %v2326
    %v2328 = vpop.f32.mrb[0].mxu0
    %2329 = vdwg.mxu0
    %v2330 = vsel %vm594, %v2317, -inf
    %2331 = vmax.xlane.f32.xlu0 %v2330
    %v2332 = vpop.xlane.xlu0 %2331
    %v2333 = vsel %vm594, %v2322, -inf
    %2334 = vmax.xlane.f32.xlu0 %v2333
    %v2335 = vpop.xlane.xlu0 %2334
    %v2336 = vsel %vm601, %v2327, -inf
    %2337 = vmax.xlane.f32.xlu0 %v2336
    %v2338 = vpop.xlane.xlu0 %2337
    %v2339 = vsub.f32 %v2317, %v2332
    %v2340 = vsub.f32 %v2322, %v2335
    %v2341 = vsub.f32 %v2327, %v2338
    %v2342 = vmul.f32 %v2339, 1.442695
    %v2343 = vpow.pop %v2342
    %v2344 = vmul.f32 %v2340, 1.442695
    %v2345 = vpow.pop %v2344
    %v2346 = vmul.f32 %v2341, 1.442695
    %v2347 = vpow.pop %v2346
    %v2348 = vsel %vm594, %v2343, 0.0
    %2349 = vadd.xlane.f32.xlu0 %v2348
    %v2350 = vpop.xlane.xlu0 %2349
    %v2351 = vsel %vm594, %v2345, 0.0
    %2352 = vadd.xlane.f32.xlu0 %v2351
    %v2353 = vpop.xlane.xlu0 %2352
    %v2354 = vsel %vm601, %v2347, 0.0
    %2355 = vadd.xlane.f32.xlu0 %v2354
    %v2356 = vpop.xlane.xlu0 %2355
    %v2357 = vrcp.pop %v2350
    %v2358 = vrcp.pop %v2353
    %v2359 = vrcp.pop %v2356
    %v2360 = vmul.f32 %v2343, %v2357
    %v2361 = vmul.f32 %v2345, %v2358
    %v2362 = vmul.f32 %v2347, %v2359
    %2363 = vrot.lane.b32.xlu0 %v2216, 64
    %v2364 = vpop.permute.xlu0 %2363
    %2365 = vrot.lane.b32.xlu0 %v2221, 64
    %v2366 = vpop.permute.xlu0 %2365
    %2367 = vrot.lane.b32.xlu0 %v2226, 64
    %v2368 = vpop.permute.xlu0 %2367
    %v2372 = vsel %vm594, %v2360, 0
    %v2375 = vsel %vm594, %v2361, 0
    %v2378 = vsel %vm594, %v2362, 0
    %v2380 = vsel %vm646, %v2368, 0
    %2382 = vmatprep.subr.mxu0 0.0
    %2383 = vmatpush1.msra.mxu0 %v2364
    %2384 = vmatprep.subr.mxu0 0.0
    %2385 = vmatpush1.msra.mxu0 %v2366
    %2386 = vmatprep.subr.mxu0 0.0
    %2387 = vmatpush1.msra.mxu0 %v2380
    %2388 = vmatprep.subr.mxu0 0.0
    %2389 = vmatpush1.msra.mxu0 0.0
    %2390 = vmatprep.subr.mxu0 0.0
    %2391 = vmatpush1.msra.mxu0 0.0
    %2392 = vmatprep.subr.mxu0 0.0
    %2393 = vmatpush1.msra.mxu0 0.0
    %2394 = vmatprep.subr.mxu0 0.0
    %2395 = vmatpush1.msra.mxu0 0.0
    %2396 = vmatprep.subr.mxu0 0.0
    %2397 = vmatpush1.msra.mxu0 0.0
    %2398 = vmatprep.subr.mxu0 0.0
    %2399 = vmatpush1.msra.mxu0 0.0
    %2400 = vmatprep.subr.mxu0 0.0
    %2401 = vmatpush1.msra.mxu0 0.0
    %2402 = vmatprep.subr.mxu0 0.0
    %2403 = vmatpush1.msra.mxu0 0.0
    %2404 = vmatprep.subr.mxu0 0.0
    %2405 = vmatpush1.msra.mxu0 0.0
    %2406 = vmatprep.subr.mxu0 0.0
    %2407 = vmatpush1.msra.mxu0 0.0
    %2408 = vmatprep.subr.mxu0 0.0
    %2409 = vmatpush1.msra.mxu0 0.0
    %2410 = vmatprep.subr.mxu0 0.0
    %2411 = vmatpush1.msra.mxu0 0.0
    %2412 = vmatprep.subr.mxu0 0.0
    %2413 = vmatpush1.msra.mxu0 0.0
    %2414 = vmatprep.subr.mxu0 0.0
    %2415 = vmatpush1.msra.mxu0 0.0
    %2416 = vmatprep.subr.mxu0 0.0
    %2417 = vmatpush1.msra.mxu0 0.0
    %2418 = vmatprep.subr.mxu0 0.0
    %2419 = vmatpush1.msra.mxu0 0.0
    %2420 = vmatprep.subr.mxu0 0.0
    %2421 = vmatpush1.msra.mxu0 0.0
    %2422 = vmatprep.subr.mxu0 0.0
    %2423 = vmatpush1.msra.mxu0 0.0
    %2424 = vmatprep.subr.mxu0 0.0
    %2425 = vmatpush1.msra.mxu0 0.0
    %2426 = vmatprep.subr.mxu0 0.0
    %2427 = vmatpush1.msra.mxu0 0.0
    %2428 = vmatprep.subr.mxu0 0.0
    %2429 = vmatpush1.msra.mxu0 0.0
    %2430 = vmatprep.subr.mxu0 0.0
    %2431 = vmatpush1.msra.mxu0 0.0
    %2432 = vmatprep.subr.mxu0 0.0
    %2433 = vmatpush1.msra.mxu0 0.0
    %2434 = vmatprep.subr.mxu0 0.0
    %2435 = vmatpush1.msra.mxu0 0.0
    %2436 = vmatprep.subr.mxu0 0.0
    %2437 = vmatpush1.msra.mxu0 0.0
    %2438 = vmatprep.subr.mxu0 0.0
    %2439 = vmatpush1.msra.mxu0 0.0
    %2440 = vmatprep.subr.mxu0 0.0
    %2441 = vmatpush1.msra.mxu0 0.0
    %2442 = vmatprep.subr.mxu0 0.0
    %2443 = vmatpush1.msra.mxu0 0.0
    %2444 = vmatprep.subr.mxu0 0.0
    %2445 = vmatpush1.msra.mxu0 0.0
    %2446 = vmatprep.mubr.f32.mxu0 0.0
    %2447 = vmatmul.mubr.f32.gmra.mrb[0].mxu0 %v2372
    %v2448 = vpop.f32.mrb[0].mxu0
    %v2449 = vadd.f32 0.0, %v2448
    %v2450 = vpop.f32.mrb[0].mxu0
    %2451 = vmatprep.mubr.f32.mxu0 0.0
    %2452 = vmatmul.mubr.f32.gmra.mrb[0].mxu0 %v2375
    %v2453 = vpop.f32.mrb[0].mxu0
    %v2454 = vadd.f32 0.0, %v2453
    %v2455 = vpop.f32.mrb[0].mxu0
    %2456 = vmatprep.mubr.f32.mxu0 0.0
    %2457 = vmatmul.mubr.f32.gmra.mrb[0].mxu0 %v2378
    %v2458 = vpop.f32.mrb[0].mxu0
    %v2459 = vadd.f32 0.0, %v2458
    %v2460 = vpop.f32.mrb[0].mxu0
    %2461 = vdwg.mxu0
    %2462 = vrot.lane.b32.xlu0 %v2216, 120
    %v2463 = vpop.permute.xlu0 %2462
    %2464 = vrot.lane.b32.xlu0 %v2221, 120
    %v2465 = vpop.permute.xlu0 %2464
    %2466 = vrot.lane.b32.xlu0 %v2226, 120
    %v2467 = vpop.permute.xlu0 %2466
    %2468 = vrot.lane.b32.xlu0 %v2216, 88
    %v2469 = vpop.permute.xlu0 %2468
    %2470 = vrot.lane.b32.xlu0 %v2221, 88
    %v2471 = vpop.permute.xlu0 %2470
    %2472 = vrot.lane.b32.xlu0 %v2226, 88
    %v2473 = vpop.permute.xlu0 %2472
    %v2474 = vsel %vm501, %v2463, 0
    %v2476 = vsel %vm501, %v2465, 0
    %v2478 = vsel %vm501, %v2467, 0
    %v2480 = vsel %vm501, %v2469, 0
    %v2482 = vsel %vm501, %v2471, 0
    %v2484 = vsel %vm501, %v2473, 0
    %2486 = vmatprep.subr.mxu0 0.0
    %2487 = vmatpush1.xpose.msra.mxu0 %v2480
    %2488 = vmatprep.subr.mxu0 0.0
    %2489 = vmatpush1.xpose.msra.mxu0 %v2482
    %2490 = vmatprep.subr.mxu0 0.0
    %2491 = vmatpush1.xpose.msra.mxu0 %v2484
    %2492 = vmatprep.subr.mxu0 0.0
    %2493 = vmatpush1.xpose.msra.mxu0 0.0
    %2494 = vmatprep.subr.mxu0 0.0
    %2495 = vmatpush1.xpose.msra.mxu0 0.0
    %2496 = vmatprep.subr.mxu0 0.0
    %2497 = vmatpush1.xpose.msra.mxu0 0.0
    %2498 = vmatprep.subr.mxu0 0.0
    %2499 = vmatpush1.xpose.msra.mxu0 0.0
    %2500 = vmatprep.subr.mxu0 0.0
    %2501 = vmatpush1.xpose.msra.mxu0 0.0
    %2502 = vmatprep.subr.mxu0 0.0
    %2503 = vmatpush1.xpose.msra.mxu0 0.0
    %2504 = vmatprep.subr.mxu0 0.0
    %2505 = vmatpush1.xpose.msra.mxu0 0.0
    %2506 = vmatprep.subr.mxu0 0.0
    %2507 = vmatpush1.xpose.msra.mxu0 0.0
    %2508 = vmatprep.subr.mxu0 0.0
    %2509 = vmatpush1.xpose.msra.mxu0 0.0
    %2510 = vmatprep.subr.mxu0 0.0
    %2511 = vmatpush1.xpose.msra.mxu0 0.0
    %2512 = vmatprep.subr.mxu0 0.0
    %2513 = vmatpush1.xpose.msra.mxu0 0.0
    %2514 = vmatprep.subr.mxu0 0.0
    %2515 = vmatpush1.xpose.msra.mxu0 0.0
    %2516 = vmatprep.subr.mxu0 0.0
    %2517 = vmatpush1.xpose.msra.mxu0 0.0
    %2518 = vmatprep.subr.mxu0 0.0
    %2519 = vmatpush1.xpose.msra.mxu0 0.0
    %2520 = vmatprep.subr.mxu0 0.0
    %2521 = vmatpush1.xpose.msra.mxu0 0.0
    %2522 = vmatprep.subr.mxu0 0.0
    %2523 = vmatpush1.xpose.msra.mxu0 0.0
    %2524 = vmatprep.subr.mxu0 0.0
    %2525 = vmatpush1.xpose.msra.mxu0 0.0
    %2526 = vmatprep.subr.mxu0 0.0
    %2527 = vmatpush1.xpose.msra.mxu0 0.0
    %2528 = vmatprep.subr.mxu0 0.0
    %2529 = vmatpush1.xpose.msra.mxu0 0.0
    %2530 = vmatprep.subr.mxu0 0.0
    %2531 = vmatpush1.xpose.msra.mxu0 0.0
    %2532 = vmatprep.subr.mxu0 0.0
    %2533 = vmatpush1.xpose.msra.mxu0 0.0
    %2534 = vmatprep.subr.mxu0 0.0
    %2535 = vmatpush1.xpose.msra.mxu0 0.0
    %2536 = vmatprep.subr.mxu0 0.0
    %2537 = vmatpush1.xpose.msra.mxu0 0.0
    %2538 = vmatprep.subr.mxu0 0.0
    %2539 = vmatpush1.xpose.msra.mxu0 0.0
    %2540 = vmatprep.subr.mxu0 0.0
    %2541 = vmatpush1.xpose.msra.mxu0 0.0
    %2542 = vmatprep.subr.mxu0 0.0
    %2543 = vmatpush1.xpose.msra.mxu0 0.0
    %2544 = vmatprep.subr.mxu0 0.0
    %2545 = vmatpush1.xpose.msra.mxu0 0.0
    %2546 = vmatprep.subr.mxu0 0.0
    %2547 = vmatpush1.xpose.msra.mxu0 0.0
    %2548 = vmatprep.subr.mxu0 0.0
    %2549 = vmatpush1.xpose.msra.mxu0 0.0
    %2550 = vmatprep.mubr.f32.mxu0 0.0
    %2551 = vmatmul.mubr.f32.gmra.mrb[0].mxu0 %v2474
    %v2552 = vpop.f32.mrb[0].mxu0
    %v2553 = vadd.f32 %v70, %v2552
    %v2554 = vpop.f32.mrb[0].mxu0
    %2555 = vmatprep.mubr.f32.mxu0 0.0
    %2556 = vmatmul.mubr.f32.gmra.mrb[0].mxu0 %v2476
    %v2557 = vpop.f32.mrb[0].mxu0
    %v2558 = vadd.f32 %v71, %v2557
    %v2559 = vpop.f32.mrb[0].mxu0
    %2560 = vmatprep.mubr.f32.mxu0 0.0
    %2561 = vmatmul.mubr.f32.gmra.mrb[0].mxu0 %v2478
    %v2562 = vpop.f32.mrb[0].mxu0
    %v2563 = vadd.f32 %v72, %v2562
    %v2564 = vpop.f32.mrb[0].mxu0
    %2565 = vdwg.mxu0
    %v2566 = vsel %vm594, %v2553, -inf
    %2567 = vmax.xlane.f32.xlu0 %v2566
    %v2568 = vpop.xlane.xlu0 %2567
    %v2569 = vsel %vm594, %v2558, -inf
    %2570 = vmax.xlane.f32.xlu0 %v2569
    %v2571 = vpop.xlane.xlu0 %2570
    %v2572 = vsel %vm601, %v2563, -inf
    %2573 = vmax.xlane.f32.xlu0 %v2572
    %v2574 = vpop.xlane.xlu0 %2573
    %v2575 = vsub.f32 %v2553, %v2568
    %v2576 = vsub.f32 %v2558, %v2571
    %v2577 = vsub.f32 %v2563, %v2574
    %v2578 = vmul.f32 %v2575, 1.442695
    %v2579 = vpow.pop %v2578
    %v2580 = vmul.f32 %v2576, 1.442695
    %v2581 = vpow.pop %v2580
    %v2582 = vmul.f32 %v2577, 1.442695
    %v2583 = vpow.pop %v2582
    %v2584 = vsel %vm594, %v2579, 0.0
    %2585 = vadd.xlane.f32.xlu0 %v2584
    %v2586 = vpop.xlane.xlu0 %2585
    %v2587 = vsel %vm594, %v2581, 0.0
    %2588 = vadd.xlane.f32.xlu0 %v2587
    %v2589 = vpop.xlane.xlu0 %2588
    %v2590 = vsel %vm601, %v2583, 0.0
    %2591 = vadd.xlane.f32.xlu0 %v2590
    %v2592 = vpop.xlane.xlu0 %2591
    %v2593 = vrcp.pop %v2586
    %v2594 = vrcp.pop %v2589
    %v2595 = vrcp.pop %v2592
    %v2596 = vmul.f32 %v2579, %v2593
    %v2597 = vmul.f32 %v2581, %v2594
    %v2598 = vmul.f32 %v2583, %v2595
    %2599 = vrot.lane.b32.xlu0 %v2216, 56
    %v2600 = vpop.permute.xlu0 %2599
    %2601 = vrot.lane.b32.xlu0 %v2221, 56
    %v2602 = vpop.permute.xlu0 %2601
    %2603 = vrot.lane.b32.xlu0 %v2226, 56
    %v2604 = vpop.permute.xlu0 %2603
    %v2608 = vsel %vm594, %v2596, 0
    %v2611 = vsel %vm594, %v2597, 0
    %v2614 = vsel %vm594, %v2598, 0
    %v2616 = vsel %vm646, %v2604, 0
    %2618 = vmatprep.subr.mxu0 0.0
    %2619 = vmatpush1.msra.mxu0 %v2600
    %2620 = vmatprep.subr.mxu0 0.0
    %2621 = vmatpush1.msra.mxu0 %v2602
    %2622 = vmatprep.subr.mxu0 0.0
    %2623 = vmatpush1.msra.mxu0 %v2616
    %2624 = vmatprep.subr.mxu0 0.0
    %2625 = vmatpush1.msra.mxu0 0.0
    %2626 = vmatprep.subr.mxu0 0.0
    %2627 = vmatpush1.msra.mxu0 0.0
    %2628 = vmatprep.subr.mxu0 0.0
    %2629 = vmatpush1.msra.mxu0 0.0
    %2630 = vmatprep.subr.mxu0 0.0
    %2631 = vmatpush1.msra.mxu0 0.0
    %2632 = vmatprep.subr.mxu0 0.0
    %2633 = vmatpush1.msra.mxu0 0.0
    %2634 = vmatprep.subr.mxu0 0.0
    %2635 = vmatpush1.msra.mxu0 0.0
    %2636 = vmatprep.subr.mxu0 0.0
    %2637 = vmatpush1.msra.mxu0 0.0
    %2638 = vmatprep.subr.mxu0 0.0
    %2639 = vmatpush1.msra.mxu0 0.0
    %2640 = vmatprep.subr.mxu0 0.0
    %2641 = vmatpush1.msra.mxu0 0.0
    %2642 = vmatprep.subr.mxu0 0.0
    %2643 = vmatpush1.msra.mxu0 0.0
    %2644 = vmatprep.subr.mxu0 0.0
    %2645 = vmatpush1.msra.mxu0 0.0
    %2646 = vmatprep.subr.mxu0 0.0
    %2647 = vmatpush1.msra.mxu0 0.0
    %2648 = vmatprep.subr.mxu0 0.0
    %2649 = vmatpush1.msra.mxu0 0.0
    %2650 = vmatprep.subr.mxu0 0.0
    %2651 = vmatpush1.msra.mxu0 0.0
    %2652 = vmatprep.subr.mxu0 0.0
    %2653 = vmatpush1.msra.mxu0 0.0
    %2654 = vmatprep.subr.mxu0 0.0
    %2655 = vmatpush1.msra.mxu0 0.0
    %2656 = vmatprep.subr.mxu0 0.0
    %2657 = vmatpush1.msra.mxu0 0.0
    %2658 = vmatprep.subr.mxu0 0.0
    %2659 = vmatpush1.msra.mxu0 0.0
    %2660 = vmatprep.subr.mxu0 0.0
    %2661 = vmatpush1.msra.mxu0 0.0
    %2662 = vmatprep.subr.mxu0 0.0
    %2663 = vmatpush1.msra.mxu0 0.0
    %2664 = vmatprep.subr.mxu0 0.0
    %2665 = vmatpush1.msra.mxu0 0.0
    %2666 = vmatprep.subr.mxu0 0.0
    %2667 = vmatpush1.msra.mxu0 0.0
    %2668 = vmatprep.subr.mxu0 0.0
    %2669 = vmatpush1.msra.mxu0 0.0
    %2670 = vmatprep.subr.mxu0 0.0
    %2671 = vmatpush1.msra.mxu0 0.0
    %2672 = vmatprep.subr.mxu0 0.0
    %2673 = vmatpush1.msra.mxu0 0.0
    %2674 = vmatprep.subr.mxu0 0.0
    %2675 = vmatpush1.msra.mxu0 0.0
    %2676 = vmatprep.subr.mxu0 0.0
    %2677 = vmatpush1.msra.mxu0 0.0
    %2678 = vmatprep.subr.mxu0 0.0
    %2679 = vmatpush1.msra.mxu0 0.0
    %2680 = vmatprep.subr.mxu0 0.0
    %2681 = vmatpush1.msra.mxu0 0.0
    %2682 = vmatprep.mubr.f32.mxu0 0.0
    %2683 = vmatmul.mubr.f32.gmra.mrb[0].mxu0 %v2608
    %v2684 = vpop.f32.mrb[0].mxu0
    %v2685 = vadd.f32 0.0, %v2684
    %v2686 = vpop.f32.mrb[0].mxu0
    %2687 = vmatprep.mubr.f32.mxu0 0.0
    %2688 = vmatmul.mubr.f32.gmra.mrb[0].mxu0 %v2611
    %v2689 = vpop.f32.mrb[0].mxu0
    %v2690 = vadd.f32 0.0, %v2689
    %v2691 = vpop.f32.mrb[0].mxu0
    %2692 = vmatprep.mubr.f32.mxu0 0.0
    %2693 = vmatmul.mubr.f32.gmra.mrb[0].mxu0 %v2614
    %v2694 = vpop.f32.mrb[0].mxu0
    %v2695 = vadd.f32 0.0, %v2694
    %v2696 = vpop.f32.mrb[0].mxu0
    %2697 = vdwg.mxu0
    %v2699 = vsel %vm501, %v2685, 0
    %v2702 = vsel %vm501, %v2690, 0
    %v2705 = vsel %vm501, %v2695, 0
    %2707 = vmatprep.subr.mxu0 0.0
    %2708 = vmatpush1.msra.mxu0 %v2122
    %2709 = vmatprep.subr.mxu0 0.0
    %2710 = vmatpush1.msra.mxu0 0.0
    %2711 = vmatprep.subr.mxu0 0.0
    %2712 = vmatpush1.msra.mxu0 0.0
    %2713 = vmatprep.subr.mxu0 0.0
    %2714 = vmatpush1.msra.mxu0 0.0
    %2715 = vmatprep.subr.mxu0 0.0
    %2716 = vmatpush1.msra.mxu0 0.0
    %2717 = vmatprep.subr.mxu0 0.0
    %2718 = vmatpush1.msra.mxu0 0.0
    %2719 = vmatprep.subr.mxu0 0.0
    %2720 = vmatpush1.msra.mxu0 0.0
    %2721 = vmatprep.subr.mxu0 0.0
    %2722 = vmatpush1.msra.mxu0 0.0
    %2723 = vmatprep.subr.mxu0 0.0
    %2724 = vmatpush1.msra.mxu0 0.0
    %2725 = vmatprep.subr.mxu0 0.0
    %2726 = vmatpush1.msra.mxu0 0.0
    %2727 = vmatprep.subr.mxu0 0.0
    %2728 = vmatpush1.msra.mxu0 0.0
    %2729 = vmatprep.subr.mxu0 0.0
    %2730 = vmatpush1.msra.mxu0 0.0
    %2731 = vmatprep.subr.mxu0 0.0
    %2732 = vmatpush1.msra.mxu0 0.0
    %2733 = vmatprep.subr.mxu0 0.0
    %2734 = vmatpush1.msra.mxu0 0.0
    %2735 = vmatprep.subr.mxu0 0.0
    %2736 = vmatpush1.msra.mxu0 0.0
    %2737 = vmatprep.subr.mxu0 0.0
    %2738 = vmatpush1.msra.mxu0 0.0
    %2739 = vmatprep.subr.mxu0 0.0
    %2740 = vmatpush1.msra.mxu0 0.0
    %2741 = vmatprep.subr.mxu0 0.0
    %2742 = vmatpush1.msra.mxu0 0.0
    %2743 = vmatprep.subr.mxu0 0.0
    %2744 = vmatpush1.msra.mxu0 0.0
    %2745 = vmatprep.subr.mxu0 0.0
    %2746 = vmatpush1.msra.mxu0 0.0
    %2747 = vmatprep.subr.mxu0 0.0
    %2748 = vmatpush1.msra.mxu0 0.0
    %2749 = vmatprep.subr.mxu0 0.0
    %2750 = vmatpush1.msra.mxu0 0.0
    %2751 = vmatprep.subr.mxu0 0.0
    %2752 = vmatpush1.msra.mxu0 0.0
    %2753 = vmatprep.subr.mxu0 0.0
    %2754 = vmatpush1.msra.mxu0 0.0
    %2755 = vmatprep.subr.mxu0 0.0
    %2756 = vmatpush1.msra.mxu0 0.0
    %2757 = vmatprep.subr.mxu0 0.0
    %2758 = vmatpush1.msra.mxu0 0.0
    %2759 = vmatprep.subr.mxu0 0.0
    %2760 = vmatpush1.msra.mxu0 0.0
    %2761 = vmatprep.subr.mxu0 0.0
    %2762 = vmatpush1.msra.mxu0 0.0
    %2763 = vmatprep.subr.mxu0 0.0
    %2764 = vmatpush1.msra.mxu0 0.0
    %2765 = vmatprep.subr.mxu0 0.0
    %2766 = vmatpush1.msra.mxu0 0.0
    %2767 = vmatprep.subr.mxu0 0.0
    %2768 = vmatpush1.msra.mxu0 0.0
    %2769 = vmatprep.subr.mxu0 0.0
    %2770 = vmatpush1.msra.mxu0 0.0
    %2771 = vmatprep.mubr.f32.mxu0 0.0
    %2772 = vmatmul.mubr.f32.gmra.mrb[0].mxu0 %v2699
    %v2773 = vpop.f32.mrb[0].mxu0
    %v2774 = vadd.f32 0.0, %v2773
    %v2775 = vpop.f32.mrb[0].mxu0
    %2776 = vmatprep.mubr.f32.mxu0 0.0
    %2777 = vmatmul.mubr.f32.gmra.mrb[0].mxu0 %v2702
    %v2778 = vpop.f32.mrb[0].mxu0
    %v2779 = vadd.f32 0.0, %v2778
    %v2780 = vpop.f32.mrb[0].mxu0
    %2781 = vmatprep.mubr.f32.mxu0 0.0
    %2782 = vmatmul.mubr.f32.gmra.mrb[0].mxu0 %v2705
    %v2783 = vpop.f32.mrb[0].mxu0
    %v2784 = vadd.f32 0.0, %v2783
    %v2785 = vpop.f32.mrb[0].mxu0
    %2786 = vdwg.mxu0
    %v2788 = vsel %vm501, %v2449, 0
    %v2791 = vsel %vm501, %v2454, 0
    %v2794 = vsel %vm501, %v2459, 0
    %2796 = vmatprep.subr.mxu0 0.0
    %2797 = vmatpush1.msra.mxu0 %v2121
    %2798 = vmatprep.subr.mxu0 0.0
    %2799 = vmatpush1.msra.mxu0 0.0
    %2800 = vmatprep.subr.mxu0 0.0
    %2801 = vmatpush1.msra.mxu0 0.0
    %2802 = vmatprep.subr.mxu0 0.0
    %2803 = vmatpush1.msra.mxu0 0.0
    %2804 = vmatprep.subr.mxu0 0.0
    %2805 = vmatpush1.msra.mxu0 0.0
    %2806 = vmatprep.subr.mxu0 0.0
    %2807 = vmatpush1.msra.mxu0 0.0
    %2808 = vmatprep.subr.mxu0 0.0
    %2809 = vmatpush1.msra.mxu0 0.0
    %2810 = vmatprep.subr.mxu0 0.0
    %2811 = vmatpush1.msra.mxu0 0.0
    %2812 = vmatprep.subr.mxu0 0.0
    %2813 = vmatpush1.msra.mxu0 0.0
    %2814 = vmatprep.subr.mxu0 0.0
    %2815 = vmatpush1.msra.mxu0 0.0
    %2816 = vmatprep.subr.mxu0 0.0
    %2817 = vmatpush1.msra.mxu0 0.0
    %2818 = vmatprep.subr.mxu0 0.0
    %2819 = vmatpush1.msra.mxu0 0.0
    %2820 = vmatprep.subr.mxu0 0.0
    %2821 = vmatpush1.msra.mxu0 0.0
    %2822 = vmatprep.subr.mxu0 0.0
    %2823 = vmatpush1.msra.mxu0 0.0
    %2824 = vmatprep.subr.mxu0 0.0
    %2825 = vmatpush1.msra.mxu0 0.0
    %2826 = vmatprep.subr.mxu0 0.0
    %2827 = vmatpush1.msra.mxu0 0.0
    %2828 = vmatprep.subr.mxu0 0.0
    %2829 = vmatpush1.msra.mxu0 0.0
    %2830 = vmatprep.subr.mxu0 0.0
    %2831 = vmatpush1.msra.mxu0 0.0
    %2832 = vmatprep.subr.mxu0 0.0
    %2833 = vmatpush1.msra.mxu0 0.0
    %2834 = vmatprep.subr.mxu0 0.0
    %2835 = vmatpush1.msra.mxu0 0.0
    %2836 = vmatprep.subr.mxu0 0.0
    %2837 = vmatpush1.msra.mxu0 0.0
    %2838 = vmatprep.subr.mxu0 0.0
    %2839 = vmatpush1.msra.mxu0 0.0
    %2840 = vmatprep.subr.mxu0 0.0
    %2841 = vmatpush1.msra.mxu0 0.0
    %2842 = vmatprep.subr.mxu0 0.0
    %2843 = vmatpush1.msra.mxu0 0.0
    %2844 = vmatprep.subr.mxu0 0.0
    %2845 = vmatpush1.msra.mxu0 0.0
    %2846 = vmatprep.subr.mxu0 0.0
    %2847 = vmatpush1.msra.mxu0 0.0
    %2848 = vmatprep.subr.mxu0 0.0
    %2849 = vmatpush1.msra.mxu0 0.0
    %2850 = vmatprep.subr.mxu0 0.0
    %2851 = vmatpush1.msra.mxu0 0.0
    %2852 = vmatprep.subr.mxu0 0.0
    %2853 = vmatpush1.msra.mxu0 0.0
    %2854 = vmatprep.subr.mxu0 0.0
    %2855 = vmatpush1.msra.mxu0 0.0
    %2856 = vmatprep.subr.mxu0 0.0
    %2857 = vmatpush1.msra.mxu0 0.0
    %2858 = vmatprep.subr.mxu0 0.0
    %2859 = vmatpush1.msra.mxu0 0.0
    %2860 = vmatprep.mubr.f32.mxu0 0.0
    %2861 = vmatmul.mubr.f32.gmra.mrb[0].mxu0 %v2788
    %v2862 = vpop.f32.mrb[0].mxu0
    %v2863 = vadd.f32 %v2774, %v2862
    %v2864 = vpop.f32.mrb[0].mxu0
    %2865 = vmatprep.mubr.f32.mxu0 0.0
    %2866 = vmatmul.mubr.f32.gmra.mrb[0].mxu0 %v2791
    %v2867 = vpop.f32.mrb[0].mxu0
    %v2868 = vadd.f32 %v2779, %v2867
    %v2869 = vpop.f32.mrb[0].mxu0
    %2870 = vmatprep.mubr.f32.mxu0 0.0
    %2871 = vmatmul.mubr.f32.gmra.mrb[0].mxu0 %v2794
    %v2872 = vpop.f32.mrb[0].mxu0
    %v2873 = vadd.f32 %v2784, %v2872
    %v2874 = vpop.f32.mrb[0].mxu0
    %2875 = vdwg.mxu0
    %2876 = vrot.lane.b32.xlu0 %v2216, 112
    %v2877 = vpop.permute.xlu0 %2876
    %2878 = vrot.lane.b32.xlu0 %v2221, 112
    %v2879 = vpop.permute.xlu0 %2878
    %2880 = vrot.lane.b32.xlu0 %v2226, 112
    %v2881 = vpop.permute.xlu0 %2880
    %2882 = vrot.lane.b32.xlu0 %v2216, 80
    %v2883 = vpop.permute.xlu0 %2882
    %2884 = vrot.lane.b32.xlu0 %v2221, 80
    %v2885 = vpop.permute.xlu0 %2884
    %2886 = vrot.lane.b32.xlu0 %v2226, 80
    %v2887 = vpop.permute.xlu0 %2886
    %v2888 = vsel %vm501, %v2877, 0
    %v2890 = vsel %vm501, %v2879, 0
    %v2892 = vsel %vm501, %v2881, 0
    %v2894 = vsel %vm501, %v2883, 0
    %v2896 = vsel %vm501, %v2885, 0
    %v2898 = vsel %vm501, %v2887, 0
    %2900 = vmatprep.subr.mxu0 0.0
    %2901 = vmatpush1.xpose.msra.mxu0 %v2894
    %2902 = vmatprep.subr.mxu0 0.0
    %2903 = vmatpush1.xpose.msra.mxu0 %v2896
    %2904 = vmatprep.subr.mxu0 0.0
    %2905 = vmatpush1.xpose.msra.mxu0 %v2898
    %2906 = vmatprep.subr.mxu0 0.0
    %2907 = vmatpush1.xpose.msra.mxu0 0.0
    %2908 = vmatprep.subr.mxu0 0.0
    %2909 = vmatpush1.xpose.msra.mxu0 0.0
    %2910 = vmatprep.subr.mxu0 0.0
    %2911 = vmatpush1.xpose.msra.mxu0 0.0
    %2912 = vmatprep.subr.mxu0 0.0
    %2913 = vmatpush1.xpose.msra.mxu0 0.0
    %2914 = vmatprep.subr.mxu0 0.0
    %2915 = vmatpush1.xpose.msra.mxu0 0.0
    %2916 = vmatprep.subr.mxu0 0.0
    %2917 = vmatpush1.xpose.msra.mxu0 0.0
    %2918 = vmatprep.subr.mxu0 0.0
    %2919 = vmatpush1.xpose.msra.mxu0 0.0
    %2920 = vmatprep.subr.mxu0 0.0
    %2921 = vmatpush1.xpose.msra.mxu0 0.0
    %2922 = vmatprep.subr.mxu0 0.0
    %2923 = vmatpush1.xpose.msra.mxu0 0.0
    %2924 = vmatprep.subr.mxu0 0.0
    %2925 = vmatpush1.xpose.msra.mxu0 0.0
    %2926 = vmatprep.subr.mxu0 0.0
    %2927 = vmatpush1.xpose.msra.mxu0 0.0
    %2928 = vmatprep.subr.mxu0 0.0
    %2929 = vmatpush1.xpose.msra.mxu0 0.0
    %2930 = vmatprep.subr.mxu0 0.0
    %2931 = vmatpush1.xpose.msra.mxu0 0.0
    %2932 = vmatprep.subr.mxu0 0.0
    %2933 = vmatpush1.xpose.msra.mxu0 0.0
    %2934 = vmatprep.subr.mxu0 0.0
    %2935 = vmatpush1.xpose.msra.mxu0 0.0
    %2936 = vmatprep.subr.mxu0 0.0
    %2937 = vmatpush1.xpose.msra.mxu0 0.0
    %2938 = vmatprep.subr.mxu0 0.0
    %2939 = vmatpush1.xpose.msra.mxu0 0.0
    %2940 = vmatprep.subr.mxu0 0.0
    %2941 = vmatpush1.xpose.msra.mxu0 0.0
    %2942 = vmatprep.subr.mxu0 0.0
    %2943 = vmatpush1.xpose.msra.mxu0 0.0
    %2944 = vmatprep.subr.mxu0 0.0
    %2945 = vmatpush1.xpose.msra.mxu0 0.0
    %2946 = vmatprep.subr.mxu0 0.0
    %2947 = vmatpush1.xpose.msra.mxu0 0.0
    %2948 = vmatprep.subr.mxu0 0.0
    %2949 = vmatpush1.xpose.msra.mxu0 0.0
    %2950 = vmatprep.subr.mxu0 0.0
    %2951 = vmatpush1.xpose.msra.mxu0 0.0
    %2952 = vmatprep.subr.mxu0 0.0
    %2953 = vmatpush1.xpose.msra.mxu0 0.0
    %2954 = vmatprep.subr.mxu0 0.0
    %2955 = vmatpush1.xpose.msra.mxu0 0.0
    %2956 = vmatprep.subr.mxu0 0.0
    %2957 = vmatpush1.xpose.msra.mxu0 0.0
    %2958 = vmatprep.subr.mxu0 0.0
    %2959 = vmatpush1.xpose.msra.mxu0 0.0
    %2960 = vmatprep.subr.mxu0 0.0
    %2961 = vmatpush1.xpose.msra.mxu0 0.0
    %2962 = vmatprep.subr.mxu0 0.0
    %2963 = vmatpush1.xpose.msra.mxu0 0.0
    %2964 = vmatprep.mubr.f32.mxu0 0.0
    %2965 = vmatmul.mubr.f32.gmra.mrb[0].mxu0 %v2888
    %v2966 = vpop.f32.mrb[0].mxu0
    %v2967 = vadd.f32 %v70, %v2966
    %v2968 = vpop.f32.mrb[0].mxu0
    %2969 = vmatprep.mubr.f32.mxu0 0.0
    %2970 = vmatmul.mubr.f32.gmra.mrb[0].mxu0 %v2890
    %v2971 = vpop.f32.mrb[0].mxu0
    %v2972 = vadd.f32 %v71, %v2971
    %v2973 = vpop.f32.mrb[0].mxu0
    %2974 = vmatprep.mubr.f32.mxu0 0.0
    %2975 = vmatmul.mubr.f32.gmra.mrb[0].mxu0 %v2892
    %v2976 = vpop.f32.mrb[0].mxu0
    %v2977 = vadd.f32 %v72, %v2976
    %v2978 = vpop.f32.mrb[0].mxu0
    %2979 = vdwg.mxu0
    %v2980 = vsel %vm594, %v2967, -inf
    %2981 = vmax.xlane.f32.xlu0 %v2980
    %v2982 = vpop.xlane.xlu0 %2981
    %v2983 = vsel %vm594, %v2972, -inf
    %2984 = vmax.xlane.f32.xlu0 %v2983
    %v2985 = vpop.xlane.xlu0 %2984
    %v2986 = vsel %vm601, %v2977, -inf
    %2987 = vmax.xlane.f32.xlu0 %v2986
    %v2988 = vpop.xlane.xlu0 %2987
    %v2989 = vsub.f32 %v2967, %v2982
    %v2990 = vsub.f32 %v2972, %v2985
    %v2991 = vsub.f32 %v2977, %v2988
    %v2992 = vmul.f32 %v2989, 1.442695
    %v2993 = vpow.pop %v2992
    %v2994 = vmul.f32 %v2990, 1.442695
    %v2995 = vpow.pop %v2994
    %v2996 = vmul.f32 %v2991, 1.442695
    %v2997 = vpow.pop %v2996
    %v2998 = vsel %vm594, %v2993, 0.0
    %2999 = vadd.xlane.f32.xlu0 %v2998
    %v3000 = vpop.xlane.xlu0 %2999
    %v3001 = vsel %vm594, %v2995, 0.0
    %3002 = vadd.xlane.f32.xlu0 %v3001
    %v3003 = vpop.xlane.xlu0 %3002
    %v3004 = vsel %vm601, %v2997, 0.0
    %3005 = vadd.xlane.f32.xlu0 %v3004
    %v3006 = vpop.xlane.xlu0 %3005
    %v3007 = vrcp.pop %v3000
    %v3008 = vrcp.pop %v3003
    %v3009 = vrcp.pop %v3006
    %v3010 = vmul.f32 %v2993, %v3007
    %v3011 = vmul.f32 %v2995, %v3008
    %v3012 = vmul.f32 %v2997, %v3009
    %3013 = vrot.lane.b32.xlu0 %v2216, 48
    %v3014 = vpop.permute.xlu0 %3013
    %3015 = vrot.lane.b32.xlu0 %v2221, 48
    %v3016 = vpop.permute.xlu0 %3015
    %3017 = vrot.lane.b32.xlu0 %v2226, 48
    %v3018 = vpop.permute.xlu0 %3017
    %v3022 = vsel %vm594, %v3010, 0
    %v3025 = vsel %vm594, %v3011, 0
    %v3028 = vsel %vm594, %v3012, 0
    %v3030 = vsel %vm646, %v3018, 0
    %3032 = vmatprep.subr.mxu0 0.0
    %3033 = vmatpush1.msra.mxu0 %v3014
    %3034 = vmatprep.subr.mxu0 0.0
    %3035 = vmatpush1.msra.mxu0 %v3016
    %3036 = vmatprep.subr.mxu0 0.0
    %3037 = vmatpush1.msra.mxu0 %v3030
    %3038 = vmatprep.subr.mxu0 0.0
    %3039 = vmatpush1.msra.mxu0 0.0
    %3040 = vmatprep.subr.mxu0 0.0
    %3041 = vmatpush1.msra.mxu0 0.0
    %3042 = vmatprep.subr.mxu0 0.0
    %3043 = vmatpush1.msra.mxu0 0.0
    %3044 = vmatprep.subr.mxu0 0.0
    %3045 = vmatpush1.msra.mxu0 0.0
    %3046 = vmatprep.subr.mxu0 0.0
    %3047 = vmatpush1.msra.mxu0 0.0
    %3048 = vmatprep.subr.mxu0 0.0
    %3049 = vmatpush1.msra.mxu0 0.0
    %3050 = vmatprep.subr.mxu0 0.0
    %3051 = vmatpush1.msra.mxu0 0.0
    %3052 = vmatprep.subr.mxu0 0.0
    %3053 = vmatpush1.msra.mxu0 0.0
    %3054 = vmatprep.subr.mxu0 0.0
    %3055 = vmatpush1.msra.mxu0 0.0
    %3056 = vmatprep.subr.mxu0 0.0
    %3057 = vmatpush1.msra.mxu0 0.0
    %3058 = vmatprep.subr.mxu0 0.0
    %3059 = vmatpush1.msra.mxu0 0.0
    %3060 = vmatprep.subr.mxu0 0.0
    %3061 = vmatpush1.msra.mxu0 0.0
    %3062 = vmatprep.subr.mxu0 0.0
    %3063 = vmatpush1.msra.mxu0 0.0
    %3064 = vmatprep.subr.mxu0 0.0
    %3065 = vmatpush1.msra.mxu0 0.0
    %3066 = vmatprep.subr.mxu0 0.0
    %3067 = vmatpush1.msra.mxu0 0.0
    %3068 = vmatprep.subr.mxu0 0.0
    %3069 = vmatpush1.msra.mxu0 0.0
    %3070 = vmatprep.subr.mxu0 0.0
    %3071 = vmatpush1.msra.mxu0 0.0
    %3072 = vmatprep.subr.mxu0 0.0
    %3073 = vmatpush1.msra.mxu0 0.0
    %3074 = vmatprep.subr.mxu0 0.0
    %3075 = vmatpush1.msra.mxu0 0.0
    %3076 = vmatprep.subr.mxu0 0.0
    %3077 = vmatpush1.msra.mxu0 0.0
    %3078 = vmatprep.subr.mxu0 0.0
    %3079 = vmatpush1.msra.mxu0 0.0
    %3080 = vmatprep.subr.mxu0 0.0
    %3081 = vmatpush1.msra.mxu0 0.0
    %3082 = vmatprep.subr.mxu0 0.0
    %3083 = vmatpush1.msra.mxu0 0.0
    %3084 = vmatprep.subr.mxu0 0.0
    %3085 = vmatpush1.msra.mxu0 0.0
    %3086 = vmatprep.subr.mxu0 0.0
    %3087 = vmatpush1.msra.mxu0 0.0
    %3088 = vmatprep.subr.mxu0 0.0
    %3089 = vmatpush1.msra.mxu0 0.0
    %3090 = vmatprep.subr.mxu0 0.0
    %3091 = vmatpush1.msra.mxu0 0.0
    %3092 = vmatprep.subr.mxu0 0.0
    %3093 = vmatpush1.msra.mxu0 0.0
    %3094 = vmatprep.subr.mxu0 0.0
    %3095 = vmatpush1.msra.mxu0 0.0
    %3096 = vmatprep.mubr.f32.mxu0 0.0
    %3097 = vmatmul.mubr.f32.gmra.mrb[0].mxu0 %v3022
    %v3098 = vpop.f32.mrb[0].mxu0
    %v3099 = vadd.f32 0.0, %v3098
    %v3100 = vpop.f32.mrb[0].mxu0
    %3101 = vmatprep.mubr.f32.mxu0 0.0
    %3102 = vmatmul.mubr.f32.gmra.mrb[0].mxu0 %v3025
    %v3103 = vpop.f32.mrb[0].mxu0
    %v3104 = vadd.f32 0.0, %v3103
    %v3105 = vpop.f32.mrb[0].mxu0
    %3106 = vmatprep.mubr.f32.mxu0 0.0
    %3107 = vmatmul.mubr.f32.gmra.mrb[0].mxu0 %v3028
    %v3108 = vpop.f32.mrb[0].mxu0
    %v3109 = vadd.f32 0.0, %v3108
    %v3110 = vpop.f32.mrb[0].mxu0
    %3111 = vdwg.mxu0
    %v3113 = vsel %vm501, %v3099, 0
    %v3116 = vsel %vm501, %v3104, 0
    %v3119 = vsel %vm501, %v3109, 0
    %3121 = vmatprep.subr.mxu0 0.0
    %3122 = vmatpush1.msra.mxu0 %v2123
    %3123 = vmatprep.subr.mxu0 0.0
    %3124 = vmatpush1.msra.mxu0 0.0
    %3125 = vmatprep.subr.mxu0 0.0
    %3126 = vmatpush1.msra.mxu0 0.0
    %3127 = vmatprep.subr.mxu0 0.0
    %3128 = vmatpush1.msra.mxu0 0.0
    %3129 = vmatprep.subr.mxu0 0.0
    %3130 = vmatpush1.msra.mxu0 0.0
    %3131 = vmatprep.subr.mxu0 0.0
    %3132 = vmatpush1.msra.mxu0 0.0
    %3133 = vmatprep.subr.mxu0 0.0
    %3134 = vmatpush1.msra.mxu0 0.0
    %3135 = vmatprep.subr.mxu0 0.0
    %3136 = vmatpush1.msra.mxu0 0.0
    %3137 = vmatprep.subr.mxu0 0.0
    %3138 = vmatpush1.msra.mxu0 0.0
    %3139 = vmatprep.subr.mxu0 0.0
    %3140 = vmatpush1.msra.mxu0 0.0
    %3141 = vmatprep.subr.mxu0 0.0
    %3142 = vmatpush1.msra.mxu0 0.0
    %3143 = vmatprep.subr.mxu0 0.0
    %3144 = vmatpush1.msra.mxu0 0.0
    %3145 = vmatprep.subr.mxu0 0.0
    %3146 = vmatpush1.msra.mxu0 0.0
    %3147 = vmatprep.subr.mxu0 0.0
    %3148 = vmatpush1.msra.mxu0 0.0
    %3149 = vmatprep.subr.mxu0 0.0
    %3150 = vmatpush1.msra.mxu0 0.0
    %3151 = vmatprep.subr.mxu0 0.0
    %3152 = vmatpush1.msra.mxu0 0.0
    %3153 = vmatprep.subr.mxu0 0.0
    %3154 = vmatpush1.msra.mxu0 0.0
    %3155 = vmatprep.subr.mxu0 0.0
    %3156 = vmatpush1.msra.mxu0 0.0
    %3157 = vmatprep.subr.mxu0 0.0
    %3158 = vmatpush1.msra.mxu0 0.0
    %3159 = vmatprep.subr.mxu0 0.0
    %3160 = vmatpush1.msra.mxu0 0.0
    %3161 = vmatprep.subr.mxu0 0.0
    %3162 = vmatpush1.msra.mxu0 0.0
    %3163 = vmatprep.subr.mxu0 0.0
    %3164 = vmatpush1.msra.mxu0 0.0
    %3165 = vmatprep.subr.mxu0 0.0
    %3166 = vmatpush1.msra.mxu0 0.0
    %3167 = vmatprep.subr.mxu0 0.0
    %3168 = vmatpush1.msra.mxu0 0.0
    %3169 = vmatprep.subr.mxu0 0.0
    %3170 = vmatpush1.msra.mxu0 0.0
    %3171 = vmatprep.subr.mxu0 0.0
    %3172 = vmatpush1.msra.mxu0 0.0
    %3173 = vmatprep.subr.mxu0 0.0
    %3174 = vmatpush1.msra.mxu0 0.0
    %3175 = vmatprep.subr.mxu0 0.0
    %3176 = vmatpush1.msra.mxu0 0.0
    %3177 = vmatprep.subr.mxu0 0.0
    %3178 = vmatpush1.msra.mxu0 0.0
    %3179 = vmatprep.subr.mxu0 0.0
    %3180 = vmatpush1.msra.mxu0 0.0
    %3181 = vmatprep.subr.mxu0 0.0
    %3182 = vmatpush1.msra.mxu0 0.0
    %3183 = vmatprep.subr.mxu0 0.0
    %3184 = vmatpush1.msra.mxu0 0.0
    %3185 = vmatprep.mubr.f32.mxu0 0.0
    %3186 = vmatmul.mubr.f32.gmra.mrb[0].mxu0 %v3113
    %v3187 = vpop.f32.mrb[0].mxu0
    %v3188 = vadd.f32 0.0, %v3187
    %v3189 = vpop.f32.mrb[0].mxu0
    %3190 = vmatprep.mubr.f32.mxu0 0.0
    %3191 = vmatmul.mubr.f32.gmra.mrb[0].mxu0 %v3116
    %v3192 = vpop.f32.mrb[0].mxu0
    %v3193 = vadd.f32 0.0, %v3192
    %v3194 = vpop.f32.mrb[0].mxu0
    %3195 = vmatprep.mubr.f32.mxu0 0.0
    %3196 = vmatmul.mubr.f32.gmra.mrb[0].mxu0 %v3119
    %v3197 = vpop.f32.mrb[0].mxu0
    %v3198 = vadd.f32 0.0, %v3197
    %v3199 = vpop.f32.mrb[0].mxu0
    %3200 = vdwg.mxu0
    %v3201 = vadd.f32 %v2863, %v3188
    %v3202 = vadd.f32 %v2868, %v3193
    %v3203 = vadd.f32 %v2873, %v3198
    %3204 = vrot.lane.b32.xlu0 %v2216, 104
    %v3205 = vpop.permute.xlu0 %3204
    %3206 = vrot.lane.b32.xlu0 %v2221, 104
    %v3207 = vpop.permute.xlu0 %3206
    %3208 = vrot.lane.b32.xlu0 %v2226, 104
    %v3209 = vpop.permute.xlu0 %3208
    %3210 = vrot.lane.b32.xlu0 %v2216, 72
    %v3211 = vpop.permute.xlu0 %3210
    %3212 = vrot.lane.b32.xlu0 %v2221, 72
    %v3213 = vpop.permute.xlu0 %3212
    %3214 = vrot.lane.b32.xlu0 %v2226, 72
    %v3215 = vpop.permute.xlu0 %3214
    %v3216 = vsel %vm501, %v3205, 0
    %v3218 = vsel %vm501, %v3207, 0
    %v3220 = vsel %vm501, %v3209, 0
    %v3222 = vsel %vm501, %v3211, 0
    %v3224 = vsel %vm501, %v3213, 0
    %v3226 = vsel %vm501, %v3215, 0
    %3228 = vmatprep.subr.mxu0 0.0
    %3229 = vmatpush1.xpose.msra.mxu0 %v3222
    %3230 = vmatprep.subr.mxu0 0.0
    %3231 = vmatpush1.xpose.msra.mxu0 %v3224
    %3232 = vmatprep.subr.mxu0 0.0
    %3233 = vmatpush1.xpose.msra.mxu0 %v3226
    %3234 = vmatprep.subr.mxu0 0.0
    %3235 = vmatpush1.xpose.msra.mxu0 0.0
    %3236 = vmatprep.subr.mxu0 0.0
    %3237 = vmatpush1.xpose.msra.mxu0 0.0
    %3238 = vmatprep.subr.mxu0 0.0
    %3239 = vmatpush1.xpose.msra.mxu0 0.0
    %3240 = vmatprep.subr.mxu0 0.0
    %3241 = vmatpush1.xpose.msra.mxu0 0.0
    %3242 = vmatprep.subr.mxu0 0.0
    %3243 = vmatpush1.xpose.msra.mxu0 0.0
    %3244 = vmatprep.subr.mxu0 0.0
    %3245 = vmatpush1.xpose.msra.mxu0 0.0
    %3246 = vmatprep.subr.mxu0 0.0
    %3247 = vmatpush1.xpose.msra.mxu0 0.0
    %3248 = vmatprep.subr.mxu0 0.0
    %3249 = vmatpush1.xpose.msra.mxu0 0.0
    %3250 = vmatprep.subr.mxu0 0.0
    %3251 = vmatpush1.xpose.msra.mxu0 0.0
    %3252 = vmatprep.subr.mxu0 0.0
    %3253 = vmatpush1.xpose.msra.mxu0 0.0
    %3254 = vmatprep.subr.mxu0 0.0
    %3255 = vmatpush1.xpose.msra.mxu0 0.0
    %3256 = vmatprep.subr.mxu0 0.0
    %3257 = vmatpush1.xpose.msra.mxu0 0.0
    %3258 = vmatprep.subr.mxu0 0.0
    %3259 = vmatpush1.xpose.msra.mxu0 0.0
    %3260 = vmatprep.subr.mxu0 0.0
    %3261 = vmatpush1.xpose.msra.mxu0 0.0
    %3262 = vmatprep.subr.mxu0 0.0
    %3263 = vmatpush1.xpose.msra.mxu0 0.0
    %3264 = vmatprep.subr.mxu0 0.0
    %3265 = vmatpush1.xpose.msra.mxu0 0.0
    %3266 = vmatprep.subr.mxu0 0.0
    %3267 = vmatpush1.xpose.msra.mxu0 0.0
    %3268 = vmatprep.subr.mxu0 0.0
    %3269 = vmatpush1.xpose.msra.mxu0 0.0
    %3270 = vmatprep.subr.mxu0 0.0
    %3271 = vmatpush1.xpose.msra.mxu0 0.0
    %3272 = vmatprep.subr.mxu0 0.0
    %3273 = vmatpush1.xpose.msra.mxu0 0.0
    %3274 = vmatprep.subr.mxu0 0.0
    %3275 = vmatpush1.xpose.msra.mxu0 0.0
    %3276 = vmatprep.subr.mxu0 0.0
    %3277 = vmatpush1.xpose.msra.mxu0 0.0
    %3278 = vmatprep.subr.mxu0 0.0
    %3279 = vmatpush1.xpose.msra.mxu0 0.0
    %3280 = vmatprep.subr.mxu0 0.0
    %3281 = vmatpush1.xpose.msra.mxu0 0.0
    %3282 = vmatprep.subr.mxu0 0.0
    %3283 = vmatpush1.xpose.msra.mxu0 0.0
    %3284 = vmatprep.subr.mxu0 0.0
    %3285 = vmatpush1.xpose.msra.mxu0 0.0
    %3286 = vmatprep.subr.mxu0 0.0
    %3287 = vmatpush1.xpose.msra.mxu0 0.0
    %3288 = vmatprep.subr.mxu0 0.0
    %3289 = vmatpush1.xpose.msra.mxu0 0.0
    %3290 = vmatprep.subr.mxu0 0.0
    %3291 = vmatpush1.xpose.msra.mxu0 0.0
    %3292 = vmatprep.mubr.f32.mxu0 0.0
    %3293 = vmatmul.mubr.f32.gmra.mrb[0].mxu0 %v3216
    %v3294 = vpop.f32.mrb[0].mxu0
    %v3295 = vadd.f32 %v70, %v3294
    %v3296 = vpop.f32.mrb[0].mxu0
    %3297 = vmatprep.mubr.f32.mxu0 0.0
    %3298 = vmatmul.mubr.f32.gmra.mrb[0].mxu0 %v3218
    %v3299 = vpop.f32.mrb[0].mxu0
    %v3300 = vadd.f32 %v71, %v3299
    %v3301 = vpop.f32.mrb[0].mxu0
    %3302 = vmatprep.mubr.f32.mxu0 0.0
    %3303 = vmatmul.mubr.f32.gmra.mrb[0].mxu0 %v3220
    %v3304 = vpop.f32.mrb[0].mxu0
    %v3305 = vadd.f32 %v72, %v3304
    %v3306 = vpop.f32.mrb[0].mxu0
    %3307 = vdwg.mxu0
    %v3308 = vsel %vm594, %v3295, -inf
    %3309 = vmax.xlane.f32.xlu0 %v3308
    %v3310 = vpop.xlane.xlu0 %3309
    %v3311 = vsel %vm594, %v3300, -inf
    %3312 = vmax.xlane.f32.xlu0 %v3311
    %v3313 = vpop.xlane.xlu0 %3312
    %v3314 = vsel %vm601, %v3305, -inf
    %3315 = vmax.xlane.f32.xlu0 %v3314
    %v3316 = vpop.xlane.xlu0 %3315
    %v3317 = vsub.f32 %v3295, %v3310
    %v3318 = vsub.f32 %v3300, %v3313
    %v3319 = vsub.f32 %v3305, %v3316
    %v3320 = vmul.f32 %v3317, 1.442695
    %v3321 = vpow.pop %v3320
    %v3322 = vmul.f32 %v3318, 1.442695
    %v3323 = vpow.pop %v3322
    %v3324 = vmul.f32 %v3319, 1.442695
    %v3325 = vpow.pop %v3324
    %v3326 = vsel %vm594, %v3321, 0.0
    %3327 = vadd.xlane.f32.xlu0 %v3326
    %v3328 = vpop.xlane.xlu0 %3327
    %v3329 = vsel %vm594, %v3323, 0.0
    %3330 = vadd.xlane.f32.xlu0 %v3329
    %v3331 = vpop.xlane.xlu0 %3330
    %v3332 = vsel %vm601, %v3325, 0.0
    %3333 = vadd.xlane.f32.xlu0 %v3332
    %v3334 = vpop.xlane.xlu0 %3333
    %v3335 = vrcp.pop %v3328
    %v3336 = vrcp.pop %v3331
    %v3337 = vrcp.pop %v3334
    %v3338 = vmul.f32 %v3321, %v3335
    %v3339 = vmul.f32 %v3323, %v3336
    %v3340 = vmul.f32 %v3325, %v3337
    %3341 = vrot.lane.b32.xlu0 %v2216, 40
    %v3342 = vpop.permute.xlu0 %3341
    %3343 = vrot.lane.b32.xlu0 %v2221, 40
    %v3344 = vpop.permute.xlu0 %3343
    %3345 = vrot.lane.b32.xlu0 %v2226, 40
    %v3346 = vpop.permute.xlu0 %3345
    %v3350 = vsel %vm594, %v3338, 0
    %v3353 = vsel %vm594, %v3339, 0
    %v3356 = vsel %vm594, %v3340, 0
    %v3358 = vsel %vm646, %v3346, 0
    %3360 = vmatprep.subr.mxu0 0.0
    %3361 = vmatpush1.msra.mxu0 %v3342
    %3362 = vmatprep.subr.mxu0 0.0
    %3363 = vmatpush1.msra.mxu0 %v3344
    %3364 = vmatprep.subr.mxu0 0.0
    %3365 = vmatpush1.msra.mxu0 %v3358
    %3366 = vmatprep.subr.mxu0 0.0
    %3367 = vmatpush1.msra.mxu0 0.0
    %3368 = vmatprep.subr.mxu0 0.0
    %3369 = vmatpush1.msra.mxu0 0.0
    %3370 = vmatprep.subr.mxu0 0.0
    %3371 = vmatpush1.msra.mxu0 0.0
    %3372 = vmatprep.subr.mxu0 0.0
    %3373 = vmatpush1.msra.mxu0 0.0
    %3374 = vmatprep.subr.mxu0 0.0
    %3375 = vmatpush1.msra.mxu0 0.0
    %3376 = vmatprep.subr.mxu0 0.0
    %3377 = vmatpush1.msra.mxu0 0.0
    %3378 = vmatprep.subr.mxu0 0.0
    %3379 = vmatpush1.msra.mxu0 0.0
    %3380 = vmatprep.subr.mxu0 0.0
    %3381 = vmatpush1.msra.mxu0 0.0
    %3382 = vmatprep.subr.mxu0 0.0
    %3383 = vmatpush1.msra.mxu0 0.0
    %3384 = vmatprep.subr.mxu0 0.0
    %3385 = vmatpush1.msra.mxu0 0.0
    %3386 = vmatprep.subr.mxu0 0.0
    %3387 = vmatpush1.msra.mxu0 0.0
    %3388 = vmatprep.subr.mxu0 0.0
    %3389 = vmatpush1.msra.mxu0 0.0
    %3390 = vmatprep.subr.mxu0 0.0
    %3391 = vmatpush1.msra.mxu0 0.0
    %3392 = vmatprep.subr.mxu0 0.0
    %3393 = vmatpush1.msra.mxu0 0.0
    %3394 = vmatprep.subr.mxu0 0.0
    %3395 = vmatpush1.msra.mxu0 0.0
    %3396 = vmatprep.subr.mxu0 0.0
    %3397 = vmatpush1.msra.mxu0 0.0
    %3398 = vmatprep.subr.mxu0 0.0
    %3399 = vmatpush1.msra.mxu0 0.0
    %3400 = vmatprep.subr.mxu0 0.0
    %3401 = vmatpush1.msra.mxu0 0.0
    %3402 = vmatprep.subr.mxu0 0.0
    %3403 = vmatpush1.msra.mxu0 0.0
    %3404 = vmatprep.subr.mxu0 0.0
    %3405 = vmatpush1.msra.mxu0 0.0
    %3406 = vmatprep.subr.mxu0 0.0
    %3407 = vmatpush1.msra.mxu0 0.0
    %3408 = vmatprep.subr.mxu0 0.0
    %3409 = vmatpush1.msra.mxu0 0.0
    %3410 = vmatprep.subr.mxu0 0.0
    %3411 = vmatpush1.msra.mxu0 0.0
    %3412 = vmatprep.subr.mxu0 0.0
    %3413 = vmatpush1.msra.mxu0 0.0
    %3414 = vmatprep.subr.mxu0 0.0
    %3415 = vmatpush1.msra.mxu0 0.0
    %3416 = vmatprep.subr.mxu0 0.0
    %3417 = vmatpush1.msra.mxu0 0.0
    %3418 = vmatprep.subr.mxu0 0.0
    %3419 = vmatpush1.msra.mxu0 0.0
    %3420 = vmatprep.subr.mxu0 0.0
    %3421 = vmatpush1.msra.mxu0 0.0
    %3422 = vmatprep.subr.mxu0 0.0
    %3423 = vmatpush1.msra.mxu0 0.0
    %3424 = vmatprep.mubr.f32.mxu0 0.0
    %3425 = vmatmul.mubr.f32.gmra.mrb[0].mxu0 %v3350
    %v3426 = vpop.f32.mrb[0].mxu0
    %v3427 = vadd.f32 0.0, %v3426
    %v3428 = vpop.f32.mrb[0].mxu0
    %3429 = vmatprep.mubr.f32.mxu0 0.0
    %3430 = vmatmul.mubr.f32.gmra.mrb[0].mxu0 %v3353
    %v3431 = vpop.f32.mrb[0].mxu0
    %v3432 = vadd.f32 0.0, %v3431
    %v3433 = vpop.f32.mrb[0].mxu0
    %3434 = vmatprep.mubr.f32.mxu0 0.0
    %3435 = vmatmul.mubr.f32.gmra.mrb[0].mxu0 %v3356
    %v3436 = vpop.f32.mrb[0].mxu0
    %v3437 = vadd.f32 0.0, %v3436
    %v3438 = vpop.f32.mrb[0].mxu0
    %3439 = vdwg.mxu0
    %v3441 = vsel %vm501, %v3427, 0
    %v3444 = vsel %vm501, %v3432, 0
    %v3447 = vsel %vm501, %v3437, 0
    %3449 = vmatprep.subr.mxu0 0.0
    %3450 = vmatpush1.msra.mxu0 %v2124
    %3451 = vmatprep.subr.mxu0 0.0
    %3452 = vmatpush1.msra.mxu0 0.0
    %3453 = vmatprep.subr.mxu0 0.0
    %3454 = vmatpush1.msra.mxu0 0.0
    %3455 = vmatprep.subr.mxu0 0.0
    %3456 = vmatpush1.msra.mxu0 0.0
    %3457 = vmatprep.subr.mxu0 0.0
    %3458 = vmatpush1.msra.mxu0 0.0
    %3459 = vmatprep.subr.mxu0 0.0
    %3460 = vmatpush1.msra.mxu0 0.0
    %3461 = vmatprep.subr.mxu0 0.0
    %3462 = vmatpush1.msra.mxu0 0.0
    %3463 = vmatprep.subr.mxu0 0.0
    %3464 = vmatpush1.msra.mxu0 0.0
    %3465 = vmatprep.subr.mxu0 0.0
    %3466 = vmatpush1.msra.mxu0 0.0
    %3467 = vmatprep.subr.mxu0 0.0
    %3468 = vmatpush1.msra.mxu0 0.0
    %3469 = vmatprep.subr.mxu0 0.0
    %3470 = vmatpush1.msra.mxu0 0.0
    %3471 = vmatprep.subr.mxu0 0.0
    %3472 = vmatpush1.msra.mxu0 0.0
    %3473 = vmatprep.subr.mxu0 0.0
    %3474 = vmatpush1.msra.mxu0 0.0
    %3475 = vmatprep.subr.mxu0 0.0
    %3476 = vmatpush1.msra.mxu0 0.0
    %3477 = vmatprep.subr.mxu0 0.0
    %3478 = vmatpush1.msra.mxu0 0.0
    %3479 = vmatprep.subr.mxu0 0.0
    %3480 = vmatpush1.msra.mxu0 0.0
    %3481 = vmatprep.subr.mxu0 0.0
    %3482 = vmatpush1.msra.mxu0 0.0
    %3483 = vmatprep.subr.mxu0 0.0
    %3484 = vmatpush1.msra.mxu0 0.0
    %3485 = vmatprep.subr.mxu0 0.0
    %3486 = vmatpush1.msra.mxu0 0.0
    %3487 = vmatprep.subr.mxu0 0.0
    %3488 = vmatpush1.msra.mxu0 0.0
    %3489 = vmatprep.subr.mxu0 0.0
    %3490 = vmatpush1.msra.mxu0 0.0
    %3491 = vmatprep.subr.mxu0 0.0
    %3492 = vmatpush1.msra.mxu0 0.0
    %3493 = vmatprep.subr.mxu0 0.0
    %3494 = vmatpush1.msra.mxu0 0.0
    %3495 = vmatprep.subr.mxu0 0.0
    %3496 = vmatpush1.msra.mxu0 0.0
    %3497 = vmatprep.subr.mxu0 0.0
    %3498 = vmatpush1.msra.mxu0 0.0
    %3499 = vmatprep.subr.mxu0 0.0
    %3500 = vmatpush1.msra.mxu0 0.0
    %3501 = vmatprep.subr.mxu0 0.0
    %3502 = vmatpush1.msra.mxu0 0.0
    %3503 = vmatprep.subr.mxu0 0.0
    %3504 = vmatpush1.msra.mxu0 0.0
    %3505 = vmatprep.subr.mxu0 0.0
    %3506 = vmatpush1.msra.mxu0 0.0
    %3507 = vmatprep.subr.mxu0 0.0
    %3508 = vmatpush1.msra.mxu0 0.0
    %3509 = vmatprep.subr.mxu0 0.0
    %3510 = vmatpush1.msra.mxu0 0.0
    %3511 = vmatprep.subr.mxu0 0.0
    %3512 = vmatpush1.msra.mxu0 0.0
    %3513 = vmatprep.mubr.f32.mxu0 0.0
    %3514 = vmatmul.mubr.f32.gmra.mrb[0].mxu0 %v3441
    %v3515 = vpop.f32.mrb[0].mxu0
    %v3516 = vadd.f32 0.0, %v3515
    %v3517 = vpop.f32.mrb[0].mxu0
    %3518 = vmatprep.mubr.f32.mxu0 0.0
    %3519 = vmatmul.mubr.f32.gmra.mrb[0].mxu0 %v3444
    %v3520 = vpop.f32.mrb[0].mxu0
    %v3521 = vadd.f32 0.0, %v3520
    %v3522 = vpop.f32.mrb[0].mxu0
    %3523 = vmatprep.mubr.f32.mxu0 0.0
    %3524 = vmatmul.mubr.f32.gmra.mrb[0].mxu0 %v3447
    %v3525 = vpop.f32.mrb[0].mxu0
    %v3526 = vadd.f32 0.0, %v3525
    %v3527 = vpop.f32.mrb[0].mxu0
    %3528 = vdwg.mxu0
    %v3529 = vadd.f32 %v3201, %v3516
    %v3530 = vadd.f32 %v3202, %v3521
    %v3531 = vadd.f32 %v3203, %v3526
    %v3532 = vadd.f32 %v2107, %v3529
    %v3533 = vadd.f32 %v2108, %v3530
    %v3534 = vadd.f32 %v2109, %v3531
    %v3535 = vlaneseq
    %v3536 = vshrl.u32 %v3535, 7
    %v3537 = vsub.s32 1, %v3536
    %v3538 = vrot.slane %v2135, %v3537
    %v3539 = vadd.f32 %v3532, %v3538
    %v3540 = vadd.f32 %v3533, %v3538
    %v3541 = vadd.f32 %v3534, %v3538
    %v3542 = vsel %vm85, %v3539, 0.0
    %3543 = vadd.xlane.f32.xlu0 %v3542
    %v3544 = vpop.xlane.xlu0 %3543
    %v3545 = vsel %vm85, %v3540, 0.0
    %3546 = vadd.xlane.f32.xlu0 %v3545
    %v3547 = vpop.xlane.xlu0 %3546
    %v3548 = vsel %vm1815, %v3541, 0.0
    %3549 = vadd.xlane.f32.xlu0 %v3548
    %v3550 = vpop.xlane.xlu0 %3549
    %v3551 = vmul.f32 %v3544, %v1819
    %v3552 = vmul.f32 %v3547, %v1819
    %v3553 = vmul.f32 %v3550, %v1819
    %v3554 = vsub.f32 %v3539, %v3551
    %v3555 = vsub.f32 %v3540, %v3552
    %v3556 = vsub.f32 %v3541, %v3553
    %v3557 = vmul.f32 %v3554, %v3554
    %v3558 = vmul.f32 %v3555, %v3555
    %v3559 = vmul.f32 %v3556, %v3556
    %v3560 = vsel %vm85, %v3557, 0.0
    %3561 = vadd.xlane.f32.xlu0 %v3560
    %v3562 = vpop.xlane.xlu0 %3561
    %v3563 = vsel %vm85, %v3558, 0.0
    %3564 = vadd.xlane.f32.xlu0 %v3563
    %v3565 = vpop.xlane.xlu0 %3564
    %v3566 = vsel %vm1815, %v3559, 0.0
    %3567 = vadd.xlane.f32.xlu0 %v3566
    %v3568 = vpop.xlane.xlu0 %3567
    %v3569 = vmul.f32 %v3562, %v1819
    %v3570 = vmul.f32 %v3565, %v1819
    %v3571 = vmul.f32 %v3568, %v1819
    %v3572 = vadd.f32 %v3569, 1e-05
    %v3573 = vadd.f32 %v3570, 1e-05
    %v3574 = vadd.f32 %v3571, 1e-05
    %v3575 = vrsqrt.pop %v3572
    %v3576 = vrsqrt.pop %v3573
    %v3577 = vrsqrt.pop %v3574
    %v3578 = vmul.f32 %v3554, %v3575
    %v3579 = vmul.f32 %v3555, %v3576
    %v3580 = vmul.f32 %v3556, %v3577
    %v3581 = vlaneseq
    %v3582 = vshrl.u32 %v3581, 7
    %v3583 = vsub.s32 2, %v3582
    %v3584 = vrot.slane %v2135, %v3583
    %v3585 = vmul.f32 %v3578, %v3584
    %v3586 = vmul.f32 %v3579, %v3584
    %v3587 = vmul.f32 %v3580, %v3584
    %v3588 = vlaneseq
    %v3589 = vshrl.u32 %v3588, 7
    %v3590 = vsub.s32 3, %v3589
    %v3591 = vrot.slane %v2135, %v3590
    %v3592 = vadd.f32 %v3585, %v3591
    %v3593 = vadd.f32 %v3586, %v3591
    %v3594 = vadd.f32 %v3587, %v3591
    %v3595 = vlaneseq
    %v3596 = vshrl.u32 %v3595, 7
    %v3597 = vsub.s32 4, %v3596
    %v3598 = vrot.slane %v2135, %v3597
    %v3600 = vsel %vm85, %v3592, 0
    %v3603 = vsel %vm85, %v3593, 0
    %v3606 = vsel %vm85, %v3594, 0
    %3608 = vmatprep.subr.mxu0 0.0
    %3609 = vmatpush1.msra.mxu0 %v2116
    %3610 = vmatprep.subr.mxu0 0.0
    %3611 = vmatpush1.msra.mxu0 %v2117
    %3612 = vmatprep.subr.mxu0 0.0
    %3613 = vmatpush1.msra.mxu0 %v2118
    %3614 = vmatprep.subr.mxu0 0.0
    %3615 = vmatpush1.msra.mxu0 %v2119
    %3616 = vmatprep.subr.mxu0 0.0
    %3617 = vmatpush1.msra.mxu0 0.0
    %3618 = vmatprep.subr.mxu0 0.0
    %3619 = vmatpush1.msra.mxu0 0.0
    %3620 = vmatprep.subr.mxu0 0.0
    %3621 = vmatpush1.msra.mxu0 0.0
    %3622 = vmatprep.subr.mxu0 0.0
    %3623 = vmatpush1.msra.mxu0 0.0
    %3624 = vmatprep.subr.mxu0 0.0
    %3625 = vmatpush1.msra.mxu0 0.0
    %3626 = vmatprep.subr.mxu0 0.0
    %3627 = vmatpush1.msra.mxu0 0.0
    %3628 = vmatprep.subr.mxu0 0.0
    %3629 = vmatpush1.msra.mxu0 0.0
    %3630 = vmatprep.subr.mxu0 0.0
    %3631 = vmatpush1.msra.mxu0 0.0
    %3632 = vmatprep.subr.mxu0 0.0
    %3633 = vmatpush1.msra.mxu0 0.0
    %3634 = vmatprep.subr.mxu0 0.0
    %3635 = vmatpush1.msra.mxu0 0.0
    %3636 = vmatprep.subr.mxu0 0.0
    %3637 = vmatpush1.msra.mxu0 0.0
    %3638 = vmatprep.subr.mxu0 0.0
    %3639 = vmatpush1.msra.mxu0 0.0
    %3640 = vmatprep.subr.mxu0 0.0
    %3641 = vmatpush1.msra.mxu0 0.0
    %3642 = vmatprep.subr.mxu0 0.0
    %3643 = vmatpush1.msra.mxu0 0.0
    %3644 = vmatprep.subr.mxu0 0.0
    %3645 = vmatpush1.msra.mxu0 0.0
    %3646 = vmatprep.subr.mxu0 0.0
    %3647 = vmatpush1.msra.mxu0 0.0
    %3648 = vmatprep.subr.mxu0 0.0
    %3649 = vmatpush1.msra.mxu0 0.0
    %3650 = vmatprep.subr.mxu0 0.0
    %3651 = vmatpush1.msra.mxu0 0.0
    %3652 = vmatprep.subr.mxu0 0.0
    %3653 = vmatpush1.msra.mxu0 0.0
    %3654 = vmatprep.subr.mxu0 0.0
    %3655 = vmatpush1.msra.mxu0 0.0
    %3656 = vmatprep.subr.mxu0 0.0
    %3657 = vmatpush1.msra.mxu0 0.0
    %3658 = vmatprep.subr.mxu0 0.0
    %3659 = vmatpush1.msra.mxu0 0.0
    %3660 = vmatprep.subr.mxu0 0.0
    %3661 = vmatpush1.msra.mxu0 0.0
    %3662 = vmatprep.subr.mxu0 0.0
    %3663 = vmatpush1.msra.mxu0 0.0
    %3664 = vmatprep.subr.mxu0 0.0
    %3665 = vmatpush1.msra.mxu0 0.0
    %3666 = vmatprep.subr.mxu0 0.0
    %3667 = vmatpush1.msra.mxu0 0.0
    %3668 = vmatprep.subr.mxu0 0.0
    %3669 = vmatpush1.msra.mxu0 0.0
    %3670 = vmatprep.subr.mxu0 0.0
    %3671 = vmatpush1.msra.mxu0 0.0
    %3672 = vmatprep.mubr.f32.mxu0 0.0
    %3673 = vmatmul.mubr.f32.gmra.mrb[0].mxu0 %v3600
    %v3674 = vpop.f32.mrb[0].mxu0
    %v3675 = vadd.f32 %v3598, %v3674
    %v3676 = vpop.f32.mrb[0].mxu0
    %3677 = vmatprep.mubr.f32.mxu0 0.0
    %3678 = vmatmul.mubr.f32.gmra.mrb[0].mxu0 %v3603
    %v3679 = vpop.f32.mrb[0].mxu0
    %v3680 = vadd.f32 %v3598, %v3679
    %v3681 = vpop.f32.mrb[0].mxu0
    %3682 = vmatprep.mubr.f32.mxu0 0.0
    %3683 = vmatmul.mubr.f32.gmra.mrb[0].mxu0 %v3606
    %v3684 = vpop.f32.mrb[0].mxu0
    %v3685 = vadd.f32 %v3598, %v3684
    %v3686 = vpop.f32.mrb[0].mxu0
    %3687 = vdwg.mxu0
    %v3688 = vmax.f32 %v3675, 0.0
    %v3689 = vmax.f32 %v3680, 0.0
    %v3690 = vmax.f32 %v3685, 0.0
    %v3691 = vlaneseq
    %v3692 = vshrl.u32 %v3691, 7
    %v3693 = vsub.s32 5, %v3692
    %v3694 = vrot.slane %v2135, %v3693
    %v3696 = vsel %vm1964, %v3688, 0
    %v3699 = vsel %vm1964, %v3689, 0
    %v3702 = vsel %vm1964, %v3690, 0
    %3704 = vmatprep.subr.mxu0 0.0
    %3705 = vmatpush1.msra.mxu0 %v2126
    %3706 = vmatprep.subr.mxu0 0.0
    %3707 = vmatpush1.msra.mxu0 %v2127
    %3708 = vmatprep.subr.mxu0 0.0
    %3709 = vmatpush1.msra.mxu0 %v2128
    %3710 = vmatprep.subr.mxu0 0.0
    %3711 = vmatpush1.msra.mxu0 %v2129
    %3712 = vmatprep.subr.mxu0 0.0
    %3713 = vmatpush1.msra.mxu0 %v2130
    %3714 = vmatprep.subr.mxu0 0.0
    %3715 = vmatpush1.msra.mxu0 %v2131
    %3716 = vmatprep.subr.mxu0 0.0
    %3717 = vmatpush1.msra.mxu0 %v2132
    %3718 = vmatprep.subr.mxu0 0.0
    %3719 = vmatpush1.msra.mxu0 %v2133
    %3720 = vmatprep.subr.mxu0 0.0
    %3721 = vmatpush1.msra.mxu0 0.0
    %3722 = vmatprep.subr.mxu0 0.0
    %3723 = vmatpush1.msra.mxu0 0.0
    %3724 = vmatprep.subr.mxu0 0.0
    %3725 = vmatpush1.msra.mxu0 0.0
    %3726 = vmatprep.subr.mxu0 0.0
    %3727 = vmatpush1.msra.mxu0 0.0
    %3728 = vmatprep.subr.mxu0 0.0
    %3729 = vmatpush1.msra.mxu0 0.0
    %3730 = vmatprep.subr.mxu0 0.0
    %3731 = vmatpush1.msra.mxu0 0.0
    %3732 = vmatprep.subr.mxu0 0.0
    %3733 = vmatpush1.msra.mxu0 0.0
    %3734 = vmatprep.subr.mxu0 0.0
    %3735 = vmatpush1.msra.mxu0 0.0
    %3736 = vmatprep.subr.mxu0 0.0
    %3737 = vmatpush1.msra.mxu0 0.0
    %3738 = vmatprep.subr.mxu0 0.0
    %3739 = vmatpush1.msra.mxu0 0.0
    %3740 = vmatprep.subr.mxu0 0.0
    %3741 = vmatpush1.msra.mxu0 0.0
    %3742 = vmatprep.subr.mxu0 0.0
    %3743 = vmatpush1.msra.mxu0 0.0
    %3744 = vmatprep.subr.mxu0 0.0
    %3745 = vmatpush1.msra.mxu0 0.0
    %3746 = vmatprep.subr.mxu0 0.0
    %3747 = vmatpush1.msra.mxu0 0.0
    %3748 = vmatprep.subr.mxu0 0.0
    %3749 = vmatpush1.msra.mxu0 0.0
    %3750 = vmatprep.subr.mxu0 0.0
    %3751 = vmatpush1.msra.mxu0 0.0
    %3752 = vmatprep.subr.mxu0 0.0
    %3753 = vmatpush1.msra.mxu0 0.0
    %3754 = vmatprep.subr.mxu0 0.0
    %3755 = vmatpush1.msra.mxu0 0.0
    %3756 = vmatprep.subr.mxu0 0.0
    %3757 = vmatpush1.msra.mxu0 0.0
    %3758 = vmatprep.subr.mxu0 0.0
    %3759 = vmatpush1.msra.mxu0 0.0
    %3760 = vmatprep.subr.mxu0 0.0
    %3761 = vmatpush1.msra.mxu0 0.0
    %3762 = vmatprep.subr.mxu0 0.0
    %3763 = vmatpush1.msra.mxu0 0.0
    %3764 = vmatprep.subr.mxu0 0.0
    %3765 = vmatpush1.msra.mxu0 0.0
    %3766 = vmatprep.subr.mxu0 0.0
    %3767 = vmatpush1.msra.mxu0 0.0
    %3768 = vmatprep.mubr.f32.mxu0 0.0
    %3769 = vmatmul.mubr.f32.gmra.mrb[0].mxu0 %v3696
    %v3770 = vpop.f32.mrb[0].mxu0
    %v3771 = vpop.f32.mrb[0].mxu0
    %3772 = vmatprep.mubr.f32.mxu0 0.0
    %3773 = vmatmul.mubr.f32.gmra.mrb[0].mxu0 %v3699
    %v3774 = vpop.f32.mrb[0].mxu0
    %v3775 = vadd.f32 %v3694, %v3774
    %v3776 = vpop.f32.mrb[0].mxu0
    %3777 = vmatprep.mubr.f32.mxu0 0.0
    %3778 = vmatmul.mubr.f32.gmra.mrb[0].mxu0 %v3702
    %v3779 = vpop.f32.mrb[0].mxu0
    %v3780 = vadd.f32 %v3694, %v3779
    %v3781 = vpop.f32.mrb[0].mxu0
    %3782 = vdwg.mxu0
    %v3783 = vadd.f32 %v3593, %v3775
    %v3784 = vadd.f32 %v3594, %v3780
    %v3785 = vsel %vm85, %v3783, 0.0
    %3786 = vadd.xlane.f32.xlu0 %v3785
    %v3787 = vpop.xlane.xlu0 %3786
    %v3788 = vsel %vm1815, %v3784, 0.0
    %3789 = vadd.xlane.f32.xlu0 %v3788
    %v3790 = vpop.xlane.xlu0 %3789
    %v3791 = vmul.f32 %v3787, %v1819
    %v3792 = vmul.f32 %v3790, %v1819
    %v3793 = vsub.f32 %v3783, %v3791
    %v3794 = vsub.f32 %v3784, %v3792
    %v3795 = vmul.f32 %v3793, %v3793
    %v3796 = vmul.f32 %v3794, %v3794
    %v3797 = vsel %vm85, %v3795, 0.0
    %3798 = vadd.xlane.f32.xlu0 %v3797
    %v3799 = vpop.xlane.xlu0 %3798
    %v3800 = vsel %vm1815, %v3796, 0.0
    %3801 = vadd.xlane.f32.xlu0 %v3800
    %v3802 = vpop.xlane.xlu0 %3801
    %v3803 = vmul.f32 %v3799, %v1819
    %v3804 = vmul.f32 %v3802, %v1819
    %v3805 = vadd.f32 %v3803, 1e-05
    %v3806 = vadd.f32 %v3804, 1e-05
    %v3807 = vrsqrt.pop %v3805
    %v3808 = vrsqrt.pop %v3806
    %v3809 = vmul.f32 %v3793, %v3807
    %v3810 = vmul.f32 %v3794, %v3808
    %v3811 = vlaneseq
    %v3812 = vshrl.u32 %v3811, 7
    %v3813 = vsub.s32 6, %v3812
    %v3814 = vrot.slane %v2135, %v3813
    %v3815 = vmul.f32 %v3809, %v3814
    %v3816 = vmul.f32 %v3810, %v3814
    %v3817 = vlaneseq
    %v3818 = vshrl.u32 %v3817, 7
    %v3819 = vsub.s32 7, %v3818
    %v3820 = vrot.slane %v2135, %v3819
    %v3821 = vadd.f32 %v3815, %v3820
    %v3822 = vadd.f32 %v3816, %v3820
    %v3824 = vrot.slane %v3822, 1
    %vm3826 = vcmask 1040384
    %v3827 = vsel %vm3826, %v3821, %v3824
    %s3828 = scalar_lea.vmem %s2, 96
    %v3829 = vld [vmem:[%s3828] sm:$0xff]
    %v3830 = vld [vmem:[%s3828 + $0x8] sm:$0xff]
    %v3831 = vld [vmem:[%s3828 + $0x10] sm:$0xff]
    %v3832 = vld [vmem:[%s3828 + $0x18] sm:$0xff]
    %v3833 = vlaneseq
    %v3834 = vshrl.u32 %v3833, 7
    %v3835 = vsub.s32 0, %v3834
    %v3836 = vrot.slane %v64, %v3835
    %v3838 = vsel %vm85, %v3827, 0
    %3840 = vmatprep.subr.mxu0 0.0
    %3841 = vmatpush1.msra.mxu0 %v3829
    %3842 = vmatprep.subr.mxu0 0.0
    %3843 = vmatpush1.msra.mxu0 %v3830
    %3844 = vmatprep.subr.mxu0 0.0
    %3845 = vmatpush1.msra.mxu0 %v3831
    %3846 = vmatprep.subr.mxu0 0.0
    %3847 = vmatpush1.msra.mxu0 %v3832
    %3848 = vmatprep.subr.mxu0 0.0
    %3849 = vmatpush1.msra.mxu0 0.0
    %3850 = vmatprep.subr.mxu0 0.0
    %3851 = vmatpush1.msra.mxu0 0.0
    %3852 = vmatprep.subr.mxu0 0.0
    %3853 = vmatpush1.msra.mxu0 0.0
    %3854 = vmatprep.subr.mxu0 0.0
    %3855 = vmatpush1.msra.mxu0 0.0
    %3856 = vmatprep.subr.mxu0 0.0
    %3857 = vmatpush1.msra.mxu0 0.0
    %3858 = vmatprep.subr.mxu0 0.0
    %3859 = vmatpush1.msra.mxu0 0.0
    %3860 = vmatprep.subr.mxu0 0.0
    %3861 = vmatpush1.msra.mxu0 0.0
    %3862 = vmatprep.subr.mxu0 0.0
    %3863 = vmatpush1.msra.mxu0 0.0
    %3864 = vmatprep.subr.mxu0 0.0
    %3865 = vmatpush1.msra.mxu0 0.0
    %3866 = vmatprep.subr.mxu0 0.0
    %3867 = vmatpush1.msra.mxu0 0.0
    %3868 = vmatprep.subr.mxu0 0.0
    %3869 = vmatpush1.msra.mxu0 0.0
    %3870 = vmatprep.subr.mxu0 0.0
    %3871 = vmatpush1.msra.mxu0 0.0
    %3872 = vmatprep.subr.mxu0 0.0
    %3873 = vmatpush1.msra.mxu0 0.0
    %3874 = vmatprep.subr.mxu0 0.0
    %3875 = vmatpush1.msra.mxu0 0.0
    %3876 = vmatprep.subr.mxu0 0.0
    %3877 = vmatpush1.msra.mxu0 0.0
    %3878 = vmatprep.subr.mxu0 0.0
    %3879 = vmatpush1.msra.mxu0 0.0
    %3880 = vmatprep.subr.mxu0 0.0
    %3881 = vmatpush1.msra.mxu0 0.0
    %3882 = vmatprep.subr.mxu0 0.0
    %3883 = vmatpush1.msra.mxu0 0.0
    %3884 = vmatprep.subr.mxu0 0.0
    %3885 = vmatpush1.msra.mxu0 0.0
    %3886 = vmatprep.subr.mxu0 0.0
    %3887 = vmatpush1.msra.mxu0 0.0
    %3888 = vmatprep.subr.mxu0 0.0
    %3889 = vmatpush1.msra.mxu0 0.0
    %3890 = vmatprep.subr.mxu0 0.0
    %3891 = vmatpush1.msra.mxu0 0.0
    %3892 = vmatprep.subr.mxu0 0.0
    %3893 = vmatpush1.msra.mxu0 0.0
    %3894 = vmatprep.subr.mxu0 0.0
    %3895 = vmatpush1.msra.mxu0 0.0
    %3896 = vmatprep.subr.mxu0 0.0
    %3897 = vmatpush1.msra.mxu0 0.0
    %3898 = vmatprep.subr.mxu0 0.0
    %3899 = vmatpush1.msra.mxu0 0.0
    %3900 = vmatprep.subr.mxu0 0.0
    %3901 = vmatpush1.msra.mxu0 0.0
    %3902 = vmatprep.subr.mxu0 0.0
    %3903 = vmatpush1.msra.mxu0 0.0
    %3904 = vmatprep.mubr.f32.mxu0 0.0
    %3905 = vmatmul.mubr.f32.gmra.mrb[0].mxu0 %v3838
    %v3906 = vpop.f32.mrb[0].mxu0
    %v3907 = vadd.f32 %v3836, %v3906
    %v3908 = vpop.f32.mrb[0].mxu0
    %3909 = vdwg.mxu0
    %v3910 = vmax.f32 %v3907, 0.0
    %s3911 = scalar_lea.vmem %s2, 128
    %v3912 = vld [vmem:[%s3911] sm:$0xff]
    %v3913 = vld [vmem:[%s3911 + $0x8] sm:$0xff]
    %v3914 = vld [vmem:[%s3911 + $0x10] sm:$0xff]
    %v3915 = vld [vmem:[%s3911 + $0x18] sm:$0xff]
    %v3916 = vlaneseq
    %v3917 = vshrl.u32 %v3916, 7
    %v3918 = vsub.s32 0, %v3917
    %v3919 = vrot.slane %v65, %v3918
    %v3921 = vsel %vm85, %v3910, 0
    %3923 = vmatprep.subr.mxu0 0.0
    %3924 = vmatpush1.msra.mxu0 %v3912
    %3925 = vmatprep.subr.mxu0 0.0
    %3926 = vmatpush1.msra.mxu0 %v3913
    %3927 = vmatprep.subr.mxu0 0.0
    %3928 = vmatpush1.msra.mxu0 %v3914
    %3929 = vmatprep.subr.mxu0 0.0
    %3930 = vmatpush1.msra.mxu0 %v3915
    %3931 = vmatprep.subr.mxu0 0.0
    %3932 = vmatpush1.msra.mxu0 0.0
    %3933 = vmatprep.subr.mxu0 0.0
    %3934 = vmatpush1.msra.mxu0 0.0
    %3935 = vmatprep.subr.mxu0 0.0
    %3936 = vmatpush1.msra.mxu0 0.0
    %3937 = vmatprep.subr.mxu0 0.0
    %3938 = vmatpush1.msra.mxu0 0.0
    %3939 = vmatprep.subr.mxu0 0.0
    %3940 = vmatpush1.msra.mxu0 0.0
    %3941 = vmatprep.subr.mxu0 0.0
    %3942 = vmatpush1.msra.mxu0 0.0
    %3943 = vmatprep.subr.mxu0 0.0
    %3944 = vmatpush1.msra.mxu0 0.0
    %3945 = vmatprep.subr.mxu0 0.0
    %3946 = vmatpush1.msra.mxu0 0.0
    %3947 = vmatprep.subr.mxu0 0.0
    %3948 = vmatpush1.msra.mxu0 0.0
    %3949 = vmatprep.subr.mxu0 0.0
    %3950 = vmatpush1.msra.mxu0 0.0
    %3951 = vmatprep.subr.mxu0 0.0
    %3952 = vmatpush1.msra.mxu0 0.0
    %3953 = vmatprep.subr.mxu0 0.0
    %3954 = vmatpush1.msra.mxu0 0.0
    %3955 = vmatprep.subr.mxu0 0.0
    %3956 = vmatpush1.msra.mxu0 0.0
    %3957 = vmatprep.subr.mxu0 0.0
    %3958 = vmatpush1.msra.mxu0 0.0
    %3959 = vmatprep.subr.mxu0 0.0
    %3960 = vmatpush1.msra.mxu0 0.0
    %3961 = vmatprep.subr.mxu0 0.0
    %3962 = vmatpush1.msra.mxu0 0.0
    %3963 = vmatprep.subr.mxu0 0.0
    %3964 = vmatpush1.msra.mxu0 0.0
    %3965 = vmatprep.subr.mxu0 0.0
    %3966 = vmatpush1.msra.mxu0 0.0
    %3967 = vmatprep.subr.mxu0 0.0
    %3968 = vmatpush1.msra.mxu0 0.0
    %3969 = vmatprep.subr.mxu0 0.0
    %3970 = vmatpush1.msra.mxu0 0.0
    %3971 = vmatprep.subr.mxu0 0.0
    %3972 = vmatpush1.msra.mxu0 0.0
    %3973 = vmatprep.subr.mxu0 0.0
    %3974 = vmatpush1.msra.mxu0 0.0
    %3975 = vmatprep.subr.mxu0 0.0
    %3976 = vmatpush1.msra.mxu0 0.0
    %3977 = vmatprep.subr.mxu0 0.0
    %3978 = vmatpush1.msra.mxu0 0.0
    %3979 = vmatprep.subr.mxu0 0.0
    %3980 = vmatpush1.msra.mxu0 0.0
    %3981 = vmatprep.subr.mxu0 0.0
    %3982 = vmatpush1.msra.mxu0 0.0
    %3983 = vmatprep.subr.mxu0 0.0
    %3984 = vmatpush1.msra.mxu0 0.0
    %3985 = vmatprep.subr.mxu0 0.0
    %3986 = vmatpush1.msra.mxu0 0.0
    %3987 = vmatprep.mubr.f32.mxu0 0.0
    %3988 = vmatmul.mubr.f32.gmra.mrb[0].mxu0 %v3921
    %v3989 = vpop.f32.mrb[0].mxu0
    %v3990 = vadd.f32 %v3919, %v3989
    %v3991 = vpop.f32.mrb[0].mxu0
    %3992 = vdwg.mxu0
    %v3993 = vmax.f32 %v3990, 0.0
    %s3994 = scalar_lea.vmem %s2, 160
    %v3995 = vld [vmem:[%s3994] sm:$0xff]
    %v3996 = vld [vmem:[%s3994 + $0x8] sm:$0xff]
    %v3997 = vld [vmem:[%s3994 + $0x10] sm:$0xff]
    %v3998 = vld [vmem:[%s3994 + $0x18] sm:$0xff]
    %v3999 = vlaneseq
    %v4000 = vshrl.u32 %v3999, 7
    %v4001 = vsub.s32 0, %v4000
    %v4002 = vrot.slane %v66, %v4001
    %v4004 = vsel %vm85, %v3993, 0
    %4006 = vmatprep.subr.mxu0 0.0
    %4007 = vmatpush1.msra.mxu0 %v3995
    %4008 = vmatprep.subr.mxu0 0.0
    %4009 = vmatpush1.msra.mxu0 %v3996
    %4010 = vmatprep.subr.mxu0 0.0
    %4011 = vmatpush1.msra.mxu0 %v3997
    %4012 = vmatprep.subr.mxu0 0.0
    %4013 = vmatpush1.msra.mxu0 %v3998
    %4014 = vmatprep.subr.mxu0 0.0
    %4015 = vmatpush1.msra.mxu0 0.0
    %4016 = vmatprep.subr.mxu0 0.0
    %4017 = vmatpush1.msra.mxu0 0.0
    %4018 = vmatprep.subr.mxu0 0.0
    %4019 = vmatpush1.msra.mxu0 0.0
    %4020 = vmatprep.subr.mxu0 0.0
    %4021 = vmatpush1.msra.mxu0 0.0
    %4022 = vmatprep.subr.mxu0 0.0
    %4023 = vmatpush1.msra.mxu0 0.0
    %4024 = vmatprep.subr.mxu0 0.0
    %4025 = vmatpush1.msra.mxu0 0.0
    %4026 = vmatprep.subr.mxu0 0.0
    %4027 = vmatpush1.msra.mxu0 0.0
    %4028 = vmatprep.subr.mxu0 0.0
    %4029 = vmatpush1.msra.mxu0 0.0
    %4030 = vmatprep.subr.mxu0 0.0
    %4031 = vmatpush1.msra.mxu0 0.0
    %4032 = vmatprep.subr.mxu0 0.0
    %4033 = vmatpush1.msra.mxu0 0.0
    %4034 = vmatprep.subr.mxu0 0.0
    %4035 = vmatpush1.msra.mxu0 0.0
    %4036 = vmatprep.subr.mxu0 0.0
    %4037 = vmatpush1.msra.mxu0 0.0
    %4038 = vmatprep.subr.mxu0 0.0
    %4039 = vmatpush1.msra.mxu0 0.0
    %4040 = vmatprep.subr.mxu0 0.0
    %4041 = vmatpush1.msra.mxu0 0.0
    %4042 = vmatprep.subr.mxu0 0.0
    %4043 = vmatpush1.msra.mxu0 0.0
    %4044 = vmatprep.subr.mxu0 0.0
    %4045 = vmatpush1.msra.mxu0 0.0
    %4046 = vmatprep.subr.mxu0 0.0
    %4047 = vmatpush1.msra.mxu0 0.0
    %4048 = vmatprep.subr.mxu0 0.0
    %4049 = vmatpush1.msra.mxu0 0.0
    %4050 = vmatprep.subr.mxu0 0.0
    %4051 = vmatpush1.msra.mxu0 0.0
    %4052 = vmatprep.subr.mxu0 0.0
    %4053 = vmatpush1.msra.mxu0 0.0
    %4054 = vmatprep.subr.mxu0 0.0
    %4055 = vmatpush1.msra.mxu0 0.0
    %4056 = vmatprep.subr.mxu0 0.0
    %4057 = vmatpush1.msra.mxu0 0.0
    %4058 = vmatprep.subr.mxu0 0.0
    %4059 = vmatpush1.msra.mxu0 0.0
    %4060 = vmatprep.subr.mxu0 0.0
    %4061 = vmatpush1.msra.mxu0 0.0
    %4062 = vmatprep.subr.mxu0 0.0
    %4063 = vmatpush1.msra.mxu0 0.0
    %4064 = vmatprep.subr.mxu0 0.0
    %4065 = vmatpush1.msra.mxu0 0.0
    %4066 = vmatprep.subr.mxu0 0.0
    %4067 = vmatpush1.msra.mxu0 0.0
    %4068 = vmatprep.subr.mxu0 0.0
    %4069 = vmatpush1.msra.mxu0 0.0
    %4070 = vmatprep.mubr.f32.mxu0 0.0
    %4071 = vmatmul.mubr.f32.gmra.mrb[0].mxu0 %v4004
    %v4072 = vpop.f32.mrb[0].mxu0
    %v4073 = vadd.f32 %v4002, %v4072
    %v4074 = vpop.f32.mrb[0].mxu0
    %4075 = vdwg.mxu0
    %vm4076 = vcmask 254976
    %4077 = vst.msk [vmem:[#allocation7] sm:$0x3] %vm4076, %v4073
    // Predicated region
    $region46: #{tpu_custom_call.1} parent=1 // pred_check
      _
    $region47: #{tpu_custom_call.1} parent=1 // pred_check_branch
      %4079 = sbr.rel (0) target = $region49
    $region48: #{tpu_custom_call.1} parent=1 // pred_region
      %s4081 = ssub.s32 32, 32
      %4082 = vsyncadd [#allocation4], %s4081
      %s4084 = sshll.u32 [#allocation7], 4
      %s4085 = int_to_ptr.vmem [resolvable:$true] %s4084
      %4087 = dma.vmem_to_hbm [thread:$0]  %s4085, 32, %s9, [#allocation4]
    $region49: #{tpu_custom_call.1} parent=1 // pred_fallthru
      _
    // Predicated region
    $region50: #{tpu_custom_call.1} parent=1 // pred_check
      _
    $region51: #{tpu_custom_call.1} parent=1 // pred_check_branch
      %4089 = sbr.rel (0) target = $region53
    $region52: #{tpu_custom_call.1} parent=1 // pred_region
      %4090 = dma.done [#allocation4], 32
    $region53: #{tpu_custom_call.1} parent=1 // pred_fallthru
      _
    %4091 = vsyncpa [#allocation3], 1
    %4092 = vsyncpa [#allocation6], 1
    %4093 = vsyncpa [#allocation4], 1

</llo_original>
